<compile_context>
chip_gen: v7x
topology: tpu7x:2x2x1
jax: 0.10.0
libtpu: 0.0.40
codegen_flags: <defaults>
</compile_context>

<pallas_src>
import functools

import jax
import jax.numpy as jnp
from jax.experimental import pallas as pl
from jax.experimental.pallas import tpu as pltpu


# ---------------------------------------------------------------------------
# In-kernel helper: MaxPool2d(kernel_size=2) on a (H*W*N, C) value whose rows are
# ordered (y, x, image):  row = (y*W + x)*N + img.
# Uses only minor-dim-preserving reshapes and max over non-minor axes (layout-safe).
# ---------------------------------------------------------------------------
def _maxpool2x2(v, height, width, n):
    C = v.shape[-1]
    v = v.reshape(height * (width // 2), 2, n, C)
    v = jnp.max(v, axis=1)                              # pool along W
    v = v.reshape(height // 2, 2, (width // 2) * n, C)
    v = jnp.max(v, axis=1)                              # pool along H
    return v.reshape((height // 2) * (width // 2) * n, C)


# ---------------------------------------------------------------------------
# Fused forward kernel (single invocation, no grid):
#   x_ref  : (H*W*N, Cin) f32   rows ordered (y, x, image)
#   w*_ref : (Cin|Ch, Ch) bf16  1x1 conv weights, input-major: y = x @ w + b
#   b*_ref : (1, Ch)      f32
#   w3_ref : (P2, Ch, O)  bf16  classifier weight with the NCHW-flatten permutation
#                               folded in: w3[p, c, o] = Wc_torch[o, c*P2 + p]
#   bc_ref : (1, O)       f32
#   o_ref  : (N, O)       f32
# ---------------------------------------------------------------------------
def _fused_forward_kernel(x_ref, w1a_ref, b1a_ref, w1b_ref, b1b_ref,
                          w2a_ref, b2a_ref, w2b_ref, b2b_ref,
                          w3_ref, bc_ref, o_ref, *, n, h, w):
    xb = x_ref[...].astype(jnp.bfloat16)

    # conv_block_1: 1x1 conv == per-pixel matmul over channels (MXU bf16 in, f32 acc)
    a = jnp.dot(xb, w1a_ref[...], preferred_element_type=jnp.float32) + b1a_ref[...]
    a = jnp.maximum(a, 0.0)
    a = jnp.dot(a.astype(jnp.bfloat16), w1b_ref[...],
                preferred_element_type=jnp.float32) + b1b_ref[...]
    a = jnp.maximum(a, 0.0)
    a = _maxpool2x2(a, h, w, n)                          # ((H/2)*(W/2)*N, Ch)

    # conv_block_2
    a = jnp.dot(a.astype(jnp.bfloat16), w2a_ref[...],
                preferred_element_type=jnp.float32) + b2a_ref[...]
    a = jnp.maximum(a, 0.0)
    a = jnp.dot(a.astype(jnp.bfloat16), w2b_ref[...],
                preferred_element_type=jnp.float32) + b2b_ref[...]
    a = jnp.maximum(a, 0.0)
    a = _maxpool2x2(a, h // 2, w // 2, n)                # (P2*N, Ch), row = p*N + img

    # classifier: Flatten(NCHW) + Linear as an MXU contraction batched over the pooled
    # spatial position p (permutation lives in w3); all reshapes are leading-dim only.
    p2 = (h // 4) * (w // 4)
    ch = a.shape[-1]
    ap = a.reshape(p2, n, ch)                            # (P2, N, Ch) leading split
    y = jnp.einsum("pnc,pco->pno", ap.astype(jnp.bfloat16), w3_ref[...],
                   preferred_element_type=jnp.float32)   # (P2, N, O) on the MXU
    out = jnp.sum(y, axis=0) + bc_ref[...]               # (N, O)
    o_ref[...] = out.astype(o_ref.dtype)


def pokemon_identifier_forward(x_nchw, params):
    """Forward pass. x_nchw: (N, C, H, W) float32 -> (N, output_size) float32."""
    N, C, H, W = x_nchw.shape
    Ch = params["w1a"].shape[-1]
    O = params["bc"].shape[-1]
    P2 = (H // 4) * (W // 4)

    # Single layout op per forward (sanctioned): NCHW -> (H, W, N, C) -> (H*W*N, C).
    # Channels land on the lane axis, images interleave on the row axis (so the
    # classifier can be a leading-batch MXU contraction with no in-kernel lane-merging
    # reshape), and the flatten fuses into this transpose for free.
    x2d = jnp.transpose(x_nchw, (2, 3, 0, 1)).reshape(H * W * N, C)

    flops = (2 * H * W * N * C * Ch                     # conv1a
             + 2 * H * W * N * Ch * Ch                  # conv1b
             + 2 * (H // 2) * (W // 2) * N * Ch * Ch * 2  # conv2a + conv2b
             + 2 * N * P2 * Ch * O)                     # classifier
    bytes_accessed = (x2d.size * x2d.dtype.itemsize
                      + sum(int(v.size) * v.dtype.itemsize for v in params.values())
                      + N * O * 4)

    kernel = functools.partial(_fused_forward_kernel, n=N, h=H, w=W)
    vmem_spec = pl.BlockSpec(memory_space=pltpu.MemorySpace.VMEM)  # whole array, no pipelining

    out = pl.pallas_call(
        kernel,
        out_shape=jax.ShapeDtypeStruct((N, O), jnp.float32),
        in_specs=[vmem_spec] * 11,
        out_specs=vmem_spec,
        cost_estimate=pl.CostEstimate(flops=int(flops), transcendentals=0,
                                      bytes_accessed=int(bytes_accessed)),
    )(x2d,
      params["w1a"], params["b1a"], params["w1b"], params["b1b"],
      params["w2a"], params["b2a"], params["w2b"], params["b2b"],
      params["w3"], params["bc"])

    return out


# ---------------------------------------------------------------------------
# Parameter init (deterministic, PyTorch-like uniform(-1/sqrt(fan_in), +...)).
# Conv weights are stored as (Cin, Cout) bf16 (PyTorch (Cout, Cin, 1, 1) transposed);
# biases stay f32.  The classifier weight is created in PyTorch NCHW-flatten layout
# (F, O) and permuted ONCE here into (P2, Ch, O) so the kernel needs no transposes.
# ---------------------------------------------------------------------------
def init_params(key, input_size, hidden_size, output_size, spatial):
    P2 = (spatial // 4) * (spatial // 4)
    flat_features = hidden_size * P2
    ks = jax.random.split(key, 10)

    def u(k, shape, fan_in):
        bound = 1.0 / jnp.sqrt(jnp.float32(fan_in))
        return jax.random.uniform(k, shape, jnp.float32, -bound, bound)

    # torch-layout classifier weight: wc[f, o] with f = c * P2 + p (NCHW flatten order)
    wc = u(ks[8], (flat_features, output_size), flat_features)
    # fold the NCHW-flatten permutation: w3[p, c, o] = wc[c*P2 + p, o]
    w3 = wc.reshape(hidden_size, P2, output_size).transpose(1, 0, 2)

    bf = jnp.bfloat16
    return {
        # conv_block_1
        "w1a": u(ks[0], (input_size, hidden_size), input_size).astype(bf),
        "b1a": u(ks[1], (1, hidden_size), input_size),
        "w1b": u(ks[2], (hidden_size, hidden_size), hidden_size).astype(bf),
        "b1b": u(ks[3], (1, hidden_size), hidden_size),
        # conv_block_2
        "w2a": u(ks[4], (hidden_size, hidden_size), hidden_size).astype(bf),
        "b2a": u(ks[5], (1, hidden_size), hidden_size),
        "w2b": u(ks[6], (hidden_size, hidden_size), hidden_size).astype(bf),
        "b2b": u(ks[7], (1, hidden_size), hidden_size),
        # classifier (permutation-folded weight + bias)
        "w3": w3.astype(bf),
        "bc": u(ks[9], (1, output_size), flat_features),
    }


if __name__ == "__main__":
    # Small shapes consistent with the module's forward:
    batch, input_size, spatial = 2, 4, 16
    hidden_size, output_size = 32, 16

    key = jax.random.PRNGKey(0)
    kx, kp = jax.random.split(key)
    x = jax.random.normal(kx, (batch, input_size, spatial, spatial), jnp.float32)
    params = init_params(kp, input_size, hidden_size, output_size, spatial)

    out = jax.jit(pokemon_identifier_forward)(x, params)
    out = jax.block_until_ready(out)
    assert out.shape == (batch, output_size), out.shape
    assert out.dtype == jnp.float32

    print("KERNEL_OK")
</pallas_src>

<mosaic_0001>
module attributes {stable_mosaic.version = 11 : i64} {
  func.func @_fused_forward_kernel(%arg0: memref<512x4xf32, #tpu.memory_space<vmem>>, %arg1: memref<4x32xbf16, #tpu.memory_space<vmem>>, %arg2: memref<1x32xf32, #tpu.memory_space<vmem>>, %arg3: memref<32x32xbf16, #tpu.memory_space<vmem>>, %arg4: memref<1x32xf32, #tpu.memory_space<vmem>>, %arg5: memref<32x32xbf16, #tpu.memory_space<vmem>>, %arg6: memref<1x32xf32, #tpu.memory_space<vmem>>, %arg7: memref<32x32xbf16, #tpu.memory_space<vmem>>, %arg8: memref<1x32xf32, #tpu.memory_space<vmem>>, %arg9: memref<16x32x16xbf16, #tpu.memory_space<vmem>>, %arg10: memref<1x16xf32, #tpu.memory_space<vmem>>, %arg11: memref<2x16xf32, #tpu.memory_space<vmem>>) attributes {dimension_semantics = [], scalar_prefetch = 0 : i64, scratch_operands = 0 : i64, tpu.core_type = #tpu.core_type<tc>} {
    %c0 = arith.constant 0 : index
    %c0_0 = arith.constant 0 : index
    %0 = vector.load %arg0[%c0, %c0_0] : memref<512x4xf32, #tpu.memory_space<vmem>>, vector<512x4xf32>
    %1 = arith.truncf %0 : vector<512x4xf32> to vector<512x4xbf16>
    %c0_1 = arith.constant 0 : index
    %c0_2 = arith.constant 0 : index
    %2 = vector.load %arg1[%c0_1, %c0_2] : memref<4x32xbf16, #tpu.memory_space<vmem>>, vector<4x32xbf16>
    %cst = arith.constant dense<0.000000e+00> : vector<512x32xf32>
    %3 = tpu.matmul %1, %2, %cst {dimension_numbers = #tpu.dot_dimension_numbers<[1], [0], [0], [1], [0, 0, 1, 1], [], []>} : vector<512x4xbf16>, vector<4x32xbf16>, vector<512x32xf32> -> vector<512x32xf32>
    %c0_3 = arith.constant 0 : index
    %c0_4 = arith.constant 0 : index
    %4 = vector.load %arg2[%c0_3, %c0_4] : memref<1x32xf32, #tpu.memory_space<vmem>>, vector<1x32xf32>
    %5 = vector.broadcast %4 : vector<1x32xf32> to vector<512x32xf32>
    %6 = arith.addf %3, %5 : vector<512x32xf32>
    %cst_5 = arith.constant 0.000000e+00 : f32
    %7 = vector.broadcast %cst_5 : f32 to vector<512x32xf32>
    %8 = arith.maximumf %6, %7 : vector<512x32xf32>
    %9 = arith.truncf %8 : vector<512x32xf32> to vector<512x32xbf16>
    %c0_6 = arith.constant 0 : index
    %c0_7 = arith.constant 0 : index
    %10 = vector.load %arg3[%c0_6, %c0_7] : memref<32x32xbf16, #tpu.memory_space<vmem>>, vector<32x32xbf16>
    %cst_8 = arith.constant dense<0.000000e+00> : vector<512x32xf32>
    %11 = tpu.matmul %9, %10, %cst_8 {dimension_numbers = #tpu.dot_dimension_numbers<[1], [0], [0], [1], [0, 0, 1, 1], [], []>} : vector<512x32xbf16>, vector<32x32xbf16>, vector<512x32xf32> -> vector<512x32xf32>
    %c0_9 = arith.constant 0 : index
    %c0_10 = arith.constant 0 : index
    %12 = vector.load %arg4[%c0_9, %c0_10] : memref<1x32xf32, #tpu.memory_space<vmem>>, vector<1x32xf32>
    %13 = vector.broadcast %12 : vector<1x32xf32> to vector<512x32xf32>
    %14 = arith.addf %11, %13 : vector<512x32xf32>
    %cst_11 = arith.constant 0.000000e+00 : f32
    %15 = vector.broadcast %cst_11 : f32 to vector<512x32xf32>
    %16 = arith.maximumf %14, %15 : vector<512x32xf32>
    %17 = vector.shape_cast %16 : vector<512x32xf32> to vector<128x2x2x32xf32>
    %cst_12 = arith.constant dense<0xFF800000> : vector<128x2x32xf32>
    %18 = vector.multi_reduction <maximumf>, %17, %cst_12 [1] : vector<128x2x2x32xf32> to vector<128x2x32xf32>
    %19 = vector.shape_cast %18 : vector<128x2x32xf32> to vector<8x2x16x32xf32>
    %cst_13 = arith.constant dense<0xFF800000> : vector<8x16x32xf32>
    %20 = vector.multi_reduction <maximumf>, %19, %cst_13 [1] : vector<8x2x16x32xf32> to vector<8x16x32xf32>
    %21 = vector.shape_cast %20 : vector<8x16x32xf32> to vector<128x32xf32>
    %22 = arith.truncf %21 : vector<128x32xf32> to vector<128x32xbf16>
    %c0_14 = arith.constant 0 : index
    %c0_15 = arith.constant 0 : index
    %23 = vector.load %arg5[%c0_14, %c0_15] : memref<32x32xbf16, #tpu.memory_space<vmem>>, vector<32x32xbf16>
    %cst_16 = arith.constant dense<0.000000e+00> : vector<128x32xf32>
    %24 = tpu.matmul %22, %23, %cst_16 {dimension_numbers = #tpu.dot_dimension_numbers<[1], [0], [0], [1], [0, 0, 1, 1], [], []>} : vector<128x32xbf16>, vector<32x32xbf16>, vector<128x32xf32> -> vector<128x32xf32>
    %c0_17 = arith.constant 0 : index
    %c0_18 = arith.constant 0 : index
    %25 = vector.load %arg6[%c0_17, %c0_18] : memref<1x32xf32, #tpu.memory_space<vmem>>, vector<1x32xf32>
    %26 = vector.broadcast %25 : vector<1x32xf32> to vector<128x32xf32>
    %27 = arith.addf %24, %26 : vector<128x32xf32>
    %cst_19 = arith.constant 0.000000e+00 : f32
    %28 = vector.broadcast %cst_19 : f32 to vector<128x32xf32>
    %29 = arith.maximumf %27, %28 : vector<128x32xf32>
    %30 = arith.truncf %29 : vector<128x32xf32> to vector<128x32xbf16>
    %c0_20 = arith.constant 0 : index
    %c0_21 = arith.constant 0 : index
    %31 = vector.load %arg7[%c0_20, %c0_21] : memref<32x32xbf16, #tpu.memory_space<vmem>>, vector<32x32xbf16>
    %cst_22 = arith.constant dense<0.000000e+00> : vector<128x32xf32>
    %32 = tpu.matmul %30, %31, %cst_22 {dimension_numbers = #tpu.dot_dimension_numbers<[1], [0], [0], [1], [0, 0, 1, 1], [], []>} : vector<128x32xbf16>, vector<32x32xbf16>, vector<128x32xf32> -> vector<128x32xf32>
    %c0_23 = arith.constant 0 : index
    %c0_24 = arith.constant 0 : index
    %33 = vector.load %arg8[%c0_23, %c0_24] : memref<1x32xf32, #tpu.memory_space<vmem>>, vector<1x32xf32>
    %34 = vector.broadcast %33 : vector<1x32xf32> to vector<128x32xf32>
    %35 = arith.addf %32, %34 : vector<128x32xf32>
    %cst_25 = arith.constant 0.000000e+00 : f32
    %36 = vector.broadcast %cst_25 : f32 to vector<128x32xf32>
    %37 = arith.maximumf %35, %36 : vector<128x32xf32>
    %38 = vector.shape_cast %37 : vector<128x32xf32> to vector<32x2x2x32xf32>
    %cst_26 = arith.constant dense<0xFF800000> : vector<32x2x32xf32>
    %39 = vector.multi_reduction <maximumf>, %38, %cst_26 [1] : vector<32x2x2x32xf32> to vector<32x2x32xf32>
    %40 = vector.shape_cast %39 : vector<32x2x32xf32> to vector<4x2x8x32xf32>
    %cst_27 = arith.constant dense<0xFF800000> : vector<4x8x32xf32>
    %41 = vector.multi_reduction <maximumf>, %40, %cst_27 [1] : vector<4x2x8x32xf32> to vector<4x8x32xf32>
    %42 = vector.shape_cast %41 : vector<4x8x32xf32> to vector<32x32xf32>
    %43 = vector.shape_cast %42 : vector<32x32xf32> to vector<16x2x32xf32>
    %44 = arith.truncf %43 : vector<16x2x32xf32> to vector<16x2x32xbf16>
    %c0_28 = arith.constant 0 : index
    %c0_29 = arith.constant 0 : index
    %c0_30 = arith.constant 0 : index
    %45 = vector.load %arg9[%c0_28, %c0_29, %c0_30] : memref<16x32x16xbf16, #tpu.memory_space<vmem>>, vector<16x32x16xbf16>
    "tpu.trace_start"() <{level = 10 : i32, message = "pnc,pco->pno"}> : () -> ()
    %cst_31 = arith.constant dense<0.000000e+00> : vector<16x2x16xf32>
    %46 = tpu.matmul %44, %45, %cst_31 {dimension_numbers = #tpu.dot_dimension_numbers<[2], [1], [1], [2], [0, 0, 0, 1, 1, 2], [0], [0]>} : vector<16x2x32xbf16>, vector<16x32x16xbf16>, vector<16x2x16xf32> -> vector<16x2x16xf32>
    "tpu.trace_stop"() : () -> ()
    %cst_32 = arith.constant dense<0.000000e+00> : vector<2x16xf32>
    %47 = vector.multi_reduction <add>, %46, %cst_32 [0] : vector<16x2x16xf32> to vector<2x16xf32>
    %c0_33 = arith.constant 0 : index
    %c0_34 = arith.constant 0 : index
    %48 = vector.load %arg10[%c0_33, %c0_34] : memref<1x16xf32, #tpu.memory_space<vmem>>, vector<1x16xf32>
    %49 = vector.broadcast %48 : vector<1x16xf32> to vector<2x16xf32>
    %50 = arith.addf %47, %49 : vector<2x16xf32>
    %c0_35 = arith.constant 0 : index
    %c0_36 = arith.constant 0 : index
    %51 = vector.load %arg11[%c0_35, %c0_36] : memref<2x16xf32, #tpu.memory_space<vmem>>, vector<2x16xf32>
    tpu.vector_store %arg11[%c0_35, %c0_36], %50 {strides = array<i32>} : memref<2x16xf32, #tpu.memory_space<vmem>>, vector<2x16xf32>,
    return
  }
}

</mosaic_0001>

<llo_original>
// kernel: pokemon_identifier_forward.1
$region0: #{pokemon_identifier_forward.1}
  #allocation0 [shape = 'u32[]', space=smem, size = 0x4, offset = 0x4, fixed_abs, tag = 'smem constant byte address 0x4 - core index']
  #allocation1 [shape = 'u32[144,128]{1,0:T(1,128)}', space=vmem, size = 0x12000, scoped, tag = 'internal scratch']
  %s0 = inlined_call_operand.vmem [shape: f32[512,4], index: 0, kind: input, shape index: {}]
  %s1 = inlined_call_operand.vmem [shape: bf16[4,32], index: 1, kind: input, shape index: {}]
  %s2 = inlined_call_operand.vmem [shape: f32[1,32], index: 2, kind: input, shape index: {}]
  %s3 = inlined_call_operand.vmem [shape: bf16[32,32], index: 3, kind: input, shape index: {}]
  %s4 = inlined_call_operand.vmem [shape: f32[1,32], index: 4, kind: input, shape index: {}]
  %s5 = inlined_call_operand.vmem [shape: bf16[32,32], index: 5, kind: input, shape index: {}]
  %s6 = inlined_call_operand.vmem [shape: f32[1,32], index: 6, kind: input, shape index: {}]
  %s7 = inlined_call_operand.vmem [shape: bf16[32,32], index: 7, kind: input, shape index: {}]
  %s8 = inlined_call_operand.vmem [shape: f32[1,32], index: 8, kind: input, shape index: {}]
  %s9 = inlined_call_operand.vmem [shape: bf16[16,32,16], index: 9, kind: input, shape index: {}]
  %s10 = inlined_call_operand.vmem [shape: f32[1,16], index: 10, kind: input, shape index: {}]
  %s11 = inlined_call_operand.hbm [shape: f32[2,16], index: 11, kind: output, shape index: {}]
  %s12 = sld [smem:[#allocation0]]
  $region54: #{pokemon_identifier_forward.1} parent=0
    _
  %s14 = ssub.s32 1, %s12
  %s15 = scalar_select 0, %s14, %s12
  $region1: #{pokemon_identifier_forward.1} parent=0
    #allocation2 [shape = 'u8[1024]{0}', space=vmem, size = 0x400, scoped, tag = 'output window, operand 0, single buffered']
    #allocation3 [shape = 's32[1]{0}', space=sflag, size = 0x4, scoped, tag = 'scoped memory for pokemon_identifier_forward.1']
    %16 = vsyncpa [#allocation3], 0
    // Predicated region
    $region2: #{pokemon_identifier_forward.1} parent=1 // pred_check
      _
    $region3: #{pokemon_identifier_forward.1} parent=1 // pred_check_branch
      %18 = sbr.rel (0) target = $region5
    $region4: #{pokemon_identifier_forward.1} parent=1 // pred_region
      _
    $region5: #{pokemon_identifier_forward.1} parent=1 // pred_fallthru
      _
    // Predicated region
    $region6: #{pokemon_identifier_forward.1} parent=1 // pred_check
      _
    $region7: #{pokemon_identifier_forward.1} parent=1 // pred_check_branch
      %20 = sbr.rel (0) target = $region9
    $region8: #{pokemon_identifier_forward.1} parent=1 // pred_region
      _
    $region9: #{pokemon_identifier_forward.1} parent=1 // pred_fallthru
      _
    // Predicated region
    $region10: #{pokemon_identifier_forward.1} parent=1 // pred_check
      _
    $region11: #{pokemon_identifier_forward.1} parent=1 // pred_check_branch
      %22 = sbr.rel (0) target = $region13
    $region12: #{pokemon_identifier_forward.1} parent=1 // pred_region
      _
    $region13: #{pokemon_identifier_forward.1} parent=1 // pred_fallthru
      _
    // Predicated region
    $region14: #{pokemon_identifier_forward.1} parent=1 // pred_check
      _
    $region15: #{pokemon_identifier_forward.1} parent=1 // pred_check_branch
      %24 = sbr.rel (0) target = $region17
    $region16: #{pokemon_identifier_forward.1} parent=1 // pred_region
      _
    $region17: #{pokemon_identifier_forward.1} parent=1 // pred_fallthru
      _
    // Predicated region
    $region18: #{pokemon_identifier_forward.1} parent=1 // pred_check
      _
    $region19: #{pokemon_identifier_forward.1} parent=1 // pred_check_branch
      %26 = sbr.rel (0) target = $region21
    $region20: #{pokemon_identifier_forward.1} parent=1 // pred_region
      _
    $region21: #{pokemon_identifier_forward.1} parent=1 // pred_fallthru
      _
    // Predicated region
    $region22: #{pokemon_identifier_forward.1} parent=1 // pred_check
      _
    $region23: #{pokemon_identifier_forward.1} parent=1 // pred_check_branch
      %28 = sbr.rel (0) target = $region25
    $region24: #{pokemon_identifier_forward.1} parent=1 // pred_region
      _
    $region25: #{pokemon_identifier_forward.1} parent=1 // pred_fallthru
      _
    // Predicated region
    $region26: #{pokemon_identifier_forward.1} parent=1 // pred_check
      _
    $region27: #{pokemon_identifier_forward.1} parent=1 // pred_check_branch
      %30 = sbr.rel (0) target = $region29
    $region28: #{pokemon_identifier_forward.1} parent=1 // pred_region
      _
    $region29: #{pokemon_identifier_forward.1} parent=1 // pred_fallthru
      _
    // Predicated region
    $region30: #{pokemon_identifier_forward.1} parent=1 // pred_check
      _
    $region31: #{pokemon_identifier_forward.1} parent=1 // pred_check_branch
      %32 = sbr.rel (0) target = $region33
    $region32: #{pokemon_identifier_forward.1} parent=1 // pred_region
      _
    $region33: #{pokemon_identifier_forward.1} parent=1 // pred_fallthru
      _
    // Predicated region
    $region34: #{pokemon_identifier_forward.1} parent=1 // pred_check
      _
    $region35: #{pokemon_identifier_forward.1} parent=1 // pred_check_branch
      %34 = sbr.rel (0) target = $region37
    $region36: #{pokemon_identifier_forward.1} parent=1 // pred_region
      _
    $region37: #{pokemon_identifier_forward.1} parent=1 // pred_fallthru
      _
    // Predicated region
    $region38: #{pokemon_identifier_forward.1} parent=1 // pred_check
      _
    $region39: #{pokemon_identifier_forward.1} parent=1 // pred_check_branch
      %36 = sbr.rel (0) target = $region41
    $region40: #{pokemon_identifier_forward.1} parent=1 // pred_region
      _
    $region41: #{pokemon_identifier_forward.1} parent=1 // pred_fallthru
      _
    // Predicated region
    $region42: #{pokemon_identifier_forward.1} parent=1 // pred_check
      _
    $region43: #{pokemon_identifier_forward.1} parent=1 // pred_check_branch
      %38 = sbr.rel (0) target = $region45
    $region44: #{pokemon_identifier_forward.1} parent=1 // pred_region
      _
    $region45: #{pokemon_identifier_forward.1} parent=1 // pred_fallthru
      _
    %v40 = vld [vmem:[%s0] sm:$0xff]
    %v41 = vld [vmem:[%s0 + $0x8] sm:$0xff]
    %v42 = vld [vmem:[%s0 + $0x10] sm:$0xff]
    %v43 = vld [vmem:[%s0 + $0x18] sm:$0xff]
    %v44 = vld [vmem:[%s0 + $0x20] sm:$0xff]
    %v45 = vld [vmem:[%s0 + $0x28] sm:$0xff]
    %v46 = vld [vmem:[%s0 + $0x30] sm:$0xff]
    %v47 = vld [vmem:[%s0 + $0x38] sm:$0xff]
    %v48 = vld [vmem:[%s0 + $0x40] sm:$0xff]
    %v49 = vld [vmem:[%s0 + $0x48] sm:$0xff]
    %v50 = vld [vmem:[%s0 + $0x50] sm:$0xff]
    %v51 = vld [vmem:[%s0 + $0x58] sm:$0xff]
    %v52 = vld [vmem:[%s0 + $0x60] sm:$0xff]
    %v53 = vld [vmem:[%s0 + $0x68] sm:$0xff]
    %v54 = vld [vmem:[%s0 + $0x70] sm:$0xff]
    %v55 = vld [vmem:[%s0 + $0x78] sm:$0xff]
    %v56 = vld [vmem:[%s0 + $0x80] sm:$0xff]
    %v57 = vld [vmem:[%s0 + $0x88] sm:$0xff]
    %v58 = vld [vmem:[%s0 + $0x90] sm:$0xff]
    %v59 = vld [vmem:[%s0 + $0x98] sm:$0xff]
    %v60 = vld [vmem:[%s0 + $0xa0] sm:$0xff]
    %v61 = vld [vmem:[%s0 + $0xa8] sm:$0xff]
    %v62 = vld [vmem:[%s0 + $0xb0] sm:$0xff]
    %v63 = vld [vmem:[%s0 + $0xb8] sm:$0xff]
    %v64 = vld [vmem:[%s0 + $0xc0] sm:$0xff]
    %v65 = vld [vmem:[%s0 + $0xc8] sm:$0xff]
    %v66 = vld [vmem:[%s0 + $0xd0] sm:$0xff]
    %v67 = vld [vmem:[%s0 + $0xd8] sm:$0xff]
    %v68 = vld [vmem:[%s0 + $0xe0] sm:$0xff]
    %v69 = vld [vmem:[%s0 + $0xe8] sm:$0xff]
    %v70 = vld [vmem:[%s0 + $0xf0] sm:$0xff]
    %v71 = vld [vmem:[%s0 + $0xf8] sm:$0xff]
    %v72 = vld [vmem:[%s0 + $0x100] sm:$0xff]
    %v73 = vld [vmem:[%s0 + $0x108] sm:$0xff]
    %v74 = vld [vmem:[%s0 + $0x110] sm:$0xff]
    %v75 = vld [vmem:[%s0 + $0x118] sm:$0xff]
    %v76 = vld [vmem:[%s0 + $0x120] sm:$0xff]
    %v77 = vld [vmem:[%s0 + $0x128] sm:$0xff]
    %v78 = vld [vmem:[%s0 + $0x130] sm:$0xff]
    %v79 = vld [vmem:[%s0 + $0x138] sm:$0xff]
    %v80 = vld [vmem:[%s0 + $0x140] sm:$0xff]
    %v81 = vld [vmem:[%s0 + $0x148] sm:$0xff]
    %v82 = vld [vmem:[%s0 + $0x150] sm:$0xff]
    %v83 = vld [vmem:[%s0 + $0x158] sm:$0xff]
    %v84 = vld [vmem:[%s0 + $0x160] sm:$0xff]
    %v85 = vld [vmem:[%s0 + $0x168] sm:$0xff]
    %v86 = vld [vmem:[%s0 + $0x170] sm:$0xff]
    %v87 = vld [vmem:[%s0 + $0x178] sm:$0xff]
    %v88 = vld [vmem:[%s0 + $0x180] sm:$0xff]
    %v89 = vld [vmem:[%s0 + $0x188] sm:$0xff]
    %v90 = vld [vmem:[%s0 + $0x190] sm:$0xff]
    %v91 = vld [vmem:[%s0 + $0x198] sm:$0xff]
    %v92 = vld [vmem:[%s0 + $0x1a0] sm:$0xff]
    %v93 = vld [vmem:[%s0 + $0x1a8] sm:$0xff]
    %v94 = vld [vmem:[%s0 + $0x1b0] sm:$0xff]
    %v95 = vld [vmem:[%s0 + $0x1b8] sm:$0xff]
    %v96 = vld [vmem:[%s0 + $0x1c0] sm:$0xff]
    %v97 = vld [vmem:[%s0 + $0x1c8] sm:$0xff]
    %v98 = vld [vmem:[%s0 + $0x1d0] sm:$0xff]
    %v99 = vld [vmem:[%s0 + $0x1d8] sm:$0xff]
    %v100 = vld [vmem:[%s0 + $0x1e0] sm:$0xff]
    %v101 = vld [vmem:[%s0 + $0x1e8] sm:$0xff]
    %v102 = vld [vmem:[%s0 + $0x1f0] sm:$0xff]
    %v103 = vld [vmem:[%s0 + $0x1f8] sm:$0xff]
    %v104 = vpack.c.bf16 %v41, %v40
    %v105 = vpack.c.bf16 %v43, %v42
    %v106 = vpack.c.bf16 %v45, %v44
    %v107 = vpack.c.bf16 %v47, %v46
    %v108 = vpack.c.bf16 %v49, %v48
    %v109 = vpack.c.bf16 %v51, %v50
    %v110 = vpack.c.bf16 %v53, %v52
    %v111 = vpack.c.bf16 %v55, %v54
    %v112 = vpack.c.bf16 %v57, %v56
    %v113 = vpack.c.bf16 %v59, %v58
    %v114 = vpack.c.bf16 %v61, %v60
    %v115 = vpack.c.bf16 %v63, %v62
    %v116 = vpack.c.bf16 %v65, %v64
    %v117 = vpack.c.bf16 %v67, %v66
    %v118 = vpack.c.bf16 %v69, %v68
    %v119 = vpack.c.bf16 %v71, %v70
    %v120 = vpack.c.bf16 %v73, %v72
    %v121 = vpack.c.bf16 %v75, %v74
    %v122 = vpack.c.bf16 %v77, %v76
    %v123 = vpack.c.bf16 %v79, %v78
    %v124 = vpack.c.bf16 %v81, %v80
    %v125 = vpack.c.bf16 %v83, %v82
    %v126 = vpack.c.bf16 %v85, %v84
    %v127 = vpack.c.bf16 %v87, %v86
    %v128 = vpack.c.bf16 %v89, %v88
    %v129 = vpack.c.bf16 %v91, %v90
    %v130 = vpack.c.bf16 %v93, %v92
    %v131 = vpack.c.bf16 %v95, %v94
    %v132 = vpack.c.bf16 %v97, %v96
    %v133 = vpack.c.bf16 %v99, %v98
    %v134 = vpack.c.bf16 %v101, %v100
    %v135 = vpack.c.bf16 %v103, %v102
    %v136 = vld [vmem:[%s1] sm:$0x3]
    %v137 = vld [vmem:[%s2] sm:$0x1]
    %v139 = vlaneseq
    %v140 = vshrl.u32 %v139, 7
    %v141 = vsub.s32 0, %v140
    %v142 = vrot.slane %v137, %v141
    %vm144 = vcmask 31744
    %v146 = vsel %vm144, %v104, 0
    %v149 = vsel %vm144, %v105, 0
    %v152 = vsel %vm144, %v106, 0
    %v155 = vsel %vm144, %v107, 0
    %v158 = vsel %vm144, %v108, 0
    %v161 = vsel %vm144, %v109, 0
    %v164 = vsel %vm144, %v110, 0
    %v167 = vsel %vm144, %v111, 0
    %v170 = vsel %vm144, %v112, 0
    %v173 = vsel %vm144, %v113, 0
    %v176 = vsel %vm144, %v114, 0
    %v179 = vsel %vm144, %v115, 0
    %v182 = vsel %vm144, %v116, 0
    %v185 = vsel %vm144, %v117, 0
    %v188 = vsel %vm144, %v118, 0
    %v191 = vsel %vm144, %v119, 0
    %v194 = vsel %vm144, %v120, 0
    %v197 = vsel %vm144, %v121, 0
    %v200 = vsel %vm144, %v122, 0
    %v203 = vsel %vm144, %v123, 0
    %v206 = vsel %vm144, %v124, 0
    %v209 = vsel %vm144, %v125, 0
    %v212 = vsel %vm144, %v126, 0
    %v215 = vsel %vm144, %v127, 0
    %v218 = vsel %vm144, %v128, 0
    %v221 = vsel %vm144, %v129, 0
    %v224 = vsel %vm144, %v130, 0
    %v227 = vsel %vm144, %v131, 0
    %v230 = vsel %vm144, %v132, 0
    %v233 = vsel %vm144, %v133, 0
    %v236 = vsel %vm144, %v134, 0
    %v239 = vsel %vm144, %v135, 0
    %vm241 = vcmask 1041408
    %v243 = vsel %vm241, %v136, 0
    %245 = vmatprep.subr.bf16.mxu0 0
    %246 = vmatpush1.bf16.msra.mxu0 %v243
    %247 = vmatprep.subr.bf16.mxu0 0
    %248 = vmatpush1.bf16.msra.mxu0 0
    %249 = vmatprep.subr.bf16.mxu0 0
    %250 = vmatpush1.bf16.msra.mxu0 0
    %251 = vmatprep.subr.bf16.mxu0 0
    %252 = vmatpush1.bf16.msra.mxu0 0
    %253 = vmatprep.subr.bf16.mxu0 0
    %254 = vmatpush1.bf16.msra.mxu0 0
    %255 = vmatprep.subr.bf16.mxu0 0
    %256 = vmatpush1.bf16.msra.mxu0 0
    %257 = vmatprep.subr.bf16.mxu0 0
    %258 = vmatpush1.bf16.msra.mxu0 0
    %259 = vmatprep.subr.bf16.mxu0 0
    %260 = vmatpush1.bf16.msra.mxu0 0
    %261 = vmatprep.subr.bf16.mxu0 0
    %262 = vmatpush1.bf16.msra.mxu0 0
    %263 = vmatprep.subr.bf16.mxu0 0
    %264 = vmatpush1.bf16.msra.mxu0 0
    %265 = vmatprep.subr.bf16.mxu0 0
    %266 = vmatpush1.bf16.msra.mxu0 0
    %267 = vmatprep.subr.bf16.mxu0 0
    %268 = vmatpush1.bf16.msra.mxu0 0
    %269 = vmatprep.subr.bf16.mxu0 0
    %270 = vmatpush1.bf16.msra.mxu0 0
    %271 = vmatprep.subr.bf16.mxu0 0
    %272 = vmatpush1.bf16.msra.mxu0 0
    %273 = vmatprep.subr.bf16.mxu0 0
    %274 = vmatpush1.bf16.msra.mxu0 0
    %275 = vmatprep.subr.bf16.mxu0 0
    %276 = vmatpush1.bf16.msra.mxu0 0
    %277 = vmatprep.mubr.bf16.mxu0 0
    %278 = vmatmul.mubr.bf16.gmra.mrb[0].mxu0 %v146
    %v279 = vpop.f32.mrb[0].mxu0
    %v280 = vadd.f32 %v142, %v279
    %v281 = vpop.f32.mrb[0].mxu0
    %v282 = vpop.f32.mrb[0].mxu0
    %v283 = vadd.f32 %v142, %v282
    %v284 = vpop.f32.mrb[0].mxu0
    %285 = vmatprep.mubr.bf16.mxu0 0
    %286 = vmatmul.mubr.bf16.gmra.mrb[0].mxu0 %v149
    %v287 = vpop.f32.mrb[0].mxu0
    %v288 = vadd.f32 %v142, %v287
    %v289 = vpop.f32.mrb[0].mxu0
    %v290 = vpop.f32.mrb[0].mxu0
    %v291 = vadd.f32 %v142, %v290
    %v292 = vpop.f32.mrb[0].mxu0
    %293 = vmatprep.mubr.bf16.mxu0 0
    %294 = vmatmul.mubr.bf16.gmra.mrb[0].mxu0 %v152
    %v295 = vpop.f32.mrb[0].mxu0
    %v296 = vadd.f32 %v142, %v295
    %v297 = vpop.f32.mrb[0].mxu0
    %v298 = vpop.f32.mrb[0].mxu0
    %v299 = vadd.f32 %v142, %v298
    %v300 = vpop.f32.mrb[0].mxu0
    %301 = vmatprep.mubr.bf16.mxu0 0
    %302 = vmatmul.mubr.bf16.gmra.mrb[0].mxu0 %v155
    %v303 = vpop.f32.mrb[0].mxu0
    %v304 = vadd.f32 %v142, %v303
    %v305 = vpop.f32.mrb[0].mxu0
    %v306 = vpop.f32.mrb[0].mxu0
    %v307 = vadd.f32 %v142, %v306
    %v308 = vpop.f32.mrb[0].mxu0
    %309 = vmatprep.mubr.bf16.mxu0 0
    %310 = vmatmul.mubr.bf16.gmra.mrb[0].mxu0 %v158
    %v311 = vpop.f32.mrb[0].mxu0
    %v312 = vadd.f32 %v142, %v311
    %v313 = vpop.f32.mrb[0].mxu0
    %v314 = vpop.f32.mrb[0].mxu0
    %v315 = vadd.f32 %v142, %v314
    %v316 = vpop.f32.mrb[0].mxu0
    %317 = vmatprep.mubr.bf16.mxu0 0
    %318 = vmatmul.mubr.bf16.gmra.mrb[0].mxu0 %v161
    %v319 = vpop.f32.mrb[0].mxu0
    %v320 = vadd.f32 %v142, %v319
    %v321 = vpop.f32.mrb[0].mxu0
    %v322 = vpop.f32.mrb[0].mxu0
    %v323 = vadd.f32 %v142, %v322
    %v324 = vpop.f32.mrb[0].mxu0
    %325 = vmatprep.mubr.bf16.mxu0 0
    %326 = vmatmul.mubr.bf16.gmra.mrb[0].mxu0 %v164
    %v327 = vpop.f32.mrb[0].mxu0
    %v328 = vadd.f32 %v142, %v327
    %v329 = vpop.f32.mrb[0].mxu0
    %v330 = vpop.f32.mrb[0].mxu0
    %v331 = vadd.f32 %v142, %v330
    %v332 = vpop.f32.mrb[0].mxu0
    %333 = vmatprep.mubr.bf16.mxu0 0
    %334 = vmatmul.mubr.bf16.gmra.mrb[0].mxu0 %v167
    %v335 = vpop.f32.mrb[0].mxu0
    %v336 = vadd.f32 %v142, %v335
    %v337 = vpop.f32.mrb[0].mxu0
    %v338 = vpop.f32.mrb[0].mxu0
    %v339 = vadd.f32 %v142, %v338
    %v340 = vpop.f32.mrb[0].mxu0
    %341 = vmatprep.mubr.bf16.mxu0 0
    %342 = vmatmul.mubr.bf16.gmra.mrb[0].mxu0 %v170
    %v343 = vpop.f32.mrb[0].mxu0
    %v344 = vadd.f32 %v142, %v343
    %v345 = vpop.f32.mrb[0].mxu0
    %v346 = vpop.f32.mrb[0].mxu0
    %v347 = vadd.f32 %v142, %v346
    %v348 = vpop.f32.mrb[0].mxu0
    %349 = vmatprep.mubr.bf16.mxu0 0
    %350 = vmatmul.mubr.bf16.gmra.mrb[0].mxu0 %v173
    %v351 = vpop.f32.mrb[0].mxu0
    %v352 = vadd.f32 %v142, %v351
    %v353 = vpop.f32.mrb[0].mxu0
    %v354 = vpop.f32.mrb[0].mxu0
    %v355 = vadd.f32 %v142, %v354
    %v356 = vpop.f32.mrb[0].mxu0
    %357 = vmatprep.mubr.bf16.mxu0 0
    %358 = vmatmul.mubr.bf16.gmra.mrb[0].mxu0 %v176
    %v359 = vpop.f32.mrb[0].mxu0
    %v360 = vadd.f32 %v142, %v359
    %v361 = vpop.f32.mrb[0].mxu0
    %v362 = vpop.f32.mrb[0].mxu0
    %v363 = vadd.f32 %v142, %v362
    %v364 = vpop.f32.mrb[0].mxu0
    %365 = vmatprep.mubr.bf16.mxu0 0
    %366 = vmatmul.mubr.bf16.gmra.mrb[0].mxu0 %v179
    %v367 = vpop.f32.mrb[0].mxu0
    %v368 = vadd.f32 %v142, %v367
    %v369 = vpop.f32.mrb[0].mxu0
    %v370 = vpop.f32.mrb[0].mxu0
    %v371 = vadd.f32 %v142, %v370
    %v372 = vpop.f32.mrb[0].mxu0
    %373 = vmatprep.mubr.bf16.mxu0 0
    %374 = vmatmul.mubr.bf16.gmra.mrb[0].mxu0 %v182
    %v375 = vpop.f32.mrb[0].mxu0
    %v376 = vadd.f32 %v142, %v375
    %v377 = vpop.f32.mrb[0].mxu0
    %v378 = vpop.f32.mrb[0].mxu0
    %v379 = vadd.f32 %v142, %v378
    %v380 = vpop.f32.mrb[0].mxu0
    %381 = vmatprep.mubr.bf16.mxu0 0
    %382 = vmatmul.mubr.bf16.gmra.mrb[0].mxu0 %v185
    %v383 = vpop.f32.mrb[0].mxu0
    %v384 = vadd.f32 %v142, %v383
    %v385 = vpop.f32.mrb[0].mxu0
    %v386 = vpop.f32.mrb[0].mxu0
    %v387 = vadd.f32 %v142, %v386
    %v388 = vpop.f32.mrb[0].mxu0
    %389 = vmatprep.mubr.bf16.mxu0 0
    %390 = vmatmul.mubr.bf16.gmra.mrb[0].mxu0 %v188
    %v391 = vpop.f32.mrb[0].mxu0
    %v392 = vadd.f32 %v142, %v391
    %v393 = vpop.f32.mrb[0].mxu0
    %v394 = vpop.f32.mrb[0].mxu0
    %v395 = vadd.f32 %v142, %v394
    %v396 = vpop.f32.mrb[0].mxu0
    %397 = vmatprep.mubr.bf16.mxu0 0
    %398 = vmatmul.mubr.bf16.gmra.mrb[0].mxu0 %v191
    %v399 = vpop.f32.mrb[0].mxu0
    %v400 = vadd.f32 %v142, %v399
    %v401 = vpop.f32.mrb[0].mxu0
    %v402 = vpop.f32.mrb[0].mxu0
    %v403 = vadd.f32 %v142, %v402
    %v404 = vpop.f32.mrb[0].mxu0
    %405 = vmatprep.mubr.bf16.mxu0 0
    %406 = vmatmul.mubr.bf16.gmra.mrb[0].mxu0 %v194
    %v407 = vpop.f32.mrb[0].mxu0
    %v408 = vadd.f32 %v142, %v407
    %v409 = vpop.f32.mrb[0].mxu0
    %v410 = vpop.f32.mrb[0].mxu0
    %v411 = vadd.f32 %v142, %v410
    %v412 = vpop.f32.mrb[0].mxu0
    %413 = vmatprep.mubr.bf16.mxu0 0
    %414 = vmatmul.mubr.bf16.gmra.mrb[0].mxu0 %v197
    %v415 = vpop.f32.mrb[0].mxu0
    %v416 = vadd.f32 %v142, %v415
    %v417 = vpop.f32.mrb[0].mxu0
    %v418 = vpop.f32.mrb[0].mxu0
    %v419 = vadd.f32 %v142, %v418
    %v420 = vpop.f32.mrb[0].mxu0
    %421 = vmatprep.mubr.bf16.mxu0 0
    %422 = vmatmul.mubr.bf16.gmra.mrb[0].mxu0 %v200
    %v423 = vpop.f32.mrb[0].mxu0
    %v424 = vadd.f32 %v142, %v423
    %v425 = vpop.f32.mrb[0].mxu0
    %v426 = vpop.f32.mrb[0].mxu0
    %v427 = vadd.f32 %v142, %v426
    %v428 = vpop.f32.mrb[0].mxu0
    %429 = vmatprep.mubr.bf16.mxu0 0
    %430 = vmatmul.mubr.bf16.gmra.mrb[0].mxu0 %v203
    %v431 = vpop.f32.mrb[0].mxu0
    %v432 = vadd.f32 %v142, %v431
    %v433 = vpop.f32.mrb[0].mxu0
    %v434 = vpop.f32.mrb[0].mxu0
    %v435 = vadd.f32 %v142, %v434
    %v436 = vpop.f32.mrb[0].mxu0
    %437 = vmatprep.mubr.bf16.mxu0 0
    %438 = vmatmul.mubr.bf16.gmra.mrb[0].mxu0 %v206
    %v439 = vpop.f32.mrb[0].mxu0
    %v440 = vadd.f32 %v142, %v439
    %v441 = vpop.f32.mrb[0].mxu0
    %v442 = vpop.f32.mrb[0].mxu0
    %v443 = vadd.f32 %v142, %v442
    %v444 = vpop.f32.mrb[0].mxu0
    %445 = vmatprep.mubr.bf16.mxu0 0
    %446 = vmatmul.mubr.bf16.gmra.mrb[0].mxu0 %v209
    %v447 = vpop.f32.mrb[0].mxu0
    %v448 = vadd.f32 %v142, %v447
    %v449 = vpop.f32.mrb[0].mxu0
    %v450 = vpop.f32.mrb[0].mxu0
    %v451 = vadd.f32 %v142, %v450
    %v452 = vpop.f32.mrb[0].mxu0
    %453 = vmatprep.mubr.bf16.mxu0 0
    %454 = vmatmul.mubr.bf16.gmra.mrb[0].mxu0 %v212
    %v455 = vpop.f32.mrb[0].mxu0
    %v456 = vadd.f32 %v142, %v455
    %v457 = vpop.f32.mrb[0].mxu0
    %v458 = vpop.f32.mrb[0].mxu0
    %v459 = vadd.f32 %v142, %v458
    %v460 = vpop.f32.mrb[0].mxu0
    %461 = vmatprep.mubr.bf16.mxu0 0
    %462 = vmatmul.mubr.bf16.gmra.mrb[0].mxu0 %v215
    %v463 = vpop.f32.mrb[0].mxu0
    %v464 = vadd.f32 %v142, %v463
    %v465 = vpop.f32.mrb[0].mxu0
    %v466 = vpop.f32.mrb[0].mxu0
    %v467 = vadd.f32 %v142, %v466
    %v468 = vpop.f32.mrb[0].mxu0
    %469 = vmatprep.mubr.bf16.mxu0 0
    %470 = vmatmul.mubr.bf16.gmra.mrb[0].mxu0 %v218
    %v471 = vpop.f32.mrb[0].mxu0
    %v472 = vadd.f32 %v142, %v471
    %v473 = vpop.f32.mrb[0].mxu0
    %v474 = vpop.f32.mrb[0].mxu0
    %v475 = vadd.f32 %v142, %v474
    %v476 = vpop.f32.mrb[0].mxu0
    %477 = vmatprep.mubr.bf16.mxu0 0
    %478 = vmatmul.mubr.bf16.gmra.mrb[0].mxu0 %v221
    %v479 = vpop.f32.mrb[0].mxu0
    %v480 = vadd.f32 %v142, %v479
    %v481 = vpop.f32.mrb[0].mxu0
    %v482 = vpop.f32.mrb[0].mxu0
    %v483 = vadd.f32 %v142, %v482
    %v484 = vpop.f32.mrb[0].mxu0
    %485 = vmatprep.mubr.bf16.mxu0 0
    %486 = vmatmul.mubr.bf16.gmra.mrb[0].mxu0 %v224
    %v487 = vpop.f32.mrb[0].mxu0
    %v488 = vadd.f32 %v142, %v487
    %v489 = vpop.f32.mrb[0].mxu0
    %v490 = vpop.f32.mrb[0].mxu0
    %v491 = vadd.f32 %v142, %v490
    %v492 = vpop.f32.mrb[0].mxu0
    %493 = vmatprep.mubr.bf16.mxu0 0
    %494 = vmatmul.mubr.bf16.gmra.mrb[0].mxu0 %v227
    %v495 = vpop.f32.mrb[0].mxu0
    %v496 = vadd.f32 %v142, %v495
    %v497 = vpop.f32.mrb[0].mxu0
    %v498 = vpop.f32.mrb[0].mxu0
    %v499 = vadd.f32 %v142, %v498
    %v500 = vpop.f32.mrb[0].mxu0
    %501 = vmatprep.mubr.bf16.mxu0 0
    %502 = vmatmul.mubr.bf16.gmra.mrb[0].mxu0 %v230
    %v503 = vpop.f32.mrb[0].mxu0
    %v504 = vadd.f32 %v142, %v503
    %v505 = vpop.f32.mrb[0].mxu0
    %v506 = vpop.f32.mrb[0].mxu0
    %v507 = vadd.f32 %v142, %v506
    %v508 = vpop.f32.mrb[0].mxu0
    %509 = vmatprep.mubr.bf16.mxu0 0
    %510 = vmatmul.mubr.bf16.gmra.mrb[0].mxu0 %v233
    %v511 = vpop.f32.mrb[0].mxu0
    %v512 = vadd.f32 %v142, %v511
    %v513 = vpop.f32.mrb[0].mxu0
    %v514 = vpop.f32.mrb[0].mxu0
    %v515 = vadd.f32 %v142, %v514
    %v516 = vpop.f32.mrb[0].mxu0
    %517 = vmatprep.mubr.bf16.mxu0 0
    %518 = vmatmul.mubr.bf16.gmra.mrb[0].mxu0 %v236
    %v519 = vpop.f32.mrb[0].mxu0
    %v520 = vadd.f32 %v142, %v519
    %v521 = vpop.f32.mrb[0].mxu0
    %v522 = vpop.f32.mrb[0].mxu0
    %v523 = vadd.f32 %v142, %v522
    %v524 = vpop.f32.mrb[0].mxu0
    %525 = vmatprep.mubr.bf16.mxu0 0
    %526 = vmatmul.mubr.bf16.gmra.mrb[0].mxu0 %v239
    %v527 = vpop.f32.mrb[0].mxu0
    %v528 = vadd.f32 %v142, %v527
    %v529 = vpop.f32.mrb[0].mxu0
    %v530 = vpop.f32.mrb[0].mxu0
    %v531 = vadd.f32 %v142, %v530
    %v532 = vpop.f32.mrb[0].mxu0
    %533 = vdwg.mxu0
    %v534 = vmax.f32 %v280, 0.0
    %v535 = vmax.f32 %v283, 0.0
    %v536 = vmax.f32 %v288, 0.0
    %v537 = vmax.f32 %v291, 0.0
    %v538 = vmax.f32 %v296, 0.0
    %v539 = vmax.f32 %v299, 0.0
    %v540 = vmax.f32 %v304, 0.0
    %v541 = vmax.f32 %v307, 0.0
    %v542 = vmax.f32 %v312, 0.0
    %v543 = vmax.f32 %v315, 0.0
    %v544 = vmax.f32 %v320, 0.0
    %v545 = vmax.f32 %v323, 0.0
    %v546 = vmax.f32 %v328, 0.0
    %v547 = vmax.f32 %v331, 0.0
    %v548 = vmax.f32 %v336, 0.0
    %v549 = vmax.f32 %v339, 0.0
    %v550 = vmax.f32 %v344, 0.0
    %v551 = vmax.f32 %v347, 0.0
    %v552 = vmax.f32 %v352, 0.0
    %v553 = vmax.f32 %v355, 0.0
    %v554 = vmax.f32 %v360, 0.0
    %v555 = vmax.f32 %v363, 0.0
    %v556 = vmax.f32 %v368, 0.0
    %v557 = vmax.f32 %v371, 0.0
    %v558 = vmax.f32 %v376, 0.0
    %v559 = vmax.f32 %v379, 0.0
    %v560 = vmax.f32 %v384, 0.0
    %v561 = vmax.f32 %v387, 0.0
    %v562 = vmax.f32 %v392, 0.0
    %v563 = vmax.f32 %v395, 0.0
    %v564 = vmax.f32 %v400, 0.0
    %v565 = vmax.f32 %v403, 0.0
    %v566 = vmax.f32 %v408, 0.0
    %v567 = vmax.f32 %v411, 0.0
    %v568 = vmax.f32 %v416, 0.0
    %v569 = vmax.f32 %v419, 0.0
    %v570 = vmax.f32 %v424, 0.0
    %v571 = vmax.f32 %v427, 0.0
    %v572 = vmax.f32 %v432, 0.0
    %v573 = vmax.f32 %v435, 0.0
    %v574 = vmax.f32 %v440, 0.0
    %v575 = vmax.f32 %v443, 0.0
    %v576 = vmax.f32 %v448, 0.0
    %v577 = vmax.f32 %v451, 0.0
    %v578 = vmax.f32 %v456, 0.0
    %v579 = vmax.f32 %v459, 0.0
    %v580 = vmax.f32 %v464, 0.0
    %v581 = vmax.f32 %v467, 0.0
    %v582 = vmax.f32 %v472, 0.0
    %v583 = vmax.f32 %v475, 0.0
    %v584 = vmax.f32 %v480, 0.0
    %v585 = vmax.f32 %v483, 0.0
    %v586 = vmax.f32 %v488, 0.0
    %v587 = vmax.f32 %v491, 0.0
    %v588 = vmax.f32 %v496, 0.0
    %v589 = vmax.f32 %v499, 0.0
    %v590 = vmax.f32 %v504, 0.0
    %v591 = vmax.f32 %v507, 0.0
    %v592 = vmax.f32 %v512, 0.0
    %v593 = vmax.f32 %v515, 0.0
    %v594 = vmax.f32 %v520, 0.0
    %v595 = vmax.f32 %v523, 0.0
    %v596 = vmax.f32 %v528, 0.0
    %v597 = vmax.f32 %v531, 0.0
    %v598 = vpack.c.bf16 %v535, %v534
    %v599 = vpack.c.bf16 %v537, %v536
    %v600 = vpack.c.bf16 %v539, %v538
    %v601 = vpack.c.bf16 %v541, %v540
    %v602 = vpack.c.bf16 %v543, %v542
    %v603 = vpack.c.bf16 %v545, %v544
    %v604 = vpack.c.bf16 %v547, %v546
    %v605 = vpack.c.bf16 %v549, %v548
    %v606 = vpack.c.bf16 %v551, %v550
    %v607 = vpack.c.bf16 %v553, %v552
    %v608 = vpack.c.bf16 %v555, %v554
    %v609 = vpack.c.bf16 %v557, %v556
    %v610 = vpack.c.bf16 %v559, %v558
    %v611 = vpack.c.bf16 %v561, %v560
    %v612 = vpack.c.bf16 %v563, %v562
    %v613 = vpack.c.bf16 %v565, %v564
    %v614 = vpack.c.bf16 %v567, %v566
    %v615 = vpack.c.bf16 %v569, %v568
    %v616 = vpack.c.bf16 %v571, %v570
    %v617 = vpack.c.bf16 %v573, %v572
    %v618 = vpack.c.bf16 %v575, %v574
    %v619 = vpack.c.bf16 %v577, %v576
    %v620 = vpack.c.bf16 %v579, %v578
    %v621 = vpack.c.bf16 %v581, %v580
    %v622 = vpack.c.bf16 %v583, %v582
    %v623 = vpack.c.bf16 %v585, %v584
    %v624 = vpack.c.bf16 %v587, %v586
    %v625 = vpack.c.bf16 %v589, %v588
    %v626 = vpack.c.bf16 %v591, %v590
    %v627 = vpack.c.bf16 %v593, %v592
    %v628 = vpack.c.bf16 %v595, %v594
    %v629 = vpack.c.bf16 %v597, %v596
    %v630 = vld [vmem:[%s3] sm:$0xf]
    %v631 = vld [vmem:[%s3 + $0x4] sm:$0xf]
    %v632 = vld [vmem:[%s3 + $0x8] sm:$0xf]
    %v633 = vld [vmem:[%s3 + $0xc] sm:$0xf]
    %v634 = vld [vmem:[%s4] sm:$0x1]
    %v636 = vlaneseq
    %v637 = vshrl.u32 %v636, 7
    %v638 = vsub.s32 0, %v637
    %v639 = vrot.slane %v634, %v638
    %v645 = vunpack.c.l.b16 %v630
    %v646 = vunpack.c.l.b16 %v631
    %v647 = vunpack.c.l.b16 %v632
    %v648 = vunpack.c.l.b16 %v633
    %v649 = vpack.c.b16 %v646, %v645
    %v650 = vpack.c.b16 %v648, %v647
    %vm653 = vcmask 261120
    %v655 = vsel %vm653, %v598, 0
    %v658 = vsel %vm653, %v599, 0
    %v661 = vsel %vm653, %v600, 0
    %v664 = vsel %vm653, %v601, 0
    %v667 = vsel %vm653, %v602, 0
    %v670 = vsel %vm653, %v603, 0
    %v673 = vsel %vm653, %v604, 0
    %v676 = vsel %vm653, %v605, 0
    %v679 = vsel %vm653, %v606, 0
    %v682 = vsel %vm653, %v607, 0
    %v685 = vsel %vm653, %v608, 0
    %v688 = vsel %vm653, %v609, 0
    %v691 = vsel %vm653, %v610, 0
    %v694 = vsel %vm653, %v611, 0
    %v697 = vsel %vm653, %v612, 0
    %v700 = vsel %vm653, %v613, 0
    %v703 = vsel %vm653, %v614, 0
    %v706 = vsel %vm653, %v615, 0
    %v709 = vsel %vm653, %v616, 0
    %v712 = vsel %vm653, %v617, 0
    %v715 = vsel %vm653, %v618, 0
    %v718 = vsel %vm653, %v619, 0
    %v721 = vsel %vm653, %v620, 0
    %v724 = vsel %vm653, %v621, 0
    %v727 = vsel %vm653, %v622, 0
    %v730 = vsel %vm653, %v623, 0
    %v733 = vsel %vm653, %v624, 0
    %v736 = vsel %vm653, %v625, 0
    %v739 = vsel %vm653, %v626, 0
    %v742 = vsel %vm653, %v627, 0
    %v745 = vsel %vm653, %v628, 0
    %v748 = vsel %vm653, %v629, 0
    %750 = vmatprep.subr.bf16.mxu0 0
    %751 = vmatpush1.bf16.msra.mxu0 %v649
    %752 = vmatprep.subr.bf16.mxu0 0
    %753 = vmatpush1.bf16.msra.mxu0 %v650
    %754 = vmatprep.subr.bf16.mxu0 0
    %755 = vmatpush1.bf16.msra.mxu0 0
    %756 = vmatprep.subr.bf16.mxu0 0
    %757 = vmatpush1.bf16.msra.mxu0 0
    %758 = vmatprep.subr.bf16.mxu0 0
    %759 = vmatpush1.bf16.msra.mxu0 0
    %760 = vmatprep.subr.bf16.mxu0 0
    %761 = vmatpush1.bf16.msra.mxu0 0
    %762 = vmatprep.subr.bf16.mxu0 0
    %763 = vmatpush1.bf16.msra.mxu0 0
    %764 = vmatprep.subr.bf16.mxu0 0
    %765 = vmatpush1.bf16.msra.mxu0 0
    %766 = vmatprep.subr.bf16.mxu0 0
    %767 = vmatpush1.bf16.msra.mxu0 0
    %768 = vmatprep.subr.bf16.mxu0 0
    %769 = vmatpush1.bf16.msra.mxu0 0
    %770 = vmatprep.subr.bf16.mxu0 0
    %771 = vmatpush1.bf16.msra.mxu0 0
    %772 = vmatprep.subr.bf16.mxu0 0
    %773 = vmatpush1.bf16.msra.mxu0 0
    %774 = vmatprep.subr.bf16.mxu0 0
    %775 = vmatpush1.bf16.msra.mxu0 0
    %776 = vmatprep.subr.bf16.mxu0 0
    %777 = vmatpush1.bf16.msra.mxu0 0
    %778 = vmatprep.subr.bf16.mxu0 0
    %779 = vmatpush1.bf16.msra.mxu0 0
    %780 = vmatprep.subr.bf16.mxu0 0
    %781 = vmatpush1.bf16.msra.mxu0 0
    %782 = vmatprep.mubr.bf16.mxu0 0
    %783 = vmatmul.mubr.bf16.gmra.mrb[0].mxu0 %v655
    %v784 = vpop.f32.mrb[0].mxu0
    %v785 = vadd.f32 %v639, %v784
    %v786 = vpop.f32.mrb[0].mxu0
    %v787 = vpop.f32.mrb[0].mxu0
    %v788 = vadd.f32 %v639, %v787
    %v789 = vpop.f32.mrb[0].mxu0
    %790 = vmatprep.mubr.bf16.mxu0 0
    %791 = vmatmul.mubr.bf16.gmra.mrb[0].mxu0 %v658
    %v792 = vpop.f32.mrb[0].mxu0
    %v793 = vadd.f32 %v639, %v792
    %v794 = vpop.f32.mrb[0].mxu0
    %v795 = vpop.f32.mrb[0].mxu0
    %v796 = vadd.f32 %v639, %v795
    %v797 = vpop.f32.mrb[0].mxu0
    %798 = vmatprep.mubr.bf16.mxu0 0
    %799 = vmatmul.mubr.bf16.gmra.mrb[0].mxu0 %v661
    %v800 = vpop.f32.mrb[0].mxu0
    %v801 = vadd.f32 %v639, %v800
    %v802 = vpop.f32.mrb[0].mxu0
    %v803 = vpop.f32.mrb[0].mxu0
    %v804 = vadd.f32 %v639, %v803
    %v805 = vpop.f32.mrb[0].mxu0
    %806 = vmatprep.mubr.bf16.mxu0 0
    %807 = vmatmul.mubr.bf16.gmra.mrb[0].mxu0 %v664
    %v808 = vpop.f32.mrb[0].mxu0
    %v809 = vadd.f32 %v639, %v808
    %v810 = vpop.f32.mrb[0].mxu0
    %v811 = vpop.f32.mrb[0].mxu0
    %v812 = vadd.f32 %v639, %v811
    %v813 = vpop.f32.mrb[0].mxu0
    %814 = vmatprep.mubr.bf16.mxu0 0
    %815 = vmatmul.mubr.bf16.gmra.mrb[0].mxu0 %v667
    %v816 = vpop.f32.mrb[0].mxu0
    %v817 = vadd.f32 %v639, %v816
    %v818 = vpop.f32.mrb[0].mxu0
    %v819 = vpop.f32.mrb[0].mxu0
    %v820 = vadd.f32 %v639, %v819
    %v821 = vpop.f32.mrb[0].mxu0
    %822 = vmatprep.mubr.bf16.mxu0 0
    %823 = vmatmul.mubr.bf16.gmra.mrb[0].mxu0 %v670
    %v824 = vpop.f32.mrb[0].mxu0
    %v825 = vadd.f32 %v639, %v824
    %v826 = vpop.f32.mrb[0].mxu0
    %v827 = vpop.f32.mrb[0].mxu0
    %v828 = vadd.f32 %v639, %v827
    %v829 = vpop.f32.mrb[0].mxu0
    %830 = vmatprep.mubr.bf16.mxu0 0
    %831 = vmatmul.mubr.bf16.gmra.mrb[0].mxu0 %v673
    %v832 = vpop.f32.mrb[0].mxu0
    %v833 = vadd.f32 %v639, %v832
    %v834 = vpop.f32.mrb[0].mxu0
    %v835 = vpop.f32.mrb[0].mxu0
    %v836 = vadd.f32 %v639, %v835
    %v837 = vpop.f32.mrb[0].mxu0
    %838 = vmatprep.mubr.bf16.mxu0 0
    %839 = vmatmul.mubr.bf16.gmra.mrb[0].mxu0 %v676
    %v840 = vpop.f32.mrb[0].mxu0
    %v841 = vadd.f32 %v639, %v840
    %v842 = vpop.f32.mrb[0].mxu0
    %v843 = vpop.f32.mrb[0].mxu0
    %v844 = vadd.f32 %v639, %v843
    %v845 = vpop.f32.mrb[0].mxu0
    %846 = vmatprep.mubr.bf16.mxu0 0
    %847 = vmatmul.mubr.bf16.gmra.mrb[0].mxu0 %v679
    %v848 = vpop.f32.mrb[0].mxu0
    %v849 = vadd.f32 %v639, %v848
    %v850 = vpop.f32.mrb[0].mxu0
    %v851 = vpop.f32.mrb[0].mxu0
    %v852 = vadd.f32 %v639, %v851
    %v853 = vpop.f32.mrb[0].mxu0
    %854 = vmatprep.mubr.bf16.mxu0 0
    %855 = vmatmul.mubr.bf16.gmra.mrb[0].mxu0 %v682
    %v856 = vpop.f32.mrb[0].mxu0
    %v857 = vadd.f32 %v639, %v856
    %v858 = vpop.f32.mrb[0].mxu0
    %v859 = vpop.f32.mrb[0].mxu0
    %v860 = vadd.f32 %v639, %v859
    %v861 = vpop.f32.mrb[0].mxu0
    %862 = vmatprep.mubr.bf16.mxu0 0
    %863 = vmatmul.mubr.bf16.gmra.mrb[0].mxu0 %v685
    %v864 = vpop.f32.mrb[0].mxu0
    %v865 = vadd.f32 %v639, %v864
    %v866 = vpop.f32.mrb[0].mxu0
    %v867 = vpop.f32.mrb[0].mxu0
    %v868 = vadd.f32 %v639, %v867
    %v869 = vpop.f32.mrb[0].mxu0
    %870 = vmatprep.mubr.bf16.mxu0 0
    %871 = vmatmul.mubr.bf16.gmra.mrb[0].mxu0 %v688
    %v872 = vpop.f32.mrb[0].mxu0
    %v873 = vadd.f32 %v639, %v872
    %v874 = vpop.f32.mrb[0].mxu0
    %v875 = vpop.f32.mrb[0].mxu0
    %v876 = vadd.f32 %v639, %v875
    %v877 = vpop.f32.mrb[0].mxu0
    %878 = vmatprep.mubr.bf16.mxu0 0
    %879 = vmatmul.mubr.bf16.gmra.mrb[0].mxu0 %v691
    %v880 = vpop.f32.mrb[0].mxu0
    %v881 = vadd.f32 %v639, %v880
    %v882 = vpop.f32.mrb[0].mxu0
    %v883 = vpop.f32.mrb[0].mxu0
    %v884 = vadd.f32 %v639, %v883
    %v885 = vpop.f32.mrb[0].mxu0
    %886 = vmatprep.mubr.bf16.mxu0 0
    %887 = vmatmul.mubr.bf16.gmra.mrb[0].mxu0 %v694
    %v888 = vpop.f32.mrb[0].mxu0
    %v889 = vadd.f32 %v639, %v888
    %v890 = vpop.f32.mrb[0].mxu0
    %v891 = vpop.f32.mrb[0].mxu0
    %v892 = vadd.f32 %v639, %v891
    %v893 = vpop.f32.mrb[0].mxu0
    %894 = vmatprep.mubr.bf16.mxu0 0
    %895 = vmatmul.mubr.bf16.gmra.mrb[0].mxu0 %v697
    %v896 = vpop.f32.mrb[0].mxu0
    %v897 = vadd.f32 %v639, %v896
    %v898 = vpop.f32.mrb[0].mxu0
    %v899 = vpop.f32.mrb[0].mxu0
    %v900 = vadd.f32 %v639, %v899
    %v901 = vpop.f32.mrb[0].mxu0
    %902 = vmatprep.mubr.bf16.mxu0 0
    %903 = vmatmul.mubr.bf16.gmra.mrb[0].mxu0 %v700
    %v904 = vpop.f32.mrb[0].mxu0
    %v905 = vadd.f32 %v639, %v904
    %v906 = vpop.f32.mrb[0].mxu0
    %v907 = vpop.f32.mrb[0].mxu0
    %v908 = vadd.f32 %v639, %v907
    %v909 = vpop.f32.mrb[0].mxu0
    %910 = vmatprep.mubr.bf16.mxu0 0
    %911 = vmatmul.mubr.bf16.gmra.mrb[0].mxu0 %v703
    %v912 = vpop.f32.mrb[0].mxu0
    %v913 = vadd.f32 %v639, %v912
    %v914 = vpop.f32.mrb[0].mxu0
    %v915 = vpop.f32.mrb[0].mxu0
    %v916 = vadd.f32 %v639, %v915
    %v917 = vpop.f32.mrb[0].mxu0
    %918 = vmatprep.mubr.bf16.mxu0 0
    %919 = vmatmul.mubr.bf16.gmra.mrb[0].mxu0 %v706
    %v920 = vpop.f32.mrb[0].mxu0
    %v921 = vadd.f32 %v639, %v920
    %v922 = vpop.f32.mrb[0].mxu0
    %v923 = vpop.f32.mrb[0].mxu0
    %v924 = vadd.f32 %v639, %v923
    %v925 = vpop.f32.mrb[0].mxu0
    %926 = vmatprep.mubr.bf16.mxu0 0
    %927 = vmatmul.mubr.bf16.gmra.mrb[0].mxu0 %v709
    %v928 = vpop.f32.mrb[0].mxu0
    %v929 = vadd.f32 %v639, %v928
    %v930 = vpop.f32.mrb[0].mxu0
    %v931 = vpop.f32.mrb[0].mxu0
    %v932 = vadd.f32 %v639, %v931
    %v933 = vpop.f32.mrb[0].mxu0
    %934 = vmatprep.mubr.bf16.mxu0 0
    %935 = vmatmul.mubr.bf16.gmra.mrb[0].mxu0 %v712
    %v936 = vpop.f32.mrb[0].mxu0
    %v937 = vadd.f32 %v639, %v936
    %v938 = vpop.f32.mrb[0].mxu0
    %v939 = vpop.f32.mrb[0].mxu0
    %v940 = vadd.f32 %v639, %v939
    %v941 = vpop.f32.mrb[0].mxu0
    %942 = vmatprep.mubr.bf16.mxu0 0
    %943 = vmatmul.mubr.bf16.gmra.mrb[0].mxu0 %v715
    %v944 = vpop.f32.mrb[0].mxu0
    %v945 = vadd.f32 %v639, %v944
    %v946 = vpop.f32.mrb[0].mxu0
    %v947 = vpop.f32.mrb[0].mxu0
    %v948 = vadd.f32 %v639, %v947
    %v949 = vpop.f32.mrb[0].mxu0
    %950 = vmatprep.mubr.bf16.mxu0 0
    %951 = vmatmul.mubr.bf16.gmra.mrb[0].mxu0 %v718
    %v952 = vpop.f32.mrb[0].mxu0
    %v953 = vadd.f32 %v639, %v952
    %v954 = vpop.f32.mrb[0].mxu0
    %v955 = vpop.f32.mrb[0].mxu0
    %v956 = vadd.f32 %v639, %v955
    %v957 = vpop.f32.mrb[0].mxu0
    %958 = vmatprep.mubr.bf16.mxu0 0
    %959 = vmatmul.mubr.bf16.gmra.mrb[0].mxu0 %v721
    %v960 = vpop.f32.mrb[0].mxu0
    %v961 = vadd.f32 %v639, %v960
    %v962 = vpop.f32.mrb[0].mxu0
    %v963 = vpop.f32.mrb[0].mxu0
    %v964 = vadd.f32 %v639, %v963
    %v965 = vpop.f32.mrb[0].mxu0
    %966 = vmatprep.mubr.bf16.mxu0 0
    %967 = vmatmul.mubr.bf16.gmra.mrb[0].mxu0 %v724
    %v968 = vpop.f32.mrb[0].mxu0
    %v969 = vadd.f32 %v639, %v968
    %v970 = vpop.f32.mrb[0].mxu0
    %v971 = vpop.f32.mrb[0].mxu0
    %v972 = vadd.f32 %v639, %v971
    %v973 = vpop.f32.mrb[0].mxu0
    %974 = vmatprep.mubr.bf16.mxu0 0
    %975 = vmatmul.mubr.bf16.gmra.mrb[0].mxu0 %v727
    %v976 = vpop.f32.mrb[0].mxu0
    %v977 = vadd.f32 %v639, %v976
    %v978 = vpop.f32.mrb[0].mxu0
    %v979 = vpop.f32.mrb[0].mxu0
    %v980 = vadd.f32 %v639, %v979
    %v981 = vpop.f32.mrb[0].mxu0
    %982 = vmatprep.mubr.bf16.mxu0 0
    %983 = vmatmul.mubr.bf16.gmra.mrb[0].mxu0 %v730
    %v984 = vpop.f32.mrb[0].mxu0
    %v985 = vadd.f32 %v639, %v984
    %v986 = vpop.f32.mrb[0].mxu0
    %v987 = vpop.f32.mrb[0].mxu0
    %v988 = vadd.f32 %v639, %v987
    %v989 = vpop.f32.mrb[0].mxu0
    %990 = vmatprep.mubr.bf16.mxu0 0
    %991 = vmatmul.mubr.bf16.gmra.mrb[0].mxu0 %v733
    %v992 = vpop.f32.mrb[0].mxu0
    %v993 = vadd.f32 %v639, %v992
    %v994 = vpop.f32.mrb[0].mxu0
    %v995 = vpop.f32.mrb[0].mxu0
    %v996 = vadd.f32 %v639, %v995
    %v997 = vpop.f32.mrb[0].mxu0
    %998 = vmatprep.mubr.bf16.mxu0 0
    %999 = vmatmul.mubr.bf16.gmra.mrb[0].mxu0 %v736
    %v1000 = vpop.f32.mrb[0].mxu0
    %v1001 = vadd.f32 %v639, %v1000
    %v1002 = vpop.f32.mrb[0].mxu0
    %v1003 = vpop.f32.mrb[0].mxu0
    %v1004 = vadd.f32 %v639, %v1003
    %v1005 = vpop.f32.mrb[0].mxu0
    %1006 = vmatprep.mubr.bf16.mxu0 0
    %1007 = vmatmul.mubr.bf16.gmra.mrb[0].mxu0 %v739
    %v1008 = vpop.f32.mrb[0].mxu0
    %v1009 = vadd.f32 %v639, %v1008
    %v1010 = vpop.f32.mrb[0].mxu0
    %v1011 = vpop.f32.mrb[0].mxu0
    %v1012 = vadd.f32 %v639, %v1011
    %v1013 = vpop.f32.mrb[0].mxu0
    %1014 = vmatprep.mubr.bf16.mxu0 0
    %1015 = vmatmul.mubr.bf16.gmra.mrb[0].mxu0 %v742
    %v1016 = vpop.f32.mrb[0].mxu0
    %v1017 = vadd.f32 %v639, %v1016
    %v1018 = vpop.f32.mrb[0].mxu0
    %v1019 = vpop.f32.mrb[0].mxu0
    %v1020 = vadd.f32 %v639, %v1019
    %v1021 = vpop.f32.mrb[0].mxu0
    %1022 = vmatprep.mubr.bf16.mxu0 0
    %1023 = vmatmul.mubr.bf16.gmra.mrb[0].mxu0 %v745
    %v1024 = vpop.f32.mrb[0].mxu0
    %v1025 = vadd.f32 %v639, %v1024
    %v1026 = vpop.f32.mrb[0].mxu0
    %v1027 = vpop.f32.mrb[0].mxu0
    %v1028 = vadd.f32 %v639, %v1027
    %v1029 = vpop.f32.mrb[0].mxu0
    %1030 = vmatprep.mubr.bf16.mxu0 0
    %1031 = vmatmul.mubr.bf16.gmra.mrb[0].mxu0 %v748
    %v1032 = vpop.f32.mrb[0].mxu0
    %v1033 = vadd.f32 %v639, %v1032
    %v1034 = vpop.f32.mrb[0].mxu0
    %v1035 = vpop.f32.mrb[0].mxu0
    %v1036 = vadd.f32 %v639, %v1035
    %v1037 = vpop.f32.mrb[0].mxu0
    %1038 = vdwg.mxu0
    %v1039 = vmax.f32 %v785, 0.0
    %v1040 = vmax.f32 %v788, 0.0
    %v1041 = vmax.f32 %v793, 0.0
    %v1042 = vmax.f32 %v796, 0.0
    %v1043 = vmax.f32 %v801, 0.0
    %v1044 = vmax.f32 %v804, 0.0
    %v1045 = vmax.f32 %v809, 0.0
    %v1046 = vmax.f32 %v812, 0.0
    %v1047 = vmax.f32 %v817, 0.0
    %v1048 = vmax.f32 %v820, 0.0
    %v1049 = vmax.f32 %v825, 0.0
    %v1050 = vmax.f32 %v828, 0.0
    %v1051 = vmax.f32 %v833, 0.0
    %v1052 = vmax.f32 %v836, 0.0
    %v1053 = vmax.f32 %v841, 0.0
    %v1054 = vmax.f32 %v844, 0.0
    %v1055 = vmax.f32 %v849, 0.0
    %v1056 = vmax.f32 %v852, 0.0
    %v1057 = vmax.f32 %v857, 0.0
    %v1058 = vmax.f32 %v860, 0.0
    %v1059 = vmax.f32 %v865, 0.0
    %v1060 = vmax.f32 %v868, 0.0
    %v1061 = vmax.f32 %v873, 0.0
    %v1062 = vmax.f32 %v876, 0.0
    %v1063 = vmax.f32 %v881, 0.0
    %v1064 = vmax.f32 %v884, 0.0
    %v1065 = vmax.f32 %v889, 0.0
    %v1066 = vmax.f32 %v892, 0.0
    %v1067 = vmax.f32 %v897, 0.0
    %v1068 = vmax.f32 %v900, 0.0
    %v1069 = vmax.f32 %v905, 0.0
    %v1070 = vmax.f32 %v908, 0.0
    %v1071 = vmax.f32 %v913, 0.0
    %v1072 = vmax.f32 %v916, 0.0
    %v1073 = vmax.f32 %v921, 0.0
    %v1074 = vmax.f32 %v924, 0.0
    %v1075 = vmax.f32 %v929, 0.0
    %v1076 = vmax.f32 %v932, 0.0
    %v1077 = vmax.f32 %v937, 0.0
    %v1078 = vmax.f32 %v940, 0.0
    %v1079 = vmax.f32 %v945, 0.0
    %v1080 = vmax.f32 %v948, 0.0
    %v1081 = vmax.f32 %v953, 0.0
    %v1082 = vmax.f32 %v956, 0.0
    %v1083 = vmax.f32 %v961, 0.0
    %v1084 = vmax.f32 %v964, 0.0
    %v1085 = vmax.f32 %v969, 0.0
    %v1086 = vmax.f32 %v972, 0.0
    %v1087 = vmax.f32 %v977, 0.0
    %v1088 = vmax.f32 %v980, 0.0
    %v1089 = vmax.f32 %v985, 0.0
    %v1090 = vmax.f32 %v988, 0.0
    %v1091 = vmax.f32 %v993, 0.0
    %v1092 = vmax.f32 %v996, 0.0
    %v1093 = vmax.f32 %v1001, 0.0
    %v1094 = vmax.f32 %v1004, 0.0
    %v1095 = vmax.f32 %v1009, 0.0
    %v1096 = vmax.f32 %v1012, 0.0
    %v1097 = vmax.f32 %v1017, 0.0
    %v1098 = vmax.f32 %v1020, 0.0
    %v1099 = vmax.f32 %v1025, 0.0
    %v1100 = vmax.f32 %v1028, 0.0
    %v1101 = vmax.f32 %v1033, 0.0
    %v1102 = vmax.f32 %v1036, 0.0
    %v1167 = vcombine.high %v1039, %v1039
    %v1169 = vunpack.c.l.s4 1983009808
    %v1170 = vunpack.c.0.s8 %v1169
    %v1171 = vlaneseq
    %v1172 = vshrl.u32 %v1171, 7
    %v1173 = vsub.s32 %v1170, %v1172
    %v1174 = vrot.slane %v1039, %v1173
    %v1176 = vunpack.c.l.s4 1983009808
    %v1177 = vunpack.c.0.s8 %v1176
    %v1178 = vlaneseq
    %v1179 = vshrl.u32 %v1178, 7
    %v1180 = vsub.s32 %v1177, %v1179
    %v1181 = vrot.slane %v1167, %v1180
    %v1182 = vcombine.high %v1174, %v1174
    %v1183 = vcombine.high %v1181, %v1181
    %v1184 = vcombine.high %v1040, %v1040
    %v1186 = vunpack.c.l.s4 1983009808
    %v1187 = vunpack.c.0.s8 %v1186
    %v1188 = vlaneseq
    %v1189 = vshrl.u32 %v1188, 7
    %v1190 = vsub.s32 %v1187, %v1189
    %v1191 = vrot.slane %v1040, %v1190
    %v1193 = vunpack.c.l.s4 1983009808
    %v1194 = vunpack.c.0.s8 %v1193
    %v1195 = vlaneseq
    %v1196 = vshrl.u32 %v1195, 7
    %v1197 = vsub.s32 %v1194, %v1196
    %v1198 = vrot.slane %v1184, %v1197
    %v1199 = vcombine.high %v1191, %v1191
    %v1200 = vcombine.high %v1198, %v1198
    %v1201 = vcombine.high %v1041, %v1041
    %v1203 = vunpack.c.l.s4 1983009808
    %v1204 = vunpack.c.0.s8 %v1203
    %v1205 = vlaneseq
    %v1206 = vshrl.u32 %v1205, 7
    %v1207 = vsub.s32 %v1204, %v1206
    %v1208 = vrot.slane %v1041, %v1207
    %v1210 = vunpack.c.l.s4 1983009808
    %v1211 = vunpack.c.0.s8 %v1210
    %v1212 = vlaneseq
    %v1213 = vshrl.u32 %v1212, 7
    %v1214 = vsub.s32 %v1211, %v1213
    %v1215 = vrot.slane %v1201, %v1214
    %v1216 = vcombine.high %v1208, %v1208
    %v1217 = vcombine.high %v1215, %v1215
    %v1218 = vcombine.high %v1042, %v1042
    %v1220 = vunpack.c.l.s4 1983009808
    %v1221 = vunpack.c.0.s8 %v1220
    %v1222 = vlaneseq
    %v1223 = vshrl.u32 %v1222, 7
    %v1224 = vsub.s32 %v1221, %v1223
    %v1225 = vrot.slane %v1042, %v1224
    %v1227 = vunpack.c.l.s4 1983009808
    %v1228 = vunpack.c.0.s8 %v1227
    %v1229 = vlaneseq
    %v1230 = vshrl.u32 %v1229, 7
    %v1231 = vsub.s32 %v1228, %v1230
    %v1232 = vrot.slane %v1218, %v1231
    %v1233 = vcombine.high %v1225, %v1225
    %v1234 = vcombine.high %v1232, %v1232
    %v1235 = vcombine.high %v1043, %v1043
    %v1237 = vunpack.c.l.s4 1983009808
    %v1238 = vunpack.c.0.s8 %v1237
    %v1239 = vlaneseq
    %v1240 = vshrl.u32 %v1239, 7
    %v1241 = vsub.s32 %v1238, %v1240
    %v1242 = vrot.slane %v1043, %v1241
    %v1244 = vunpack.c.l.s4 1983009808
    %v1245 = vunpack.c.0.s8 %v1244
    %v1246 = vlaneseq
    %v1247 = vshrl.u32 %v1246, 7
    %v1248 = vsub.s32 %v1245, %v1247
    %v1249 = vrot.slane %v1235, %v1248
    %v1250 = vcombine.high %v1242, %v1242
    %v1251 = vcombine.high %v1249, %v1249
    %v1252 = vcombine.high %v1044, %v1044
    %v1254 = vunpack.c.l.s4 1983009808
    %v1255 = vunpack.c.0.s8 %v1254
    %v1256 = vlaneseq
    %v1257 = vshrl.u32 %v1256, 7
    %v1258 = vsub.s32 %v1255, %v1257
    %v1259 = vrot.slane %v1044, %v1258
    %v1261 = vunpack.c.l.s4 1983009808
    %v1262 = vunpack.c.0.s8 %v1261
    %v1263 = vlaneseq
    %v1264 = vshrl.u32 %v1263, 7
    %v1265 = vsub.s32 %v1262, %v1264
    %v1266 = vrot.slane %v1252, %v1265
    %v1267 = vcombine.high %v1259, %v1259
    %v1268 = vcombine.high %v1266, %v1266
    %v1269 = vcombine.high %v1045, %v1045
    %v1271 = vunpack.c.l.s4 1983009808
    %v1272 = vunpack.c.0.s8 %v1271
    %v1273 = vlaneseq
    %v1274 = vshrl.u32 %v1273, 7
    %v1275 = vsub.s32 %v1272, %v1274
    %v1276 = vrot.slane %v1045, %v1275
    %v1278 = vunpack.c.l.s4 1983009808
    %v1279 = vunpack.c.0.s8 %v1278
    %v1280 = vlaneseq
    %v1281 = vshrl.u32 %v1280, 7
    %v1282 = vsub.s32 %v1279, %v1281
    %v1283 = vrot.slane %v1269, %v1282
    %v1284 = vcombine.high %v1276, %v1276
    %v1285 = vcombine.high %v1283, %v1283
    %v1286 = vcombine.high %v1046, %v1046
    %v1288 = vunpack.c.l.s4 1983009808
    %v1289 = vunpack.c.0.s8 %v1288
    %v1290 = vlaneseq
    %v1291 = vshrl.u32 %v1290, 7
    %v1292 = vsub.s32 %v1289, %v1291
    %v1293 = vrot.slane %v1046, %v1292
    %v1295 = vunpack.c.l.s4 1983009808
    %v1296 = vunpack.c.0.s8 %v1295
    %v1297 = vlaneseq
    %v1298 = vshrl.u32 %v1297, 7
    %v1299 = vsub.s32 %v1296, %v1298
    %v1300 = vrot.slane %v1286, %v1299
    %v1301 = vcombine.high %v1293, %v1293
    %v1302 = vcombine.high %v1300, %v1300
    %v1303 = vcombine.high %v1047, %v1047
    %v1305 = vunpack.c.l.s4 1983009808
    %v1306 = vunpack.c.0.s8 %v1305
    %v1307 = vlaneseq
    %v1308 = vshrl.u32 %v1307, 7
    %v1309 = vsub.s32 %v1306, %v1308
    %v1310 = vrot.slane %v1047, %v1309
    %v1312 = vunpack.c.l.s4 1983009808
    %v1313 = vunpack.c.0.s8 %v1312
    %v1314 = vlaneseq
    %v1315 = vshrl.u32 %v1314, 7
    %v1316 = vsub.s32 %v1313, %v1315
    %v1317 = vrot.slane %v1303, %v1316
    %v1318 = vcombine.high %v1310, %v1310
    %v1319 = vcombine.high %v1317, %v1317
    %v1320 = vcombine.high %v1048, %v1048
    %v1322 = vunpack.c.l.s4 1983009808
    %v1323 = vunpack.c.0.s8 %v1322
    %v1324 = vlaneseq
    %v1325 = vshrl.u32 %v1324, 7
    %v1326 = vsub.s32 %v1323, %v1325
    %v1327 = vrot.slane %v1048, %v1326
    %v1329 = vunpack.c.l.s4 1983009808
    %v1330 = vunpack.c.0.s8 %v1329
    %v1331 = vlaneseq
    %v1332 = vshrl.u32 %v1331, 7
    %v1333 = vsub.s32 %v1330, %v1332
    %v1334 = vrot.slane %v1320, %v1333
    %v1335 = vcombine.high %v1327, %v1327
    %v1336 = vcombine.high %v1334, %v1334
    %v1337 = vcombine.high %v1049, %v1049
    %v1339 = vunpack.c.l.s4 1983009808
    %v1340 = vunpack.c.0.s8 %v1339
    %v1341 = vlaneseq
    %v1342 = vshrl.u32 %v1341, 7
    %v1343 = vsub.s32 %v1340, %v1342
    %v1344 = vrot.slane %v1049, %v1343
    %v1346 = vunpack.c.l.s4 1983009808
    %v1347 = vunpack.c.0.s8 %v1346
    %v1348 = vlaneseq
    %v1349 = vshrl.u32 %v1348, 7
    %v1350 = vsub.s32 %v1347, %v1349
    %v1351 = vrot.slane %v1337, %v1350
    %v1352 = vcombine.high %v1344, %v1344
    %v1353 = vcombine.high %v1351, %v1351
    %v1354 = vcombine.high %v1050, %v1050
    %v1356 = vunpack.c.l.s4 1983009808
    %v1357 = vunpack.c.0.s8 %v1356
    %v1358 = vlaneseq
    %v1359 = vshrl.u32 %v1358, 7
    %v1360 = vsub.s32 %v1357, %v1359
    %v1361 = vrot.slane %v1050, %v1360
    %v1363 = vunpack.c.l.s4 1983009808
    %v1364 = vunpack.c.0.s8 %v1363
    %v1365 = vlaneseq
    %v1366 = vshrl.u32 %v1365, 7
    %v1367 = vsub.s32 %v1364, %v1366
    %v1368 = vrot.slane %v1354, %v1367
    %v1369 = vcombine.high %v1361, %v1361
    %v1370 = vcombine.high %v1368, %v1368
    %v1371 = vcombine.high %v1051, %v1051
    %v1373 = vunpack.c.l.s4 1983009808
    %v1374 = vunpack.c.0.s8 %v1373
    %v1375 = vlaneseq
    %v1376 = vshrl.u32 %v1375, 7
    %v1377 = vsub.s32 %v1374, %v1376
    %v1378 = vrot.slane %v1051, %v1377
    %v1380 = vunpack.c.l.s4 1983009808
    %v1381 = vunpack.c.0.s8 %v1380
    %v1382 = vlaneseq
    %v1383 = vshrl.u32 %v1382, 7
    %v1384 = vsub.s32 %v1381, %v1383
    %v1385 = vrot.slane %v1371, %v1384
    %v1386 = vcombine.high %v1378, %v1378
    %v1387 = vcombine.high %v1385, %v1385
    %v1388 = vcombine.high %v1052, %v1052
    %v1390 = vunpack.c.l.s4 1983009808
    %v1391 = vunpack.c.0.s8 %v1390
    %v1392 = vlaneseq
    %v1393 = vshrl.u32 %v1392, 7
    %v1394 = vsub.s32 %v1391, %v1393
    %v1395 = vrot.slane %v1052, %v1394
    %v1397 = vunpack.c.l.s4 1983009808
    %v1398 = vunpack.c.0.s8 %v1397
    %v1399 = vlaneseq
    %v1400 = vshrl.u32 %v1399, 7
    %v1401 = vsub.s32 %v1398, %v1400
    %v1402 = vrot.slane %v1388, %v1401
    %v1403 = vcombine.high %v1395, %v1395
    %v1404 = vcombine.high %v1402, %v1402
    %v1405 = vcombine.high %v1053, %v1053
    %v1407 = vunpack.c.l.s4 1983009808
    %v1408 = vunpack.c.0.s8 %v1407
    %v1409 = vlaneseq
    %v1410 = vshrl.u32 %v1409, 7
    %v1411 = vsub.s32 %v1408, %v1410
    %v1412 = vrot.slane %v1053, %v1411
    %v1414 = vunpack.c.l.s4 1983009808
    %v1415 = vunpack.c.0.s8 %v1414
    %v1416 = vlaneseq
    %v1417 = vshrl.u32 %v1416, 7
    %v1418 = vsub.s32 %v1415, %v1417
    %v1419 = vrot.slane %v1405, %v1418
    %v1420 = vcombine.high %v1412, %v1412
    %v1421 = vcombine.high %v1419, %v1419
    %v1422 = vcombine.high %v1054, %v1054
    %v1424 = vunpack.c.l.s4 1983009808
    %v1425 = vunpack.c.0.s8 %v1424
    %v1426 = vlaneseq
    %v1427 = vshrl.u32 %v1426, 7
    %v1428 = vsub.s32 %v1425, %v1427
    %v1429 = vrot.slane %v1054, %v1428
    %v1431 = vunpack.c.l.s4 1983009808
    %v1432 = vunpack.c.0.s8 %v1431
    %v1433 = vlaneseq
    %v1434 = vshrl.u32 %v1433, 7
    %v1435 = vsub.s32 %v1432, %v1434
    %v1436 = vrot.slane %v1422, %v1435
    %v1437 = vcombine.high %v1429, %v1429
    %v1438 = vcombine.high %v1436, %v1436
    %v1439 = vcombine.high %v1055, %v1055
    %v1441 = vunpack.c.l.s4 1983009808
    %v1442 = vunpack.c.0.s8 %v1441
    %v1443 = vlaneseq
    %v1444 = vshrl.u32 %v1443, 7
    %v1445 = vsub.s32 %v1442, %v1444
    %v1446 = vrot.slane %v1055, %v1445
    %v1448 = vunpack.c.l.s4 1983009808
    %v1449 = vunpack.c.0.s8 %v1448
    %v1450 = vlaneseq
    %v1451 = vshrl.u32 %v1450, 7
    %v1452 = vsub.s32 %v1449, %v1451
    %v1453 = vrot.slane %v1439, %v1452
    %v1454 = vcombine.high %v1446, %v1446
    %v1455 = vcombine.high %v1453, %v1453
    %v1456 = vcombine.high %v1056, %v1056
    %v1458 = vunpack.c.l.s4 1983009808
    %v1459 = vunpack.c.0.s8 %v1458
    %v1460 = vlaneseq
    %v1461 = vshrl.u32 %v1460, 7
    %v1462 = vsub.s32 %v1459, %v1461
    %v1463 = vrot.slane %v1056, %v1462
    %v1465 = vunpack.c.l.s4 1983009808
    %v1466 = vunpack.c.0.s8 %v1465
    %v1467 = vlaneseq
    %v1468 = vshrl.u32 %v1467, 7
    %v1469 = vsub.s32 %v1466, %v1468
    %v1470 = vrot.slane %v1456, %v1469
    %v1471 = vcombine.high %v1463, %v1463
    %v1472 = vcombine.high %v1470, %v1470
    %v1473 = vcombine.high %v1057, %v1057
    %v1475 = vunpack.c.l.s4 1983009808
    %v1476 = vunpack.c.0.s8 %v1475
    %v1477 = vlaneseq
    %v1478 = vshrl.u32 %v1477, 7
    %v1479 = vsub.s32 %v1476, %v1478
    %v1480 = vrot.slane %v1057, %v1479
    %v1482 = vunpack.c.l.s4 1983009808
    %v1483 = vunpack.c.0.s8 %v1482
    %v1484 = vlaneseq
    %v1485 = vshrl.u32 %v1484, 7
    %v1486 = vsub.s32 %v1483, %v1485
    %v1487 = vrot.slane %v1473, %v1486
    %v1488 = vcombine.high %v1480, %v1480
    %v1489 = vcombine.high %v1487, %v1487
    %v1490 = vcombine.high %v1058, %v1058
    %v1492 = vunpack.c.l.s4 1983009808
    %v1493 = vunpack.c.0.s8 %v1492
    %v1494 = vlaneseq
    %v1495 = vshrl.u32 %v1494, 7
    %v1496 = vsub.s32 %v1493, %v1495
    %v1497 = vrot.slane %v1058, %v1496
    %v1499 = vunpack.c.l.s4 1983009808
    %v1500 = vunpack.c.0.s8 %v1499
    %v1501 = vlaneseq
    %v1502 = vshrl.u32 %v1501, 7
    %v1503 = vsub.s32 %v1500, %v1502
    %v1504 = vrot.slane %v1490, %v1503
    %v1505 = vcombine.high %v1497, %v1497
    %v1506 = vcombine.high %v1504, %v1504
    %v1507 = vcombine.high %v1059, %v1059
    %v1509 = vunpack.c.l.s4 1983009808
    %v1510 = vunpack.c.0.s8 %v1509
    %v1511 = vlaneseq
    %v1512 = vshrl.u32 %v1511, 7
    %v1513 = vsub.s32 %v1510, %v1512
    %v1514 = vrot.slane %v1059, %v1513
    %v1516 = vunpack.c.l.s4 1983009808
    %v1517 = vunpack.c.0.s8 %v1516
    %v1518 = vlaneseq
    %v1519 = vshrl.u32 %v1518, 7
    %v1520 = vsub.s32 %v1517, %v1519
    %v1521 = vrot.slane %v1507, %v1520
    %v1522 = vcombine.high %v1514, %v1514
    %v1523 = vcombine.high %v1521, %v1521
    %v1524 = vcombine.high %v1060, %v1060
    %v1526 = vunpack.c.l.s4 1983009808
    %v1527 = vunpack.c.0.s8 %v1526
    %v1528 = vlaneseq
    %v1529 = vshrl.u32 %v1528, 7
    %v1530 = vsub.s32 %v1527, %v1529
    %v1531 = vrot.slane %v1060, %v1530
    %v1533 = vunpack.c.l.s4 1983009808
    %v1534 = vunpack.c.0.s8 %v1533
    %v1535 = vlaneseq
    %v1536 = vshrl.u32 %v1535, 7
    %v1537 = vsub.s32 %v1534, %v1536
    %v1538 = vrot.slane %v1524, %v1537
    %v1539 = vcombine.high %v1531, %v1531
    %v1540 = vcombine.high %v1538, %v1538
    %v1541 = vcombine.high %v1061, %v1061
    %v1543 = vunpack.c.l.s4 1983009808
    %v1544 = vunpack.c.0.s8 %v1543
    %v1545 = vlaneseq
    %v1546 = vshrl.u32 %v1545, 7
    %v1547 = vsub.s32 %v1544, %v1546
    %v1548 = vrot.slane %v1061, %v1547
    %v1550 = vunpack.c.l.s4 1983009808
    %v1551 = vunpack.c.0.s8 %v1550
    %v1552 = vlaneseq
    %v1553 = vshrl.u32 %v1552, 7
    %v1554 = vsub.s32 %v1551, %v1553
    %v1555 = vrot.slane %v1541, %v1554
    %v1556 = vcombine.high %v1548, %v1548
    %v1557 = vcombine.high %v1555, %v1555
    %v1558 = vcombine.high %v1062, %v1062
    %v1560 = vunpack.c.l.s4 1983009808
    %v1561 = vunpack.c.0.s8 %v1560
    %v1562 = vlaneseq
    %v1563 = vshrl.u32 %v1562, 7
    %v1564 = vsub.s32 %v1561, %v1563
    %v1565 = vrot.slane %v1062, %v1564
    %v1567 = vunpack.c.l.s4 1983009808
    %v1568 = vunpack.c.0.s8 %v1567
    %v1569 = vlaneseq
    %v1570 = vshrl.u32 %v1569, 7
    %v1571 = vsub.s32 %v1568, %v1570
    %v1572 = vrot.slane %v1558, %v1571
    %v1573 = vcombine.high %v1565, %v1565
    %v1574 = vcombine.high %v1572, %v1572
    %v1575 = vcombine.high %v1063, %v1063
    %v1577 = vunpack.c.l.s4 1983009808
    %v1578 = vunpack.c.0.s8 %v1577
    %v1579 = vlaneseq
    %v1580 = vshrl.u32 %v1579, 7
    %v1581 = vsub.s32 %v1578, %v1580
    %v1582 = vrot.slane %v1063, %v1581
    %v1584 = vunpack.c.l.s4 1983009808
    %v1585 = vunpack.c.0.s8 %v1584
    %v1586 = vlaneseq
    %v1587 = vshrl.u32 %v1586, 7
    %v1588 = vsub.s32 %v1585, %v1587
    %v1589 = vrot.slane %v1575, %v1588
    %v1590 = vcombine.high %v1582, %v1582
    %v1591 = vcombine.high %v1589, %v1589
    %v1592 = vcombine.high %v1064, %v1064
    %v1594 = vunpack.c.l.s4 1983009808
    %v1595 = vunpack.c.0.s8 %v1594
    %v1596 = vlaneseq
    %v1597 = vshrl.u32 %v1596, 7
    %v1598 = vsub.s32 %v1595, %v1597
    %v1599 = vrot.slane %v1064, %v1598
    %v1601 = vunpack.c.l.s4 1983009808
    %v1602 = vunpack.c.0.s8 %v1601
    %v1603 = vlaneseq
    %v1604 = vshrl.u32 %v1603, 7
    %v1605 = vsub.s32 %v1602, %v1604
    %v1606 = vrot.slane %v1592, %v1605
    %v1607 = vcombine.high %v1599, %v1599
    %v1608 = vcombine.high %v1606, %v1606
    %v1609 = vcombine.high %v1065, %v1065
    %v1611 = vunpack.c.l.s4 1983009808
    %v1612 = vunpack.c.0.s8 %v1611
    %v1613 = vlaneseq
    %v1614 = vshrl.u32 %v1613, 7
    %v1615 = vsub.s32 %v1612, %v1614
    %v1616 = vrot.slane %v1065, %v1615
    %v1618 = vunpack.c.l.s4 1983009808
    %v1619 = vunpack.c.0.s8 %v1618
    %v1620 = vlaneseq
    %v1621 = vshrl.u32 %v1620, 7
    %v1622 = vsub.s32 %v1619, %v1621
    %v1623 = vrot.slane %v1609, %v1622
    %v1624 = vcombine.high %v1616, %v1616
    %v1625 = vcombine.high %v1623, %v1623
    %v1626 = vcombine.high %v1066, %v1066
    %v1628 = vunpack.c.l.s4 1983009808
    %v1629 = vunpack.c.0.s8 %v1628
    %v1630 = vlaneseq
    %v1631 = vshrl.u32 %v1630, 7
    %v1632 = vsub.s32 %v1629, %v1631
    %v1633 = vrot.slane %v1066, %v1632
    %v1635 = vunpack.c.l.s4 1983009808
    %v1636 = vunpack.c.0.s8 %v1635
    %v1637 = vlaneseq
    %v1638 = vshrl.u32 %v1637, 7
    %v1639 = vsub.s32 %v1636, %v1638
    %v1640 = vrot.slane %v1626, %v1639
    %v1641 = vcombine.high %v1633, %v1633
    %v1642 = vcombine.high %v1640, %v1640
    %v1643 = vcombine.high %v1067, %v1067
    %v1645 = vunpack.c.l.s4 1983009808
    %v1646 = vunpack.c.0.s8 %v1645
    %v1647 = vlaneseq
    %v1648 = vshrl.u32 %v1647, 7
    %v1649 = vsub.s32 %v1646, %v1648
    %v1650 = vrot.slane %v1067, %v1649
    %v1652 = vunpack.c.l.s4 1983009808
    %v1653 = vunpack.c.0.s8 %v1652
    %v1654 = vlaneseq
    %v1655 = vshrl.u32 %v1654, 7
    %v1656 = vsub.s32 %v1653, %v1655
    %v1657 = vrot.slane %v1643, %v1656
    %v1658 = vcombine.high %v1650, %v1650
    %v1659 = vcombine.high %v1657, %v1657
    %v1660 = vcombine.high %v1068, %v1068
    %v1662 = vunpack.c.l.s4 1983009808
    %v1663 = vunpack.c.0.s8 %v1662
    %v1664 = vlaneseq
    %v1665 = vshrl.u32 %v1664, 7
    %v1666 = vsub.s32 %v1663, %v1665
    %v1667 = vrot.slane %v1068, %v1666
    %v1669 = vunpack.c.l.s4 1983009808
    %v1670 = vunpack.c.0.s8 %v1669
    %v1671 = vlaneseq
    %v1672 = vshrl.u32 %v1671, 7
    %v1673 = vsub.s32 %v1670, %v1672
    %v1674 = vrot.slane %v1660, %v1673
    %v1675 = vcombine.high %v1667, %v1667
    %v1676 = vcombine.high %v1674, %v1674
    %v1677 = vcombine.high %v1069, %v1069
    %v1679 = vunpack.c.l.s4 1983009808
    %v1680 = vunpack.c.0.s8 %v1679
    %v1681 = vlaneseq
    %v1682 = vshrl.u32 %v1681, 7
    %v1683 = vsub.s32 %v1680, %v1682
    %v1684 = vrot.slane %v1069, %v1683
    %v1686 = vunpack.c.l.s4 1983009808
    %v1687 = vunpack.c.0.s8 %v1686
    %v1688 = vlaneseq
    %v1689 = vshrl.u32 %v1688, 7
    %v1690 = vsub.s32 %v1687, %v1689
    %v1691 = vrot.slane %v1677, %v1690
    %v1692 = vcombine.high %v1684, %v1684
    %v1693 = vcombine.high %v1691, %v1691
    %v1694 = vcombine.high %v1070, %v1070
    %v1696 = vunpack.c.l.s4 1983009808
    %v1697 = vunpack.c.0.s8 %v1696
    %v1698 = vlaneseq
    %v1699 = vshrl.u32 %v1698, 7
    %v1700 = vsub.s32 %v1697, %v1699
    %v1701 = vrot.slane %v1070, %v1700
    %v1703 = vunpack.c.l.s4 1983009808
    %v1704 = vunpack.c.0.s8 %v1703
    %v1705 = vlaneseq
    %v1706 = vshrl.u32 %v1705, 7
    %v1707 = vsub.s32 %v1704, %v1706
    %v1708 = vrot.slane %v1694, %v1707
    %v1709 = vcombine.high %v1701, %v1701
    %v1710 = vcombine.high %v1708, %v1708
    %v1711 = vcombine.high %v1071, %v1071
    %v1713 = vunpack.c.l.s4 1983009808
    %v1714 = vunpack.c.0.s8 %v1713
    %v1715 = vlaneseq
    %v1716 = vshrl.u32 %v1715, 7
    %v1717 = vsub.s32 %v1714, %v1716
    %v1718 = vrot.slane %v1071, %v1717
    %v1720 = vunpack.c.l.s4 1983009808
    %v1721 = vunpack.c.0.s8 %v1720
    %v1722 = vlaneseq
    %v1723 = vshrl.u32 %v1722, 7
    %v1724 = vsub.s32 %v1721, %v1723
    %v1725 = vrot.slane %v1711, %v1724
    %v1726 = vcombine.high %v1718, %v1718
    %v1727 = vcombine.high %v1725, %v1725
    %v1728 = vcombine.high %v1072, %v1072
    %v1730 = vunpack.c.l.s4 1983009808
    %v1731 = vunpack.c.0.s8 %v1730
    %v1732 = vlaneseq
    %v1733 = vshrl.u32 %v1732, 7
    %v1734 = vsub.s32 %v1731, %v1733
    %v1735 = vrot.slane %v1072, %v1734
    %v1737 = vunpack.c.l.s4 1983009808
    %v1738 = vunpack.c.0.s8 %v1737
    %v1739 = vlaneseq
    %v1740 = vshrl.u32 %v1739, 7
    %v1741 = vsub.s32 %v1738, %v1740
    %v1742 = vrot.slane %v1728, %v1741
    %v1743 = vcombine.high %v1735, %v1735
    %v1744 = vcombine.high %v1742, %v1742
    %v1745 = vcombine.high %v1073, %v1073
    %v1747 = vunpack.c.l.s4 1983009808
    %v1748 = vunpack.c.0.s8 %v1747
    %v1749 = vlaneseq
    %v1750 = vshrl.u32 %v1749, 7
    %v1751 = vsub.s32 %v1748, %v1750
    %v1752 = vrot.slane %v1073, %v1751
    %v1754 = vunpack.c.l.s4 1983009808
    %v1755 = vunpack.c.0.s8 %v1754
    %v1756 = vlaneseq
    %v1757 = vshrl.u32 %v1756, 7
    %v1758 = vsub.s32 %v1755, %v1757
    %v1759 = vrot.slane %v1745, %v1758
    %v1760 = vcombine.high %v1752, %v1752
    %v1761 = vcombine.high %v1759, %v1759
    %v1762 = vcombine.high %v1074, %v1074
    %v1764 = vunpack.c.l.s4 1983009808
    %v1765 = vunpack.c.0.s8 %v1764
    %v1766 = vlaneseq
    %v1767 = vshrl.u32 %v1766, 7
    %v1768 = vsub.s32 %v1765, %v1767
    %v1769 = vrot.slane %v1074, %v1768
    %v1771 = vunpack.c.l.s4 1983009808
    %v1772 = vunpack.c.0.s8 %v1771
    %v1773 = vlaneseq
    %v1774 = vshrl.u32 %v1773, 7
    %v1775 = vsub.s32 %v1772, %v1774
    %v1776 = vrot.slane %v1762, %v1775
    %v1777 = vcombine.high %v1769, %v1769
    %v1778 = vcombine.high %v1776, %v1776
    %v1779 = vcombine.high %v1075, %v1075
    %v1781 = vunpack.c.l.s4 1983009808
    %v1782 = vunpack.c.0.s8 %v1781
    %v1783 = vlaneseq
    %v1784 = vshrl.u32 %v1783, 7
    %v1785 = vsub.s32 %v1782, %v1784
    %v1786 = vrot.slane %v1075, %v1785
    %v1788 = vunpack.c.l.s4 1983009808
    %v1789 = vunpack.c.0.s8 %v1788
    %v1790 = vlaneseq
    %v1791 = vshrl.u32 %v1790, 7
    %v1792 = vsub.s32 %v1789, %v1791
    %v1793 = vrot.slane %v1779, %v1792
    %v1794 = vcombine.high %v1786, %v1786
    %v1795 = vcombine.high %v1793, %v1793
    %v1796 = vcombine.high %v1076, %v1076
    %v1798 = vunpack.c.l.s4 1983009808
    %v1799 = vunpack.c.0.s8 %v1798
    %v1800 = vlaneseq
    %v1801 = vshrl.u32 %v1800, 7
    %v1802 = vsub.s32 %v1799, %v1801
    %v1803 = vrot.slane %v1076, %v1802
    %v1805 = vunpack.c.l.s4 1983009808
    %v1806 = vunpack.c.0.s8 %v1805
    %v1807 = vlaneseq
    %v1808 = vshrl.u32 %v1807, 7
    %v1809 = vsub.s32 %v1806, %v1808
    %v1810 = vrot.slane %v1796, %v1809
    %v1811 = vcombine.high %v1803, %v1803
    %v1812 = vcombine.high %v1810, %v1810
    %v1813 = vcombine.high %v1077, %v1077
    %v1815 = vunpack.c.l.s4 1983009808
    %v1816 = vunpack.c.0.s8 %v1815
    %v1817 = vlaneseq
    %v1818 = vshrl.u32 %v1817, 7
    %v1819 = vsub.s32 %v1816, %v1818
    %v1820 = vrot.slane %v1077, %v1819
    %v1822 = vunpack.c.l.s4 1983009808
    %v1823 = vunpack.c.0.s8 %v1822
    %v1824 = vlaneseq
    %v1825 = vshrl.u32 %v1824, 7
    %v1826 = vsub.s32 %v1823, %v1825
    %v1827 = vrot.slane %v1813, %v1826
    %v1828 = vcombine.high %v1820, %v1820
    %v1829 = vcombine.high %v1827, %v1827
    %v1830 = vcombine.high %v1078, %v1078
    %v1832 = vunpack.c.l.s4 1983009808
    %v1833 = vunpack.c.0.s8 %v1832
    %v1834 = vlaneseq
    %v1835 = vshrl.u32 %v1834, 7
    %v1836 = vsub.s32 %v1833, %v1835
    %v1837 = vrot.slane %v1078, %v1836
    %v1839 = vunpack.c.l.s4 1983009808
    %v1840 = vunpack.c.0.s8 %v1839
    %v1841 = vlaneseq
    %v1842 = vshrl.u32 %v1841, 7
    %v1843 = vsub.s32 %v1840, %v1842
    %v1844 = vrot.slane %v1830, %v1843
    %v1845 = vcombine.high %v1837, %v1837
    %v1846 = vcombine.high %v1844, %v1844
    %v1847 = vcombine.high %v1079, %v1079
    %v1849 = vunpack.c.l.s4 1983009808
    %v1850 = vunpack.c.0.s8 %v1849
    %v1851 = vlaneseq
    %v1852 = vshrl.u32 %v1851, 7
    %v1853 = vsub.s32 %v1850, %v1852
    %v1854 = vrot.slane %v1079, %v1853
    %v1856 = vunpack.c.l.s4 1983009808
    %v1857 = vunpack.c.0.s8 %v1856
    %v1858 = vlaneseq
    %v1859 = vshrl.u32 %v1858, 7
    %v1860 = vsub.s32 %v1857, %v1859
    %v1861 = vrot.slane %v1847, %v1860
    %v1862 = vcombine.high %v1854, %v1854
    %v1863 = vcombine.high %v1861, %v1861
    %v1864 = vcombine.high %v1080, %v1080
    %v1866 = vunpack.c.l.s4 1983009808
    %v1867 = vunpack.c.0.s8 %v1866
    %v1868 = vlaneseq
    %v1869 = vshrl.u32 %v1868, 7
    %v1870 = vsub.s32 %v1867, %v1869
    %v1871 = vrot.slane %v1080, %v1870
    %v1873 = vunpack.c.l.s4 1983009808
    %v1874 = vunpack.c.0.s8 %v1873
    %v1875 = vlaneseq
    %v1876 = vshrl.u32 %v1875, 7
    %v1877 = vsub.s32 %v1874, %v1876
    %v1878 = vrot.slane %v1864, %v1877
    %v1879 = vcombine.high %v1871, %v1871
    %v1880 = vcombine.high %v1878, %v1878
    %v1881 = vcombine.high %v1081, %v1081
    %v1883 = vunpack.c.l.s4 1983009808
    %v1884 = vunpack.c.0.s8 %v1883
    %v1885 = vlaneseq
    %v1886 = vshrl.u32 %v1885, 7
    %v1887 = vsub.s32 %v1884, %v1886
    %v1888 = vrot.slane %v1081, %v1887
    %v1890 = vunpack.c.l.s4 1983009808
    %v1891 = vunpack.c.0.s8 %v1890
    %v1892 = vlaneseq
    %v1893 = vshrl.u32 %v1892, 7
    %v1894 = vsub.s32 %v1891, %v1893
    %v1895 = vrot.slane %v1881, %v1894
    %v1896 = vcombine.high %v1888, %v1888
    %v1897 = vcombine.high %v1895, %v1895
    %v1898 = vcombine.high %v1082, %v1082
    %v1900 = vunpack.c.l.s4 1983009808
    %v1901 = vunpack.c.0.s8 %v1900
    %v1902 = vlaneseq
    %v1903 = vshrl.u32 %v1902, 7
    %v1904 = vsub.s32 %v1901, %v1903
    %v1905 = vrot.slane %v1082, %v1904
    %v1907 = vunpack.c.l.s4 1983009808
    %v1908 = vunpack.c.0.s8 %v1907
    %v1909 = vlaneseq
    %v1910 = vshrl.u32 %v1909, 7
    %v1911 = vsub.s32 %v1908, %v1910
    %v1912 = vrot.slane %v1898, %v1911
    %v1913 = vcombine.high %v1905, %v1905
    %v1914 = vcombine.high %v1912, %v1912
    %v1915 = vcombine.high %v1083, %v1083
    %v1917 = vunpack.c.l.s4 1983009808
    %v1918 = vunpack.c.0.s8 %v1917
    %v1919 = vlaneseq
    %v1920 = vshrl.u32 %v1919, 7
    %v1921 = vsub.s32 %v1918, %v1920
    %v1922 = vrot.slane %v1083, %v1921
    %v1924 = vunpack.c.l.s4 1983009808
    %v1925 = vunpack.c.0.s8 %v1924
    %v1926 = vlaneseq
    %v1927 = vshrl.u32 %v1926, 7
    %v1928 = vsub.s32 %v1925, %v1927
    %v1929 = vrot.slane %v1915, %v1928
    %v1930 = vcombine.high %v1922, %v1922
    %v1931 = vcombine.high %v1929, %v1929
    %v1932 = vcombine.high %v1084, %v1084
    %v1934 = vunpack.c.l.s4 1983009808
    %v1935 = vunpack.c.0.s8 %v1934
    %v1936 = vlaneseq
    %v1937 = vshrl.u32 %v1936, 7
    %v1938 = vsub.s32 %v1935, %v1937
    %v1939 = vrot.slane %v1084, %v1938
    %v1941 = vunpack.c.l.s4 1983009808
    %v1942 = vunpack.c.0.s8 %v1941
    %v1943 = vlaneseq
    %v1944 = vshrl.u32 %v1943, 7
    %v1945 = vsub.s32 %v1942, %v1944
    %v1946 = vrot.slane %v1932, %v1945
    %v1947 = vcombine.high %v1939, %v1939
    %v1948 = vcombine.high %v1946, %v1946
    %v1949 = vcombine.high %v1085, %v1085
    %v1951 = vunpack.c.l.s4 1983009808
    %v1952 = vunpack.c.0.s8 %v1951
    %v1953 = vlaneseq
    %v1954 = vshrl.u32 %v1953, 7
    %v1955 = vsub.s32 %v1952, %v1954
    %v1956 = vrot.slane %v1085, %v1955
    %v1958 = vunpack.c.l.s4 1983009808
    %v1959 = vunpack.c.0.s8 %v1958
    %v1960 = vlaneseq
    %v1961 = vshrl.u32 %v1960, 7
    %v1962 = vsub.s32 %v1959, %v1961
    %v1963 = vrot.slane %v1949, %v1962
    %v1964 = vcombine.high %v1956, %v1956
    %v1965 = vcombine.high %v1963, %v1963
    %v1966 = vcombine.high %v1086, %v1086
    %v1968 = vunpack.c.l.s4 1983009808
    %v1969 = vunpack.c.0.s8 %v1968
    %v1970 = vlaneseq
    %v1971 = vshrl.u32 %v1970, 7
    %v1972 = vsub.s32 %v1969, %v1971
    %v1973 = vrot.slane %v1086, %v1972
    %v1975 = vunpack.c.l.s4 1983009808
    %v1976 = vunpack.c.0.s8 %v1975
    %v1977 = vlaneseq
    %v1978 = vshrl.u32 %v1977, 7
    %v1979 = vsub.s32 %v1976, %v1978
    %v1980 = vrot.slane %v1966, %v1979
    %v1981 = vcombine.high %v1973, %v1973
    %v1982 = vcombine.high %v1980, %v1980
    %v1983 = vcombine.high %v1087, %v1087
    %v1985 = vunpack.c.l.s4 1983009808
    %v1986 = vunpack.c.0.s8 %v1985
    %v1987 = vlaneseq
    %v1988 = vshrl.u32 %v1987, 7
    %v1989 = vsub.s32 %v1986, %v1988
    %v1990 = vrot.slane %v1087, %v1989
    %v1992 = vunpack.c.l.s4 1983009808
    %v1993 = vunpack.c.0.s8 %v1992
    %v1994 = vlaneseq
    %v1995 = vshrl.u32 %v1994, 7
    %v1996 = vsub.s32 %v1993, %v1995
    %v1997 = vrot.slane %v1983, %v1996
    %v1998 = vcombine.high %v1990, %v1990
    %v1999 = vcombine.high %v1997, %v1997
    %v2000 = vcombine.high %v1088, %v1088
    %v2002 = vunpack.c.l.s4 1983009808
    %v2003 = vunpack.c.0.s8 %v2002
    %v2004 = vlaneseq
    %v2005 = vshrl.u32 %v2004, 7
    %v2006 = vsub.s32 %v2003, %v2005
    %v2007 = vrot.slane %v1088, %v2006
    %v2009 = vunpack.c.l.s4 1983009808
    %v2010 = vunpack.c.0.s8 %v2009
    %v2011 = vlaneseq
    %v2012 = vshrl.u32 %v2011, 7
    %v2013 = vsub.s32 %v2010, %v2012
    %v2014 = vrot.slane %v2000, %v2013
    %v2015 = vcombine.high %v2007, %v2007
    %v2016 = vcombine.high %v2014, %v2014
    %v2017 = vcombine.high %v1089, %v1089
    %v2019 = vunpack.c.l.s4 1983009808
    %v2020 = vunpack.c.0.s8 %v2019
    %v2021 = vlaneseq
    %v2022 = vshrl.u32 %v2021, 7
    %v2023 = vsub.s32 %v2020, %v2022
    %v2024 = vrot.slane %v1089, %v2023
    %v2026 = vunpack.c.l.s4 1983009808
    %v2027 = vunpack.c.0.s8 %v2026
    %v2028 = vlaneseq
    %v2029 = vshrl.u32 %v2028, 7
    %v2030 = vsub.s32 %v2027, %v2029
    %v2031 = vrot.slane %v2017, %v2030
    %v2032 = vcombine.high %v2024, %v2024
    %v2033 = vcombine.high %v2031, %v2031
    %v2034 = vcombine.high %v1090, %v1090
    %v2036 = vunpack.c.l.s4 1983009808
    %v2037 = vunpack.c.0.s8 %v2036
    %v2038 = vlaneseq
    %v2039 = vshrl.u32 %v2038, 7
    %v2040 = vsub.s32 %v2037, %v2039
    %v2041 = vrot.slane %v1090, %v2040
    %v2043 = vunpack.c.l.s4 1983009808
    %v2044 = vunpack.c.0.s8 %v2043
    %v2045 = vlaneseq
    %v2046 = vshrl.u32 %v2045, 7
    %v2047 = vsub.s32 %v2044, %v2046
    %v2048 = vrot.slane %v2034, %v2047
    %v2049 = vcombine.high %v2041, %v2041
    %v2050 = vcombine.high %v2048, %v2048
    %v2051 = vcombine.high %v1091, %v1091
    %v2053 = vunpack.c.l.s4 1983009808
    %v2054 = vunpack.c.0.s8 %v2053
    %v2055 = vlaneseq
    %v2056 = vshrl.u32 %v2055, 7
    %v2057 = vsub.s32 %v2054, %v2056
    %v2058 = vrot.slane %v1091, %v2057
    %v2060 = vunpack.c.l.s4 1983009808
    %v2061 = vunpack.c.0.s8 %v2060
    %v2062 = vlaneseq
    %v2063 = vshrl.u32 %v2062, 7
    %v2064 = vsub.s32 %v2061, %v2063
    %v2065 = vrot.slane %v2051, %v2064
    %v2066 = vcombine.high %v2058, %v2058
    %v2067 = vcombine.high %v2065, %v2065
    %v2068 = vcombine.high %v1092, %v1092
    %v2070 = vunpack.c.l.s4 1983009808
    %v2071 = vunpack.c.0.s8 %v2070
    %v2072 = vlaneseq
    %v2073 = vshrl.u32 %v2072, 7
    %v2074 = vsub.s32 %v2071, %v2073
    %v2075 = vrot.slane %v1092, %v2074
    %v2077 = vunpack.c.l.s4 1983009808
    %v2078 = vunpack.c.0.s8 %v2077
    %v2079 = vlaneseq
    %v2080 = vshrl.u32 %v2079, 7
    %v2081 = vsub.s32 %v2078, %v2080
    %v2082 = vrot.slane %v2068, %v2081
    %v2083 = vcombine.high %v2075, %v2075
    %v2084 = vcombine.high %v2082, %v2082
    %v2085 = vcombine.high %v1093, %v1093
    %v2087 = vunpack.c.l.s4 1983009808
    %v2088 = vunpack.c.0.s8 %v2087
    %v2089 = vlaneseq
    %v2090 = vshrl.u32 %v2089, 7
    %v2091 = vsub.s32 %v2088, %v2090
    %v2092 = vrot.slane %v1093, %v2091
    %v2094 = vunpack.c.l.s4 1983009808
    %v2095 = vunpack.c.0.s8 %v2094
    %v2096 = vlaneseq
    %v2097 = vshrl.u32 %v2096, 7
    %v2098 = vsub.s32 %v2095, %v2097
    %v2099 = vrot.slane %v2085, %v2098
    %v2100 = vcombine.high %v2092, %v2092
    %v2101 = vcombine.high %v2099, %v2099
    %v2102 = vcombine.high %v1094, %v1094
    %v2104 = vunpack.c.l.s4 1983009808
    %v2105 = vunpack.c.0.s8 %v2104
    %v2106 = vlaneseq
    %v2107 = vshrl.u32 %v2106, 7
    %v2108 = vsub.s32 %v2105, %v2107
    %v2109 = vrot.slane %v1094, %v2108
    %v2111 = vunpack.c.l.s4 1983009808
    %v2112 = vunpack.c.0.s8 %v2111
    %v2113 = vlaneseq
    %v2114 = vshrl.u32 %v2113, 7
    %v2115 = vsub.s32 %v2112, %v2114
    %v2116 = vrot.slane %v2102, %v2115
    %v2117 = vcombine.high %v2109, %v2109
    %v2118 = vcombine.high %v2116, %v2116
    %v2119 = vcombine.high %v1095, %v1095
    %v2121 = vunpack.c.l.s4 1983009808
    %v2122 = vunpack.c.0.s8 %v2121
    %v2123 = vlaneseq
    %v2124 = vshrl.u32 %v2123, 7
    %v2125 = vsub.s32 %v2122, %v2124
    %v2126 = vrot.slane %v1095, %v2125
    %v2128 = vunpack.c.l.s4 1983009808
    %v2129 = vunpack.c.0.s8 %v2128
    %v2130 = vlaneseq
    %v2131 = vshrl.u32 %v2130, 7
    %v2132 = vsub.s32 %v2129, %v2131
    %v2133 = vrot.slane %v2119, %v2132
    %v2134 = vcombine.high %v2126, %v2126
    %v2135 = vcombine.high %v2133, %v2133
    %v2136 = vcombine.high %v1096, %v1096
    %v2138 = vunpack.c.l.s4 1983009808
    %v2139 = vunpack.c.0.s8 %v2138
    %v2140 = vlaneseq
    %v2141 = vshrl.u32 %v2140, 7
    %v2142 = vsub.s32 %v2139, %v2141
    %v2143 = vrot.slane %v1096, %v2142
    %v2145 = vunpack.c.l.s4 1983009808
    %v2146 = vunpack.c.0.s8 %v2145
    %v2147 = vlaneseq
    %v2148 = vshrl.u32 %v2147, 7
    %v2149 = vsub.s32 %v2146, %v2148
    %v2150 = vrot.slane %v2136, %v2149
    %v2151 = vcombine.high %v2143, %v2143
    %v2152 = vcombine.high %v2150, %v2150
    %v2153 = vcombine.high %v1097, %v1097
    %v2155 = vunpack.c.l.s4 1983009808
    %v2156 = vunpack.c.0.s8 %v2155
    %v2157 = vlaneseq
    %v2158 = vshrl.u32 %v2157, 7
    %v2159 = vsub.s32 %v2156, %v2158
    %v2160 = vrot.slane %v1097, %v2159
    %v2162 = vunpack.c.l.s4 1983009808
    %v2163 = vunpack.c.0.s8 %v2162
    %v2164 = vlaneseq
    %v2165 = vshrl.u32 %v2164, 7
    %v2166 = vsub.s32 %v2163, %v2165
    %v2167 = vrot.slane %v2153, %v2166
    %v2168 = vcombine.high %v2160, %v2160
    %v2169 = vcombine.high %v2167, %v2167
    %v2170 = vcombine.high %v1098, %v1098
    %v2172 = vunpack.c.l.s4 1983009808
    %v2173 = vunpack.c.0.s8 %v2172
    %v2174 = vlaneseq
    %v2175 = vshrl.u32 %v2174, 7
    %v2176 = vsub.s32 %v2173, %v2175
    %v2177 = vrot.slane %v1098, %v2176
    %v2179 = vunpack.c.l.s4 1983009808
    %v2180 = vunpack.c.0.s8 %v2179
    %v2181 = vlaneseq
    %v2182 = vshrl.u32 %v2181, 7
    %v2183 = vsub.s32 %v2180, %v2182
    %v2184 = vrot.slane %v2170, %v2183
    %v2185 = vcombine.high %v2177, %v2177
    %v2186 = vcombine.high %v2184, %v2184
    %v2187 = vcombine.high %v1099, %v1099
    %v2189 = vunpack.c.l.s4 1983009808
    %v2190 = vunpack.c.0.s8 %v2189
    %v2191 = vlaneseq
    %v2192 = vshrl.u32 %v2191, 7
    %v2193 = vsub.s32 %v2190, %v2192
    %v2194 = vrot.slane %v1099, %v2193
    %v2196 = vunpack.c.l.s4 1983009808
    %v2197 = vunpack.c.0.s8 %v2196
    %v2198 = vlaneseq
    %v2199 = vshrl.u32 %v2198, 7
    %v2200 = vsub.s32 %v2197, %v2199
    %v2201 = vrot.slane %v2187, %v2200
    %v2202 = vcombine.high %v2194, %v2194
    %v2203 = vcombine.high %v2201, %v2201
    %v2204 = vcombine.high %v1100, %v1100
    %v2206 = vunpack.c.l.s4 1983009808
    %v2207 = vunpack.c.0.s8 %v2206
    %v2208 = vlaneseq
    %v2209 = vshrl.u32 %v2208, 7
    %v2210 = vsub.s32 %v2207, %v2209
    %v2211 = vrot.slane %v1100, %v2210
    %v2213 = vunpack.c.l.s4 1983009808
    %v2214 = vunpack.c.0.s8 %v2213
    %v2215 = vlaneseq
    %v2216 = vshrl.u32 %v2215, 7
    %v2217 = vsub.s32 %v2214, %v2216
    %v2218 = vrot.slane %v2204, %v2217
    %v2219 = vcombine.high %v2211, %v2211
    %v2220 = vcombine.high %v2218, %v2218
    %v2221 = vcombine.high %v1101, %v1101
    %v2223 = vunpack.c.l.s4 1983009808
    %v2224 = vunpack.c.0.s8 %v2223
    %v2225 = vlaneseq
    %v2226 = vshrl.u32 %v2225, 7
    %v2227 = vsub.s32 %v2224, %v2226
    %v2228 = vrot.slane %v1101, %v2227
    %v2230 = vunpack.c.l.s4 1983009808
    %v2231 = vunpack.c.0.s8 %v2230
    %v2232 = vlaneseq
    %v2233 = vshrl.u32 %v2232, 7
    %v2234 = vsub.s32 %v2231, %v2233
    %v2235 = vrot.slane %v2221, %v2234
    %v2236 = vcombine.high %v2228, %v2228
    %v2237 = vcombine.high %v2235, %v2235
    %v2238 = vcombine.high %v1102, %v1102
    %v2240 = vunpack.c.l.s4 1983009808
    %v2241 = vunpack.c.0.s8 %v2240
    %v2242 = vlaneseq
    %v2243 = vshrl.u32 %v2242, 7
    %v2244 = vsub.s32 %v2241, %v2243
    %v2245 = vrot.slane %v1102, %v2244
    %v2247 = vunpack.c.l.s4 1983009808
    %v2248 = vunpack.c.0.s8 %v2247
    %v2249 = vlaneseq
    %v2250 = vshrl.u32 %v2249, 7
    %v2251 = vsub.s32 %v2248, %v2250
    %v2252 = vrot.slane %v2238, %v2251
    %v2253 = vcombine.high %v2245, %v2245
    %v2254 = vcombine.high %v2252, %v2252
    %vm2511 = vcmask 254976
    %v2512 = vsel %vm2511, %v1174, -inf
    %v2513 = vsel %vm2511, %v1182, -inf
    %v2514 = vmax.f32 %v2512, %v2513
    %v2515 = vsel %vm2511, %v1181, -inf
    %v2516 = vsel %vm2511, %v1183, -inf
    %v2517 = vmax.f32 %v2515, %v2516
    %v2518 = vsel %vm2511, %v1191, -inf
    %v2519 = vsel %vm2511, %v1199, -inf
    %v2520 = vmax.f32 %v2518, %v2519
    %v2521 = vsel %vm2511, %v1198, -inf
    %v2522 = vsel %vm2511, %v1200, -inf
    %v2523 = vmax.f32 %v2521, %v2522
    %v2524 = vsel %vm2511, %v1208, -inf
    %v2525 = vsel %vm2511, %v1216, -inf
    %v2526 = vmax.f32 %v2524, %v2525
    %v2527 = vsel %vm2511, %v1215, -inf
    %v2528 = vsel %vm2511, %v1217, -inf
    %v2529 = vmax.f32 %v2527, %v2528
    %v2530 = vsel %vm2511, %v1225, -inf
    %v2531 = vsel %vm2511, %v1233, -inf
    %v2532 = vmax.f32 %v2530, %v2531
    %v2533 = vsel %vm2511, %v1232, -inf
    %v2534 = vsel %vm2511, %v1234, -inf
    %v2535 = vmax.f32 %v2533, %v2534
    %v2536 = vsel %vm2511, %v1242, -inf
    %v2537 = vsel %vm2511, %v1250, -inf
    %v2538 = vmax.f32 %v2536, %v2537
    %v2539 = vsel %vm2511, %v1249, -inf
    %v2540 = vsel %vm2511, %v1251, -inf
    %v2541 = vmax.f32 %v2539, %v2540
    %v2542 = vsel %vm2511, %v1259, -inf
    %v2543 = vsel %vm2511, %v1267, -inf
    %v2544 = vmax.f32 %v2542, %v2543
    %v2545 = vsel %vm2511, %v1266, -inf
    %v2546 = vsel %vm2511, %v1268, -inf
    %v2547 = vmax.f32 %v2545, %v2546
    %v2548 = vsel %vm2511, %v1276, -inf
    %v2549 = vsel %vm2511, %v1284, -inf
    %v2550 = vmax.f32 %v2548, %v2549
    %v2551 = vsel %vm2511, %v1283, -inf
    %v2552 = vsel %vm2511, %v1285, -inf
    %v2553 = vmax.f32 %v2551, %v2552
    %v2554 = vsel %vm2511, %v1293, -inf
    %v2555 = vsel %vm2511, %v1301, -inf
    %v2556 = vmax.f32 %v2554, %v2555
    %v2557 = vsel %vm2511, %v1300, -inf
    %v2558 = vsel %vm2511, %v1302, -inf
    %v2559 = vmax.f32 %v2557, %v2558
    %v2560 = vsel %vm2511, %v1310, -inf
    %v2561 = vsel %vm2511, %v1318, -inf
    %v2562 = vmax.f32 %v2560, %v2561
    %v2563 = vsel %vm2511, %v1317, -inf
    %v2564 = vsel %vm2511, %v1319, -inf
    %v2565 = vmax.f32 %v2563, %v2564
    %v2566 = vsel %vm2511, %v1327, -inf
    %v2567 = vsel %vm2511, %v1335, -inf
    %v2568 = vmax.f32 %v2566, %v2567
    %v2569 = vsel %vm2511, %v1334, -inf
    %v2570 = vsel %vm2511, %v1336, -inf
    %v2571 = vmax.f32 %v2569, %v2570
    %v2572 = vsel %vm2511, %v1344, -inf
    %v2573 = vsel %vm2511, %v1352, -inf
    %v2574 = vmax.f32 %v2572, %v2573
    %v2575 = vsel %vm2511, %v1351, -inf
    %v2576 = vsel %vm2511, %v1353, -inf
    %v2577 = vmax.f32 %v2575, %v2576
    %v2578 = vsel %vm2511, %v1361, -inf
    %v2579 = vsel %vm2511, %v1369, -inf
    %v2580 = vmax.f32 %v2578, %v2579
    %v2581 = vsel %vm2511, %v1368, -inf
    %v2582 = vsel %vm2511, %v1370, -inf
    %v2583 = vmax.f32 %v2581, %v2582
    %v2584 = vsel %vm2511, %v1378, -inf
    %v2585 = vsel %vm2511, %v1386, -inf
    %v2586 = vmax.f32 %v2584, %v2585
    %v2587 = vsel %vm2511, %v1385, -inf
    %v2588 = vsel %vm2511, %v1387, -inf
    %v2589 = vmax.f32 %v2587, %v2588
    %v2590 = vsel %vm2511, %v1395, -inf
    %v2591 = vsel %vm2511, %v1403, -inf
    %v2592 = vmax.f32 %v2590, %v2591
    %v2593 = vsel %vm2511, %v1402, -inf
    %v2594 = vsel %vm2511, %v1404, -inf
    %v2595 = vmax.f32 %v2593, %v2594
    %v2596 = vsel %vm2511, %v1412, -inf
    %v2597 = vsel %vm2511, %v1420, -inf
    %v2598 = vmax.f32 %v2596, %v2597
    %v2599 = vsel %vm2511, %v1419, -inf
    %v2600 = vsel %vm2511, %v1421, -inf
    %v2601 = vmax.f32 %v2599, %v2600
    %v2602 = vsel %vm2511, %v1429, -inf
    %v2603 = vsel %vm2511, %v1437, -inf
    %v2604 = vmax.f32 %v2602, %v2603
    %v2605 = vsel %vm2511, %v1436, -inf
    %v2606 = vsel %vm2511, %v1438, -inf
    %v2607 = vmax.f32 %v2605, %v2606
    %v2608 = vsel %vm2511, %v1446, -inf
    %v2609 = vsel %vm2511, %v1454, -inf
    %v2610 = vmax.f32 %v2608, %v2609
    %v2611 = vsel %vm2511, %v1453, -inf
    %v2612 = vsel %vm2511, %v1455, -inf
    %v2613 = vmax.f32 %v2611, %v2612
    %v2614 = vsel %vm2511, %v1463, -inf
    %v2615 = vsel %vm2511, %v1471, -inf
    %v2616 = vmax.f32 %v2614, %v2615
    %v2617 = vsel %vm2511, %v1470, -inf
    %v2618 = vsel %vm2511, %v1472, -inf
    %v2619 = vmax.f32 %v2617, %v2618
    %v2620 = vsel %vm2511, %v1480, -inf
    %v2621 = vsel %vm2511, %v1488, -inf
    %v2622 = vmax.f32 %v2620, %v2621
    %v2623 = vsel %vm2511, %v1487, -inf
    %v2624 = vsel %vm2511, %v1489, -inf
    %v2625 = vmax.f32 %v2623, %v2624
    %v2626 = vsel %vm2511, %v1497, -inf
    %v2627 = vsel %vm2511, %v1505, -inf
    %v2628 = vmax.f32 %v2626, %v2627
    %v2629 = vsel %vm2511, %v1504, -inf
    %v2630 = vsel %vm2511, %v1506, -inf
    %v2631 = vmax.f32 %v2629, %v2630
    %v2632 = vsel %vm2511, %v1514, -inf
    %v2633 = vsel %vm2511, %v1522, -inf
    %v2634 = vmax.f32 %v2632, %v2633
    %v2635 = vsel %vm2511, %v1521, -inf
    %v2636 = vsel %vm2511, %v1523, -inf
    %v2637 = vmax.f32 %v2635, %v2636
    %v2638 = vsel %vm2511, %v1531, -inf
    %v2639 = vsel %vm2511, %v1539, -inf
    %v2640 = vmax.f32 %v2638, %v2639
    %v2641 = vsel %vm2511, %v1538, -inf
    %v2642 = vsel %vm2511, %v1540, -inf
    %v2643 = vmax.f32 %v2641, %v2642
    %v2644 = vsel %vm2511, %v1548, -inf
    %v2645 = vsel %vm2511, %v1556, -inf
    %v2646 = vmax.f32 %v2644, %v2645
    %v2647 = vsel %vm2511, %v1555, -inf
    %v2648 = vsel %vm2511, %v1557, -inf
    %v2649 = vmax.f32 %v2647, %v2648
    %v2650 = vsel %vm2511, %v1565, -inf
    %v2651 = vsel %vm2511, %v1573, -inf
    %v2652 = vmax.f32 %v2650, %v2651
    %v2653 = vsel %vm2511, %v1572, -inf
    %v2654 = vsel %vm2511, %v1574, -inf
    %v2655 = vmax.f32 %v2653, %v2654
    %v2656 = vsel %vm2511, %v1582, -inf
    %v2657 = vsel %vm2511, %v1590, -inf
    %v2658 = vmax.f32 %v2656, %v2657
    %v2659 = vsel %vm2511, %v1589, -inf
    %v2660 = vsel %vm2511, %v1591, -inf
    %v2661 = vmax.f32 %v2659, %v2660
    %v2662 = vsel %vm2511, %v1599, -inf
    %v2663 = vsel %vm2511, %v1607, -inf
    %v2664 = vmax.f32 %v2662, %v2663
    %v2665 = vsel %vm2511, %v1606, -inf
    %v2666 = vsel %vm2511, %v1608, -inf
    %v2667 = vmax.f32 %v2665, %v2666
    %v2668 = vsel %vm2511, %v1616, -inf
    %v2669 = vsel %vm2511, %v1624, -inf
    %v2670 = vmax.f32 %v2668, %v2669
    %v2671 = vsel %vm2511, %v1623, -inf
    %v2672 = vsel %vm2511, %v1625, -inf
    %v2673 = vmax.f32 %v2671, %v2672
    %v2674 = vsel %vm2511, %v1633, -inf
    %v2675 = vsel %vm2511, %v1641, -inf
    %v2676 = vmax.f32 %v2674, %v2675
    %v2677 = vsel %vm2511, %v1640, -inf
    %v2678 = vsel %vm2511, %v1642, -inf
    %v2679 = vmax.f32 %v2677, %v2678
    %v2680 = vsel %vm2511, %v1650, -inf
    %v2681 = vsel %vm2511, %v1658, -inf
    %v2682 = vmax.f32 %v2680, %v2681
    %v2683 = vsel %vm2511, %v1657, -inf
    %v2684 = vsel %vm2511, %v1659, -inf
    %v2685 = vmax.f32 %v2683, %v2684
    %v2686 = vsel %vm2511, %v1667, -inf
    %v2687 = vsel %vm2511, %v1675, -inf
    %v2688 = vmax.f32 %v2686, %v2687
    %v2689 = vsel %vm2511, %v1674, -inf
    %v2690 = vsel %vm2511, %v1676, -inf
    %v2691 = vmax.f32 %v2689, %v2690
    %v2692 = vsel %vm2511, %v1684, -inf
    %v2693 = vsel %vm2511, %v1692, -inf
    %v2694 = vmax.f32 %v2692, %v2693
    %v2695 = vsel %vm2511, %v1691, -inf
    %v2696 = vsel %vm2511, %v1693, -inf
    %v2697 = vmax.f32 %v2695, %v2696
    %v2698 = vsel %vm2511, %v1701, -inf
    %v2699 = vsel %vm2511, %v1709, -inf
    %v2700 = vmax.f32 %v2698, %v2699
    %v2701 = vsel %vm2511, %v1708, -inf
    %v2702 = vsel %vm2511, %v1710, -inf
    %v2703 = vmax.f32 %v2701, %v2702
    %v2704 = vsel %vm2511, %v1718, -inf
    %v2705 = vsel %vm2511, %v1726, -inf
    %v2706 = vmax.f32 %v2704, %v2705
    %v2707 = vsel %vm2511, %v1725, -inf
    %v2708 = vsel %vm2511, %v1727, -inf
    %v2709 = vmax.f32 %v2707, %v2708
    %v2710 = vsel %vm2511, %v1735, -inf
    %v2711 = vsel %vm2511, %v1743, -inf
    %v2712 = vmax.f32 %v2710, %v2711
    %v2713 = vsel %vm2511, %v1742, -inf
    %v2714 = vsel %vm2511, %v1744, -inf
    %v2715 = vmax.f32 %v2713, %v2714
    %v2716 = vsel %vm2511, %v1752, -inf
    %v2717 = vsel %vm2511, %v1760, -inf
    %v2718 = vmax.f32 %v2716, %v2717
    %v2719 = vsel %vm2511, %v1759, -inf
    %v2720 = vsel %vm2511, %v1761, -inf
    %v2721 = vmax.f32 %v2719, %v2720
    %v2722 = vsel %vm2511, %v1769, -inf
    %v2723 = vsel %vm2511, %v1777, -inf
    %v2724 = vmax.f32 %v2722, %v2723
    %v2725 = vsel %vm2511, %v1776, -inf
    %v2726 = vsel %vm2511, %v1778, -inf
    %v2727 = vmax.f32 %v2725, %v2726
    %v2728 = vsel %vm2511, %v1786, -inf
    %v2729 = vsel %vm2511, %v1794, -inf
    %v2730 = vmax.f32 %v2728, %v2729
    %v2731 = vsel %vm2511, %v1793, -inf
    %v2732 = vsel %vm2511, %v1795, -inf
    %v2733 = vmax.f32 %v2731, %v2732
    %v2734 = vsel %vm2511, %v1803, -inf
    %v2735 = vsel %vm2511, %v1811, -inf
    %v2736 = vmax.f32 %v2734, %v2735
    %v2737 = vsel %vm2511, %v1810, -inf
    %v2738 = vsel %vm2511, %v1812, -inf
    %v2739 = vmax.f32 %v2737, %v2738
    %v2740 = vsel %vm2511, %v1820, -inf
    %v2741 = vsel %vm2511, %v1828, -inf
    %v2742 = vmax.f32 %v2740, %v2741
    %v2743 = vsel %vm2511, %v1827, -inf
    %v2744 = vsel %vm2511, %v1829, -inf
    %v2745 = vmax.f32 %v2743, %v2744
    %v2746 = vsel %vm2511, %v1837, -inf
    %v2747 = vsel %vm2511, %v1845, -inf
    %v2748 = vmax.f32 %v2746, %v2747
    %v2749 = vsel %vm2511, %v1844, -inf
    %v2750 = vsel %vm2511, %v1846, -inf
    %v2751 = vmax.f32 %v2749, %v2750
    %v2752 = vsel %vm2511, %v1854, -inf
    %v2753 = vsel %vm2511, %v1862, -inf
    %v2754 = vmax.f32 %v2752, %v2753
    %v2755 = vsel %vm2511, %v1861, -inf
    %v2756 = vsel %vm2511, %v1863, -inf
    %v2757 = vmax.f32 %v2755, %v2756
    %v2758 = vsel %vm2511, %v1871, -inf
    %v2759 = vsel %vm2511, %v1879, -inf
    %v2760 = vmax.f32 %v2758, %v2759
    %v2761 = vsel %vm2511, %v1878, -inf
    %v2762 = vsel %vm2511, %v1880, -inf
    %v2763 = vmax.f32 %v2761, %v2762
    %v2764 = vsel %vm2511, %v1888, -inf
    %v2765 = vsel %vm2511, %v1896, -inf
    %v2766 = vmax.f32 %v2764, %v2765
    %v2767 = vsel %vm2511, %v1895, -inf
    %v2768 = vsel %vm2511, %v1897, -inf
    %v2769 = vmax.f32 %v2767, %v2768
    %v2770 = vsel %vm2511, %v1905, -inf
    %v2771 = vsel %vm2511, %v1913, -inf
    %v2772 = vmax.f32 %v2770, %v2771
    %v2773 = vsel %vm2511, %v1912, -inf
    %v2774 = vsel %vm2511, %v1914, -inf
    %v2775 = vmax.f32 %v2773, %v2774
    %v2776 = vsel %vm2511, %v1922, -inf
    %v2777 = vsel %vm2511, %v1930, -inf
    %v2778 = vmax.f32 %v2776, %v2777
    %v2779 = vsel %vm2511, %v1929, -inf
    %v2780 = vsel %vm2511, %v1931, -inf
    %v2781 = vmax.f32 %v2779, %v2780
    %v2782 = vsel %vm2511, %v1939, -inf
    %v2783 = vsel %vm2511, %v1947, -inf
    %v2784 = vmax.f32 %v2782, %v2783
    %v2785 = vsel %vm2511, %v1946, -inf
    %v2786 = vsel %vm2511, %v1948, -inf
    %v2787 = vmax.f32 %v2785, %v2786
    %v2788 = vsel %vm2511, %v1956, -inf
    %v2789 = vsel %vm2511, %v1964, -inf
    %v2790 = vmax.f32 %v2788, %v2789
    %v2791 = vsel %vm2511, %v1963, -inf
    %v2792 = vsel %vm2511, %v1965, -inf
    %v2793 = vmax.f32 %v2791, %v2792
    %v2794 = vsel %vm2511, %v1973, -inf
    %v2795 = vsel %vm2511, %v1981, -inf
    %v2796 = vmax.f32 %v2794, %v2795
    %v2797 = vsel %vm2511, %v1980, -inf
    %v2798 = vsel %vm2511, %v1982, -inf
    %v2799 = vmax.f32 %v2797, %v2798
    %v2800 = vsel %vm2511, %v1990, -inf
    %v2801 = vsel %vm2511, %v1998, -inf
    %v2802 = vmax.f32 %v2800, %v2801
    %v2803 = vsel %vm2511, %v1997, -inf
    %v2804 = vsel %vm2511, %v1999, -inf
    %v2805 = vmax.f32 %v2803, %v2804
    %v2806 = vsel %vm2511, %v2007, -inf
    %v2807 = vsel %vm2511, %v2015, -inf
    %v2808 = vmax.f32 %v2806, %v2807
    %v2809 = vsel %vm2511, %v2014, -inf
    %v2810 = vsel %vm2511, %v2016, -inf
    %v2811 = vmax.f32 %v2809, %v2810
    %v2812 = vsel %vm2511, %v2024, -inf
    %v2813 = vsel %vm2511, %v2032, -inf
    %v2814 = vmax.f32 %v2812, %v2813
    %v2815 = vsel %vm2511, %v2031, -inf
    %v2816 = vsel %vm2511, %v2033, -inf
    %v2817 = vmax.f32 %v2815, %v2816
    %v2818 = vsel %vm2511, %v2041, -inf
    %v2819 = vsel %vm2511, %v2049, -inf
    %v2820 = vmax.f32 %v2818, %v2819
    %v2821 = vsel %vm2511, %v2048, -inf
    %v2822 = vsel %vm2511, %v2050, -inf
    %v2823 = vmax.f32 %v2821, %v2822
    %v2824 = vsel %vm2511, %v2058, -inf
    %v2825 = vsel %vm2511, %v2066, -inf
    %v2826 = vmax.f32 %v2824, %v2825
    %v2827 = vsel %vm2511, %v2065, -inf
    %v2828 = vsel %vm2511, %v2067, -inf
    %v2829 = vmax.f32 %v2827, %v2828
    %v2830 = vsel %vm2511, %v2075, -inf
    %v2831 = vsel %vm2511, %v2083, -inf
    %v2832 = vmax.f32 %v2830, %v2831
    %v2833 = vsel %vm2511, %v2082, -inf
    %v2834 = vsel %vm2511, %v2084, -inf
    %v2835 = vmax.f32 %v2833, %v2834
    %v2836 = vsel %vm2511, %v2092, -inf
    %v2837 = vsel %vm2511, %v2100, -inf
    %v2838 = vmax.f32 %v2836, %v2837
    %v2839 = vsel %vm2511, %v2099, -inf
    %v2840 = vsel %vm2511, %v2101, -inf
    %v2841 = vmax.f32 %v2839, %v2840
    %v2842 = vsel %vm2511, %v2109, -inf
    %v2843 = vsel %vm2511, %v2117, -inf
    %v2844 = vmax.f32 %v2842, %v2843
    %v2845 = vsel %vm2511, %v2116, -inf
    %v2846 = vsel %vm2511, %v2118, -inf
    %v2847 = vmax.f32 %v2845, %v2846
    %v2848 = vsel %vm2511, %v2126, -inf
    %v2849 = vsel %vm2511, %v2134, -inf
    %v2850 = vmax.f32 %v2848, %v2849
    %v2851 = vsel %vm2511, %v2133, -inf
    %v2852 = vsel %vm2511, %v2135, -inf
    %v2853 = vmax.f32 %v2851, %v2852
    %v2854 = vsel %vm2511, %v2143, -inf
    %v2855 = vsel %vm2511, %v2151, -inf
    %v2856 = vmax.f32 %v2854, %v2855
    %v2857 = vsel %vm2511, %v2150, -inf
    %v2858 = vsel %vm2511, %v2152, -inf
    %v2859 = vmax.f32 %v2857, %v2858
    %v2860 = vsel %vm2511, %v2160, -inf
    %v2861 = vsel %vm2511, %v2168, -inf
    %v2862 = vmax.f32 %v2860, %v2861
    %v2863 = vsel %vm2511, %v2167, -inf
    %v2864 = vsel %vm2511, %v2169, -inf
    %v2865 = vmax.f32 %v2863, %v2864
    %v2866 = vsel %vm2511, %v2177, -inf
    %v2867 = vsel %vm2511, %v2185, -inf
    %v2868 = vmax.f32 %v2866, %v2867
    %v2869 = vsel %vm2511, %v2184, -inf
    %v2870 = vsel %vm2511, %v2186, -inf
    %v2871 = vmax.f32 %v2869, %v2870
    %v2872 = vsel %vm2511, %v2194, -inf
    %v2873 = vsel %vm2511, %v2202, -inf
    %v2874 = vmax.f32 %v2872, %v2873
    %v2875 = vsel %vm2511, %v2201, -inf
    %v2876 = vsel %vm2511, %v2203, -inf
    %v2877 = vmax.f32 %v2875, %v2876
    %v2878 = vsel %vm2511, %v2211, -inf
    %v2879 = vsel %vm2511, %v2219, -inf
    %v2880 = vmax.f32 %v2878, %v2879
    %v2881 = vsel %vm2511, %v2218, -inf
    %v2882 = vsel %vm2511, %v2220, -inf
    %v2883 = vmax.f32 %v2881, %v2882
    %v2884 = vsel %vm2511, %v2228, -inf
    %v2885 = vsel %vm2511, %v2236, -inf
    %v2886 = vmax.f32 %v2884, %v2885
    %v2887 = vsel %vm2511, %v2235, -inf
    %v2888 = vsel %vm2511, %v2237, -inf
    %v2889 = vmax.f32 %v2887, %v2888
    %v2890 = vsel %vm2511, %v2245, -inf
    %v2891 = vsel %vm2511, %v2253, -inf
    %v2892 = vmax.f32 %v2890, %v2891
    %v2893 = vsel %vm2511, %v2252, -inf
    %v2894 = vsel %vm2511, %v2254, -inf
    %v2895 = vmax.f32 %v2893, %v2894
    %v2896 = vsel %vm2511, %v2514, -inf
    %v2897 = vsel %vm2511, %v2538, -inf
    %v2898 = vmax.f32 %v2896, %v2897
    %v2899 = vsel %vm2511, %v2517, -inf
    %v2900 = vsel %vm2511, %v2541, -inf
    %v2901 = vmax.f32 %v2899, %v2900
    %v2902 = vsel %vm2511, %v2520, -inf
    %v2903 = vsel %vm2511, %v2544, -inf
    %v2904 = vmax.f32 %v2902, %v2903
    %v2905 = vsel %vm2511, %v2523, -inf
    %v2906 = vsel %vm2511, %v2547, -inf
    %v2907 = vmax.f32 %v2905, %v2906
    %v2908 = vsel %vm2511, %v2526, -inf
    %v2909 = vsel %vm2511, %v2550, -inf
    %v2910 = vmax.f32 %v2908, %v2909
    %v2911 = vsel %vm2511, %v2529, -inf
    %v2912 = vsel %vm2511, %v2553, -inf
    %v2913 = vmax.f32 %v2911, %v2912
    %v2914 = vsel %vm2511, %v2532, -inf
    %v2915 = vsel %vm2511, %v2556, -inf
    %v2916 = vmax.f32 %v2914, %v2915
    %v2917 = vsel %vm2511, %v2535, -inf
    %v2918 = vsel %vm2511, %v2559, -inf
    %v2919 = vmax.f32 %v2917, %v2918
    %v2920 = vsel %vm2511, %v2562, -inf
    %v2921 = vsel %vm2511, %v2586, -inf
    %v2922 = vmax.f32 %v2920, %v2921
    %v2923 = vsel %vm2511, %v2565, -inf
    %v2924 = vsel %vm2511, %v2589, -inf
    %v2925 = vmax.f32 %v2923, %v2924
    %v2926 = vsel %vm2511, %v2568, -inf
    %v2927 = vsel %vm2511, %v2592, -inf
    %v2928 = vmax.f32 %v2926, %v2927
    %v2929 = vsel %vm2511, %v2571, -inf
    %v2930 = vsel %vm2511, %v2595, -inf
    %v2931 = vmax.f32 %v2929, %v2930
    %v2932 = vsel %vm2511, %v2574, -inf
    %v2933 = vsel %vm2511, %v2598, -inf
    %v2934 = vmax.f32 %v2932, %v2933
    %v2935 = vsel %vm2511, %v2577, -inf
    %v2936 = vsel %vm2511, %v2601, -inf
    %v2937 = vmax.f32 %v2935, %v2936
    %v2938 = vsel %vm2511, %v2580, -inf
    %v2939 = vsel %vm2511, %v2604, -inf
    %v2940 = vmax.f32 %v2938, %v2939
    %v2941 = vsel %vm2511, %v2583, -inf
    %v2942 = vsel %vm2511, %v2607, -inf
    %v2943 = vmax.f32 %v2941, %v2942
    %v2944 = vsel %vm2511, %v2610, -inf
    %v2945 = vsel %vm2511, %v2634, -inf
    %v2946 = vmax.f32 %v2944, %v2945
    %v2947 = vsel %vm2511, %v2613, -inf
    %v2948 = vsel %vm2511, %v2637, -inf
    %v2949 = vmax.f32 %v2947, %v2948
    %v2950 = vsel %vm2511, %v2616, -inf
    %v2951 = vsel %vm2511, %v2640, -inf
    %v2952 = vmax.f32 %v2950, %v2951
    %v2953 = vsel %vm2511, %v2619, -inf
    %v2954 = vsel %vm2511, %v2643, -inf
    %v2955 = vmax.f32 %v2953, %v2954
    %v2956 = vsel %vm2511, %v2622, -inf
    %v2957 = vsel %vm2511, %v2646, -inf
    %v2958 = vmax.f32 %v2956, %v2957
    %v2959 = vsel %vm2511, %v2625, -inf
    %v2960 = vsel %vm2511, %v2649, -inf
    %v2961 = vmax.f32 %v2959, %v2960
    %v2962 = vsel %vm2511, %v2628, -inf
    %v2963 = vsel %vm2511, %v2652, -inf
    %v2964 = vmax.f32 %v2962, %v2963
    %v2965 = vsel %vm2511, %v2631, -inf
    %v2966 = vsel %vm2511, %v2655, -inf
    %v2967 = vmax.f32 %v2965, %v2966
    %v2968 = vsel %vm2511, %v2658, -inf
    %v2969 = vsel %vm2511, %v2682, -inf
    %v2970 = vmax.f32 %v2968, %v2969
    %v2971 = vsel %vm2511, %v2661, -inf
    %v2972 = vsel %vm2511, %v2685, -inf
    %v2973 = vmax.f32 %v2971, %v2972
    %v2974 = vsel %vm2511, %v2664, -inf
    %v2975 = vsel %vm2511, %v2688, -inf
    %v2976 = vmax.f32 %v2974, %v2975
    %v2977 = vsel %vm2511, %v2667, -inf
    %v2978 = vsel %vm2511, %v2691, -inf
    %v2979 = vmax.f32 %v2977, %v2978
    %v2980 = vsel %vm2511, %v2670, -inf
    %v2981 = vsel %vm2511, %v2694, -inf
    %v2982 = vmax.f32 %v2980, %v2981
    %v2983 = vsel %vm2511, %v2673, -inf
    %v2984 = vsel %vm2511, %v2697, -inf
    %v2985 = vmax.f32 %v2983, %v2984
    %v2986 = vsel %vm2511, %v2676, -inf
    %v2987 = vsel %vm2511, %v2700, -inf
    %v2988 = vmax.f32 %v2986, %v2987
    %v2989 = vsel %vm2511, %v2679, -inf
    %v2990 = vsel %vm2511, %v2703, -inf
    %v2991 = vmax.f32 %v2989, %v2990
    %v2992 = vsel %vm2511, %v2706, -inf
    %v2993 = vsel %vm2511, %v2730, -inf
    %v2994 = vmax.f32 %v2992, %v2993
    %v2995 = vsel %vm2511, %v2709, -inf
    %v2996 = vsel %vm2511, %v2733, -inf
    %v2997 = vmax.f32 %v2995, %v2996
    %v2998 = vsel %vm2511, %v2712, -inf
    %v2999 = vsel %vm2511, %v2736, -inf
    %v3000 = vmax.f32 %v2998, %v2999
    %v3001 = vsel %vm2511, %v2715, -inf
    %v3002 = vsel %vm2511, %v2739, -inf
    %v3003 = vmax.f32 %v3001, %v3002
    %v3004 = vsel %vm2511, %v2718, -inf
    %v3005 = vsel %vm2511, %v2742, -inf
    %v3006 = vmax.f32 %v3004, %v3005
    %v3007 = vsel %vm2511, %v2721, -inf
    %v3008 = vsel %vm2511, %v2745, -inf
    %v3009 = vmax.f32 %v3007, %v3008
    %v3010 = vsel %vm2511, %v2724, -inf
    %v3011 = vsel %vm2511, %v2748, -inf
    %v3012 = vmax.f32 %v3010, %v3011
    %v3013 = vsel %vm2511, %v2727, -inf
    %v3014 = vsel %vm2511, %v2751, -inf
    %v3015 = vmax.f32 %v3013, %v3014
    %v3016 = vsel %vm2511, %v2754, -inf
    %v3017 = vsel %vm2511, %v2778, -inf
    %v3018 = vmax.f32 %v3016, %v3017
    %v3019 = vsel %vm2511, %v2757, -inf
    %v3020 = vsel %vm2511, %v2781, -inf
    %v3021 = vmax.f32 %v3019, %v3020
    %v3022 = vsel %vm2511, %v2760, -inf
    %v3023 = vsel %vm2511, %v2784, -inf
    %v3024 = vmax.f32 %v3022, %v3023
    %v3025 = vsel %vm2511, %v2763, -inf
    %v3026 = vsel %vm2511, %v2787, -inf
    %v3027 = vmax.f32 %v3025, %v3026
    %v3028 = vsel %vm2511, %v2766, -inf
    %v3029 = vsel %vm2511, %v2790, -inf
    %v3030 = vmax.f32 %v3028, %v3029
    %v3031 = vsel %vm2511, %v2769, -inf
    %v3032 = vsel %vm2511, %v2793, -inf
    %v3033 = vmax.f32 %v3031, %v3032
    %v3034 = vsel %vm2511, %v2772, -inf
    %v3035 = vsel %vm2511, %v2796, -inf
    %v3036 = vmax.f32 %v3034, %v3035
    %v3037 = vsel %vm2511, %v2775, -inf
    %v3038 = vsel %vm2511, %v2799, -inf
    %v3039 = vmax.f32 %v3037, %v3038
    %v3040 = vsel %vm2511, %v2802, -inf
    %v3041 = vsel %vm2511, %v2826, -inf
    %v3042 = vmax.f32 %v3040, %v3041
    %v3043 = vsel %vm2511, %v2805, -inf
    %v3044 = vsel %vm2511, %v2829, -inf
    %v3045 = vmax.f32 %v3043, %v3044
    %v3046 = vsel %vm2511, %v2808, -inf
    %v3047 = vsel %vm2511, %v2832, -inf
    %v3048 = vmax.f32 %v3046, %v3047
    %v3049 = vsel %vm2511, %v2811, -inf
    %v3050 = vsel %vm2511, %v2835, -inf
    %v3051 = vmax.f32 %v3049, %v3050
    %v3052 = vsel %vm2511, %v2814, -inf
    %v3053 = vsel %vm2511, %v2838, -inf
    %v3054 = vmax.f32 %v3052, %v3053
    %v3055 = vsel %vm2511, %v2817, -inf
    %v3056 = vsel %vm2511, %v2841, -inf
    %v3057 = vmax.f32 %v3055, %v3056
    %v3058 = vsel %vm2511, %v2820, -inf
    %v3059 = vsel %vm2511, %v2844, -inf
    %v3060 = vmax.f32 %v3058, %v3059
    %v3061 = vsel %vm2511, %v2823, -inf
    %v3062 = vsel %vm2511, %v2847, -inf
    %v3063 = vmax.f32 %v3061, %v3062
    %v3064 = vsel %vm2511, %v2850, -inf
    %v3065 = vsel %vm2511, %v2874, -inf
    %v3066 = vmax.f32 %v3064, %v3065
    %v3067 = vsel %vm2511, %v2853, -inf
    %v3068 = vsel %vm2511, %v2877, -inf
    %v3069 = vmax.f32 %v3067, %v3068
    %v3070 = vsel %vm2511, %v2856, -inf
    %v3071 = vsel %vm2511, %v2880, -inf
    %v3072 = vmax.f32 %v3070, %v3071
    %v3073 = vsel %vm2511, %v2859, -inf
    %v3074 = vsel %vm2511, %v2883, -inf
    %v3075 = vmax.f32 %v3073, %v3074
    %v3076 = vsel %vm2511, %v2862, -inf
    %v3077 = vsel %vm2511, %v2886, -inf
    %v3078 = vmax.f32 %v3076, %v3077
    %v3079 = vsel %vm2511, %v2865, -inf
    %v3080 = vsel %vm2511, %v2889, -inf
    %v3081 = vmax.f32 %v3079, %v3080
    %v3082 = vsel %vm2511, %v2868, -inf
    %v3083 = vsel %vm2511, %v2892, -inf
    %v3084 = vmax.f32 %v3082, %v3083
    %v3085 = vsel %vm2511, %v2871, -inf
    %v3086 = vsel %vm2511, %v2895, -inf
    %v3087 = vmax.f32 %v3085, %v3086
    %v3152 = vcombine.low %v2898, %v2901
    %v3153 = vcombine.low %v2904, %v2907
    %v3155 = vunpack.c.l.s4 1983009808
    %v3156 = vunpack.c.0.s8 %v3155
    %v3157 = vlaneseq
    %v3158 = vshrl.u32 %v3157, 7
    %v3159 = vsub.s32 %v3156, %v3158
    %v3160 = vrot.slane %v3152, %v3159
    %v3162 = vunpack.c.l.s4 1983009808
    %v3163 = vunpack.c.0.s8 %v3162
    %v3164 = vlaneseq
    %v3165 = vshrl.u32 %v3164, 7
    %v3166 = vsub.s32 %v3163, %v3165
    %v3167 = vrot.slane %v3153, %v3166
    %v3168 = vcombine.low %v3160, %v3167
    %v3169 = vcombine.low %v2910, %v2913
    %v3170 = vcombine.low %v2916, %v2919
    %v3172 = vunpack.c.l.s4 1983009808
    %v3173 = vunpack.c.0.s8 %v3172
    %v3174 = vlaneseq
    %v3175 = vshrl.u32 %v3174, 7
    %v3176 = vsub.s32 %v3173, %v3175
    %v3177 = vrot.slane %v3169, %v3176
    %v3179 = vunpack.c.l.s4 1983009808
    %v3180 = vunpack.c.0.s8 %v3179
    %v3181 = vlaneseq
    %v3182 = vshrl.u32 %v3181, 7
    %v3183 = vsub.s32 %v3180, %v3182
    %v3184 = vrot.slane %v3170, %v3183
    %v3185 = vcombine.low %v3177, %v3184
    %v3186 = vcombine.low %v2922, %v2925
    %v3187 = vcombine.low %v2928, %v2931
    %v3189 = vunpack.c.l.s4 1983009808
    %v3190 = vunpack.c.0.s8 %v3189
    %v3191 = vlaneseq
    %v3192 = vshrl.u32 %v3191, 7
    %v3193 = vsub.s32 %v3190, %v3192
    %v3194 = vrot.slane %v3186, %v3193
    %v3196 = vunpack.c.l.s4 1983009808
    %v3197 = vunpack.c.0.s8 %v3196
    %v3198 = vlaneseq
    %v3199 = vshrl.u32 %v3198, 7
    %v3200 = vsub.s32 %v3197, %v3199
    %v3201 = vrot.slane %v3187, %v3200
    %v3202 = vcombine.low %v3194, %v3201
    %v3203 = vcombine.low %v2934, %v2937
    %v3204 = vcombine.low %v2940, %v2943
    %v3206 = vunpack.c.l.s4 1983009808
    %v3207 = vunpack.c.0.s8 %v3206
    %v3208 = vlaneseq
    %v3209 = vshrl.u32 %v3208, 7
    %v3210 = vsub.s32 %v3207, %v3209
    %v3211 = vrot.slane %v3203, %v3210
    %v3213 = vunpack.c.l.s4 1983009808
    %v3214 = vunpack.c.0.s8 %v3213
    %v3215 = vlaneseq
    %v3216 = vshrl.u32 %v3215, 7
    %v3217 = vsub.s32 %v3214, %v3216
    %v3218 = vrot.slane %v3204, %v3217
    %v3219 = vcombine.low %v3211, %v3218
    %v3220 = vcombine.low %v2946, %v2949
    %v3221 = vcombine.low %v2952, %v2955
    %v3223 = vunpack.c.l.s4 1983009808
    %v3224 = vunpack.c.0.s8 %v3223
    %v3225 = vlaneseq
    %v3226 = vshrl.u32 %v3225, 7
    %v3227 = vsub.s32 %v3224, %v3226
    %v3228 = vrot.slane %v3220, %v3227
    %v3230 = vunpack.c.l.s4 1983009808
    %v3231 = vunpack.c.0.s8 %v3230
    %v3232 = vlaneseq
    %v3233 = vshrl.u32 %v3232, 7
    %v3234 = vsub.s32 %v3231, %v3233
    %v3235 = vrot.slane %v3221, %v3234
    %v3236 = vcombine.low %v3228, %v3235
    %v3237 = vcombine.low %v2958, %v2961
    %v3238 = vcombine.low %v2964, %v2967
    %v3240 = vunpack.c.l.s4 1983009808
    %v3241 = vunpack.c.0.s8 %v3240
    %v3242 = vlaneseq
    %v3243 = vshrl.u32 %v3242, 7
    %v3244 = vsub.s32 %v3241, %v3243
    %v3245 = vrot.slane %v3237, %v3244
    %v3247 = vunpack.c.l.s4 1983009808
    %v3248 = vunpack.c.0.s8 %v3247
    %v3249 = vlaneseq
    %v3250 = vshrl.u32 %v3249, 7
    %v3251 = vsub.s32 %v3248, %v3250
    %v3252 = vrot.slane %v3238, %v3251
    %v3253 = vcombine.low %v3245, %v3252
    %v3254 = vcombine.low %v2970, %v2973
    %v3255 = vcombine.low %v2976, %v2979
    %v3257 = vunpack.c.l.s4 1983009808
    %v3258 = vunpack.c.0.s8 %v3257
    %v3259 = vlaneseq
    %v3260 = vshrl.u32 %v3259, 7
    %v3261 = vsub.s32 %v3258, %v3260
    %v3262 = vrot.slane %v3254, %v3261
    %v3264 = vunpack.c.l.s4 1983009808
    %v3265 = vunpack.c.0.s8 %v3264
    %v3266 = vlaneseq
    %v3267 = vshrl.u32 %v3266, 7
    %v3268 = vsub.s32 %v3265, %v3267
    %v3269 = vrot.slane %v3255, %v3268
    %v3270 = vcombine.low %v3262, %v3269
    %v3271 = vcombine.low %v2982, %v2985
    %v3272 = vcombine.low %v2988, %v2991
    %v3274 = vunpack.c.l.s4 1983009808
    %v3275 = vunpack.c.0.s8 %v3274
    %v3276 = vlaneseq
    %v3277 = vshrl.u32 %v3276, 7
    %v3278 = vsub.s32 %v3275, %v3277
    %v3279 = vrot.slane %v3271, %v3278
    %v3281 = vunpack.c.l.s4 1983009808
    %v3282 = vunpack.c.0.s8 %v3281
    %v3283 = vlaneseq
    %v3284 = vshrl.u32 %v3283, 7
    %v3285 = vsub.s32 %v3282, %v3284
    %v3286 = vrot.slane %v3272, %v3285
    %v3287 = vcombine.low %v3279, %v3286
    %v3288 = vcombine.low %v2994, %v2997
    %v3289 = vcombine.low %v3000, %v3003
    %v3291 = vunpack.c.l.s4 1983009808
    %v3292 = vunpack.c.0.s8 %v3291
    %v3293 = vlaneseq
    %v3294 = vshrl.u32 %v3293, 7
    %v3295 = vsub.s32 %v3292, %v3294
    %v3296 = vrot.slane %v3288, %v3295
    %v3298 = vunpack.c.l.s4 1983009808
    %v3299 = vunpack.c.0.s8 %v3298
    %v3300 = vlaneseq
    %v3301 = vshrl.u32 %v3300, 7
    %v3302 = vsub.s32 %v3299, %v3301
    %v3303 = vrot.slane %v3289, %v3302
    %v3304 = vcombine.low %v3296, %v3303
    %v3305 = vcombine.low %v3006, %v3009
    %v3306 = vcombine.low %v3012, %v3015
    %v3308 = vunpack.c.l.s4 1983009808
    %v3309 = vunpack.c.0.s8 %v3308
    %v3310 = vlaneseq
    %v3311 = vshrl.u32 %v3310, 7
    %v3312 = vsub.s32 %v3309, %v3311
    %v3313 = vrot.slane %v3305, %v3312
    %v3315 = vunpack.c.l.s4 1983009808
    %v3316 = vunpack.c.0.s8 %v3315
    %v3317 = vlaneseq
    %v3318 = vshrl.u32 %v3317, 7
    %v3319 = vsub.s32 %v3316, %v3318
    %v3320 = vrot.slane %v3306, %v3319
    %v3321 = vcombine.low %v3313, %v3320
    %v3322 = vcombine.low %v3018, %v3021
    %v3323 = vcombine.low %v3024, %v3027
    %v3325 = vunpack.c.l.s4 1983009808
    %v3326 = vunpack.c.0.s8 %v3325
    %v3327 = vlaneseq
    %v3328 = vshrl.u32 %v3327, 7
    %v3329 = vsub.s32 %v3326, %v3328
    %v3330 = vrot.slane %v3322, %v3329
    %v3332 = vunpack.c.l.s4 1983009808
    %v3333 = vunpack.c.0.s8 %v3332
    %v3334 = vlaneseq
    %v3335 = vshrl.u32 %v3334, 7
    %v3336 = vsub.s32 %v3333, %v3335
    %v3337 = vrot.slane %v3323, %v3336
    %v3338 = vcombine.low %v3330, %v3337
    %v3339 = vcombine.low %v3030, %v3033
    %v3340 = vcombine.low %v3036, %v3039
    %v3342 = vunpack.c.l.s4 1983009808
    %v3343 = vunpack.c.0.s8 %v3342
    %v3344 = vlaneseq
    %v3345 = vshrl.u32 %v3344, 7
    %v3346 = vsub.s32 %v3343, %v3345
    %v3347 = vrot.slane %v3339, %v3346
    %v3349 = vunpack.c.l.s4 1983009808
    %v3350 = vunpack.c.0.s8 %v3349
    %v3351 = vlaneseq
    %v3352 = vshrl.u32 %v3351, 7
    %v3353 = vsub.s32 %v3350, %v3352
    %v3354 = vrot.slane %v3340, %v3353
    %v3355 = vcombine.low %v3347, %v3354
    %v3356 = vcombine.low %v3042, %v3045
    %v3357 = vcombine.low %v3048, %v3051
    %v3359 = vunpack.c.l.s4 1983009808
    %v3360 = vunpack.c.0.s8 %v3359
    %v3361 = vlaneseq
    %v3362 = vshrl.u32 %v3361, 7
    %v3363 = vsub.s32 %v3360, %v3362
    %v3364 = vrot.slane %v3356, %v3363
    %v3366 = vunpack.c.l.s4 1983009808
    %v3367 = vunpack.c.0.s8 %v3366
    %v3368 = vlaneseq
    %v3369 = vshrl.u32 %v3368, 7
    %v3370 = vsub.s32 %v3367, %v3369
    %v3371 = vrot.slane %v3357, %v3370
    %v3372 = vcombine.low %v3364, %v3371
    %v3373 = vcombine.low %v3054, %v3057
    %v3374 = vcombine.low %v3060, %v3063
    %v3376 = vunpack.c.l.s4 1983009808
    %v3377 = vunpack.c.0.s8 %v3376
    %v3378 = vlaneseq
    %v3379 = vshrl.u32 %v3378, 7
    %v3380 = vsub.s32 %v3377, %v3379
    %v3381 = vrot.slane %v3373, %v3380
    %v3383 = vunpack.c.l.s4 1983009808
    %v3384 = vunpack.c.0.s8 %v3383
    %v3385 = vlaneseq
    %v3386 = vshrl.u32 %v3385, 7
    %v3387 = vsub.s32 %v3384, %v3386
    %v3388 = vrot.slane %v3374, %v3387
    %v3389 = vcombine.low %v3381, %v3388
    %v3390 = vcombine.low %v3066, %v3069
    %v3391 = vcombine.low %v3072, %v3075
    %v3393 = vunpack.c.l.s4 1983009808
    %v3394 = vunpack.c.0.s8 %v3393
    %v3395 = vlaneseq
    %v3396 = vshrl.u32 %v3395, 7
    %v3397 = vsub.s32 %v3394, %v3396
    %v3398 = vrot.slane %v3390, %v3397
    %v3400 = vunpack.c.l.s4 1983009808
    %v3401 = vunpack.c.0.s8 %v3400
    %v3402 = vlaneseq
    %v3403 = vshrl.u32 %v3402, 7
    %v3404 = vsub.s32 %v3401, %v3403
    %v3405 = vrot.slane %v3391, %v3404
    %v3406 = vcombine.low %v3398, %v3405
    %v3407 = vcombine.low %v3078, %v3081
    %v3408 = vcombine.low %v3084, %v3087
    %v3410 = vunpack.c.l.s4 1983009808
    %v3411 = vunpack.c.0.s8 %v3410
    %v3412 = vlaneseq
    %v3413 = vshrl.u32 %v3412, 7
    %v3414 = vsub.s32 %v3411, %v3413
    %v3415 = vrot.slane %v3407, %v3414
    %v3417 = vunpack.c.l.s4 1983009808
    %v3418 = vunpack.c.0.s8 %v3417
    %v3419 = vlaneseq
    %v3420 = vshrl.u32 %v3419, 7
    %v3421 = vsub.s32 %v3418, %v3420
    %v3422 = vrot.slane %v3408, %v3421
    %v3423 = vcombine.low %v3415, %v3422
    %v3440 = vpack.c.bf16 %v3185, %v3168
    %v3441 = vpack.c.bf16 %v3219, %v3202
    %v3442 = vpack.c.bf16 %v3253, %v3236
    %v3443 = vpack.c.bf16 %v3287, %v3270
    %v3444 = vpack.c.bf16 %v3321, %v3304
    %v3445 = vpack.c.bf16 %v3355, %v3338
    %v3446 = vpack.c.bf16 %v3389, %v3372
    %v3447 = vpack.c.bf16 %v3423, %v3406
    %v3448 = vld [vmem:[%s5] sm:$0xf]
    %v3449 = vld [vmem:[%s5 + $0x4] sm:$0xf]
    %v3450 = vld [vmem:[%s5 + $0x8] sm:$0xf]
    %v3451 = vld [vmem:[%s5 + $0xc] sm:$0xf]
    %v3452 = vld [vmem:[%s6] sm:$0x1]
    %v3454 = vlaneseq
    %v3455 = vshrl.u32 %v3454, 7
    %v3456 = vsub.s32 0, %v3455
    %v3457 = vrot.slane %v3452, %v3456
    %v3463 = vunpack.c.l.b16 %v3448
    %v3464 = vunpack.c.l.b16 %v3449
    %v3465 = vunpack.c.l.b16 %v3450
    %v3466 = vunpack.c.l.b16 %v3451
    %v3467 = vpack.c.b16 %v3464, %v3463
    %v3468 = vpack.c.b16 %v3466, %v3465
    %v3472 = vsel %vm653, %v3440, 0
    %v3475 = vsel %vm653, %v3441, 0
    %v3478 = vsel %vm653, %v3442, 0
    %v3481 = vsel %vm653, %v3443, 0
    %v3484 = vsel %vm653, %v3444, 0
    %v3487 = vsel %vm653, %v3445, 0
    %v3490 = vsel %vm653, %v3446, 0
    %v3493 = vsel %vm653, %v3447, 0
    %3495 = vmatprep.subr.bf16.mxu0 0
    %3496 = vmatpush1.bf16.msra.mxu0 %v3467
    %3497 = vmatprep.subr.bf16.mxu0 0
    %3498 = vmatpush1.bf16.msra.mxu0 %v3468
    %3499 = vmatprep.subr.bf16.mxu0 0
    %3500 = vmatpush1.bf16.msra.mxu0 0
    %3501 = vmatprep.subr.bf16.mxu0 0
    %3502 = vmatpush1.bf16.msra.mxu0 0
    %3503 = vmatprep.subr.bf16.mxu0 0
    %3504 = vmatpush1.bf16.msra.mxu0 0
    %3505 = vmatprep.subr.bf16.mxu0 0
    %3506 = vmatpush1.bf16.msra.mxu0 0
    %3507 = vmatprep.subr.bf16.mxu0 0
    %3508 = vmatpush1.bf16.msra.mxu0 0
    %3509 = vmatprep.subr.bf16.mxu0 0
    %3510 = vmatpush1.bf16.msra.mxu0 0
    %3511 = vmatprep.subr.bf16.mxu0 0
    %3512 = vmatpush1.bf16.msra.mxu0 0
    %3513 = vmatprep.subr.bf16.mxu0 0
    %3514 = vmatpush1.bf16.msra.mxu0 0
    %3515 = vmatprep.subr.bf16.mxu0 0
    %3516 = vmatpush1.bf16.msra.mxu0 0
    %3517 = vmatprep.subr.bf16.mxu0 0
    %3518 = vmatpush1.bf16.msra.mxu0 0
    %3519 = vmatprep.subr.bf16.mxu0 0
    %3520 = vmatpush1.bf16.msra.mxu0 0
    %3521 = vmatprep.subr.bf16.mxu0 0
    %3522 = vmatpush1.bf16.msra.mxu0 0
    %3523 = vmatprep.subr.bf16.mxu0 0
    %3524 = vmatpush1.bf16.msra.mxu0 0
    %3525 = vmatprep.subr.bf16.mxu0 0
    %3526 = vmatpush1.bf16.msra.mxu0 0
    %3527 = vmatprep.mubr.bf16.mxu0 0
    %3528 = vmatmul.mubr.bf16.gmra.mrb[0].mxu0 %v3472
    %v3529 = vpop.f32.mrb[0].mxu0
    %v3530 = vadd.f32 %v3457, %v3529
    %v3531 = vpop.f32.mrb[0].mxu0
    %v3532 = vpop.f32.mrb[0].mxu0
    %v3533 = vadd.f32 %v3457, %v3532
    %v3534 = vpop.f32.mrb[0].mxu0
    %3535 = vmatprep.mubr.bf16.mxu0 0
    %3536 = vmatmul.mubr.bf16.gmra.mrb[0].mxu0 %v3475
    %v3537 = vpop.f32.mrb[0].mxu0
    %v3538 = vadd.f32 %v3457, %v3537
    %v3539 = vpop.f32.mrb[0].mxu0
    %v3540 = vpop.f32.mrb[0].mxu0
    %v3541 = vadd.f32 %v3457, %v3540
    %v3542 = vpop.f32.mrb[0].mxu0
    %3543 = vmatprep.mubr.bf16.mxu0 0
    %3544 = vmatmul.mubr.bf16.gmra.mrb[0].mxu0 %v3478
    %v3545 = vpop.f32.mrb[0].mxu0
    %v3546 = vadd.f32 %v3457, %v3545
    %v3547 = vpop.f32.mrb[0].mxu0
    %v3548 = vpop.f32.mrb[0].mxu0
    %v3549 = vadd.f32 %v3457, %v3548
    %v3550 = vpop.f32.mrb[0].mxu0
    %3551 = vmatprep.mubr.bf16.mxu0 0
    %3552 = vmatmul.mubr.bf16.gmra.mrb[0].mxu0 %v3481
    %v3553 = vpop.f32.mrb[0].mxu0
    %v3554 = vadd.f32 %v3457, %v3553
    %v3555 = vpop.f32.mrb[0].mxu0
    %v3556 = vpop.f32.mrb[0].mxu0
    %v3557 = vadd.f32 %v3457, %v3556
    %v3558 = vpop.f32.mrb[0].mxu0
    %3559 = vmatprep.mubr.bf16.mxu0 0
    %3560 = vmatmul.mubr.bf16.gmra.mrb[0].mxu0 %v3484
    %v3561 = vpop.f32.mrb[0].mxu0
    %v3562 = vadd.f32 %v3457, %v3561
    %v3563 = vpop.f32.mrb[0].mxu0
    %v3564 = vpop.f32.mrb[0].mxu0
    %v3565 = vadd.f32 %v3457, %v3564
    %v3566 = vpop.f32.mrb[0].mxu0
    %3567 = vmatprep.mubr.bf16.mxu0 0
    %3568 = vmatmul.mubr.bf16.gmra.mrb[0].mxu0 %v3487
    %v3569 = vpop.f32.mrb[0].mxu0
    %v3570 = vadd.f32 %v3457, %v3569
    %v3571 = vpop.f32.mrb[0].mxu0
    %v3572 = vpop.f32.mrb[0].mxu0
    %v3573 = vadd.f32 %v3457, %v3572
    %v3574 = vpop.f32.mrb[0].mxu0
    %3575 = vmatprep.mubr.bf16.mxu0 0
    %3576 = vmatmul.mubr.bf16.gmra.mrb[0].mxu0 %v3490
    %v3577 = vpop.f32.mrb[0].mxu0
    %v3578 = vadd.f32 %v3457, %v3577
    %v3579 = vpop.f32.mrb[0].mxu0
    %v3580 = vpop.f32.mrb[0].mxu0
    %v3581 = vadd.f32 %v3457, %v3580
    %v3582 = vpop.f32.mrb[0].mxu0
    %3583 = vmatprep.mubr.bf16.mxu0 0
    %3584 = vmatmul.mubr.bf16.gmra.mrb[0].mxu0 %v3493
    %v3585 = vpop.f32.mrb[0].mxu0
    %v3586 = vadd.f32 %v3457, %v3585
    %v3587 = vpop.f32.mrb[0].mxu0
    %v3588 = vpop.f32.mrb[0].mxu0
    %v3589 = vadd.f32 %v3457, %v3588
    %v3590 = vpop.f32.mrb[0].mxu0
    %3591 = vdwg.mxu0
    %v3592 = vmax.f32 %v3530, 0.0
    %v3593 = vmax.f32 %v3533, 0.0
    %v3594 = vmax.f32 %v3538, 0.0
    %v3595 = vmax.f32 %v3541, 0.0
    %v3596 = vmax.f32 %v3546, 0.0
    %v3597 = vmax.f32 %v3549, 0.0
    %v3598 = vmax.f32 %v3554, 0.0
    %v3599 = vmax.f32 %v3557, 0.0
    %v3600 = vmax.f32 %v3562, 0.0
    %v3601 = vmax.f32 %v3565, 0.0
    %v3602 = vmax.f32 %v3570, 0.0
    %v3603 = vmax.f32 %v3573, 0.0
    %v3604 = vmax.f32 %v3578, 0.0
    %v3605 = vmax.f32 %v3581, 0.0
    %v3606 = vmax.f32 %v3586, 0.0
    %v3607 = vmax.f32 %v3589, 0.0
    %v3608 = vpack.c.bf16 %v3593, %v3592
    %v3609 = vpack.c.bf16 %v3595, %v3594
    %v3610 = vpack.c.bf16 %v3597, %v3596
    %v3611 = vpack.c.bf16 %v3599, %v3598
    %v3612 = vpack.c.bf16 %v3601, %v3600
    %v3613 = vpack.c.bf16 %v3603, %v3602
    %v3614 = vpack.c.bf16 %v3605, %v3604
    %v3615 = vpack.c.bf16 %v3607, %v3606
    %v3616 = vld [vmem:[%s7] sm:$0xf]
    %v3617 = vld [vmem:[%s7 + $0x4] sm:$0xf]
    %v3618 = vld [vmem:[%s7 + $0x8] sm:$0xf]
    %v3619 = vld [vmem:[%s7 + $0xc] sm:$0xf]
    %v3620 = vld [vmem:[%s8] sm:$0x1]
    %v3622 = vlaneseq
    %v3623 = vshrl.u32 %v3622, 7
    %v3624 = vsub.s32 0, %v3623
    %v3625 = vrot.slane %v3620, %v3624
    %v3631 = vunpack.c.l.b16 %v3616
    %v3632 = vunpack.c.l.b16 %v3617
    %v3633 = vunpack.c.l.b16 %v3618
    %v3634 = vunpack.c.l.b16 %v3619
    %v3635 = vpack.c.b16 %v3632, %v3631
    %v3636 = vpack.c.b16 %v3634, %v3633
    %v3640 = vsel %vm653, %v3608, 0
    %v3643 = vsel %vm653, %v3609, 0
    %v3646 = vsel %vm653, %v3610, 0
    %v3649 = vsel %vm653, %v3611, 0
    %v3652 = vsel %vm653, %v3612, 0
    %v3655 = vsel %vm653, %v3613, 0
    %v3658 = vsel %vm653, %v3614, 0
    %v3661 = vsel %vm653, %v3615, 0
    %3663 = vmatprep.subr.bf16.mxu0 0
    %3664 = vmatpush1.bf16.msra.mxu0 %v3635
    %3665 = vmatprep.subr.bf16.mxu0 0
    %3666 = vmatpush1.bf16.msra.mxu0 %v3636
    %3667 = vmatprep.subr.bf16.mxu0 0
    %3668 = vmatpush1.bf16.msra.mxu0 0
    %3669 = vmatprep.subr.bf16.mxu0 0
    %3670 = vmatpush1.bf16.msra.mxu0 0
    %3671 = vmatprep.subr.bf16.mxu0 0
    %3672 = vmatpush1.bf16.msra.mxu0 0
    %3673 = vmatprep.subr.bf16.mxu0 0
    %3674 = vmatpush1.bf16.msra.mxu0 0
    %3675 = vmatprep.subr.bf16.mxu0 0
    %3676 = vmatpush1.bf16.msra.mxu0 0
    %3677 = vmatprep.subr.bf16.mxu0 0
    %3678 = vmatpush1.bf16.msra.mxu0 0
    %3679 = vmatprep.subr.bf16.mxu0 0
    %3680 = vmatpush1.bf16.msra.mxu0 0
    %3681 = vmatprep.subr.bf16.mxu0 0
    %3682 = vmatpush1.bf16.msra.mxu0 0
    %3683 = vmatprep.subr.bf16.mxu0 0
    %3684 = vmatpush1.bf16.msra.mxu0 0
    %3685 = vmatprep.subr.bf16.mxu0 0
    %3686 = vmatpush1.bf16.msra.mxu0 0
    %3687 = vmatprep.subr.bf16.mxu0 0
    %3688 = vmatpush1.bf16.msra.mxu0 0
    %3689 = vmatprep.subr.bf16.mxu0 0
    %3690 = vmatpush1.bf16.msra.mxu0 0
    %3691 = vmatprep.subr.bf16.mxu0 0
    %3692 = vmatpush1.bf16.msra.mxu0 0
    %3693 = vmatprep.subr.bf16.mxu0 0
    %3694 = vmatpush1.bf16.msra.mxu0 0
    %3695 = vmatprep.mubr.bf16.mxu0 0
    %3696 = vmatmul.mubr.bf16.gmra.mrb[0].mxu0 %v3640
    %v3697 = vpop.f32.mrb[0].mxu0
    %v3698 = vadd.f32 %v3625, %v3697
    %v3699 = vpop.f32.mrb[0].mxu0
    %v3700 = vpop.f32.mrb[0].mxu0
    %v3701 = vadd.f32 %v3625, %v3700
    %v3702 = vpop.f32.mrb[0].mxu0
    %3703 = vmatprep.mubr.bf16.mxu0 0
    %3704 = vmatmul.mubr.bf16.gmra.mrb[0].mxu0 %v3643
    %v3705 = vpop.f32.mrb[0].mxu0
    %v3706 = vadd.f32 %v3625, %v3705
    %v3707 = vpop.f32.mrb[0].mxu0
    %v3708 = vpop.f32.mrb[0].mxu0
    %v3709 = vadd.f32 %v3625, %v3708
    %v3710 = vpop.f32.mrb[0].mxu0
    %3711 = vmatprep.mubr.bf16.mxu0 0
    %3712 = vmatmul.mubr.bf16.gmra.mrb[0].mxu0 %v3646
    %v3713 = vpop.f32.mrb[0].mxu0
    %v3714 = vadd.f32 %v3625, %v3713
    %v3715 = vpop.f32.mrb[0].mxu0
    %v3716 = vpop.f32.mrb[0].mxu0
    %v3717 = vadd.f32 %v3625, %v3716
    %v3718 = vpop.f32.mrb[0].mxu0
    %3719 = vmatprep.mubr.bf16.mxu0 0
    %3720 = vmatmul.mubr.bf16.gmra.mrb[0].mxu0 %v3649
    %v3721 = vpop.f32.mrb[0].mxu0
    %v3722 = vadd.f32 %v3625, %v3721
    %v3723 = vpop.f32.mrb[0].mxu0
    %v3724 = vpop.f32.mrb[0].mxu0
    %v3725 = vadd.f32 %v3625, %v3724
    %v3726 = vpop.f32.mrb[0].mxu0
    %3727 = vmatprep.mubr.bf16.mxu0 0
    %3728 = vmatmul.mubr.bf16.gmra.mrb[0].mxu0 %v3652
    %v3729 = vpop.f32.mrb[0].mxu0
    %v3730 = vadd.f32 %v3625, %v3729
    %v3731 = vpop.f32.mrb[0].mxu0
    %v3732 = vpop.f32.mrb[0].mxu0
    %v3733 = vadd.f32 %v3625, %v3732
    %v3734 = vpop.f32.mrb[0].mxu0
    %3735 = vmatprep.mubr.bf16.mxu0 0
    %3736 = vmatmul.mubr.bf16.gmra.mrb[0].mxu0 %v3655
    %v3737 = vpop.f32.mrb[0].mxu0
    %v3738 = vadd.f32 %v3625, %v3737
    %v3739 = vpop.f32.mrb[0].mxu0
    %v3740 = vpop.f32.mrb[0].mxu0
    %v3741 = vadd.f32 %v3625, %v3740
    %v3742 = vpop.f32.mrb[0].mxu0
    %3743 = vmatprep.mubr.bf16.mxu0 0
    %3744 = vmatmul.mubr.bf16.gmra.mrb[0].mxu0 %v3658
    %v3745 = vpop.f32.mrb[0].mxu0
    %v3746 = vadd.f32 %v3625, %v3745
    %v3747 = vpop.f32.mrb[0].mxu0
    %v3748 = vpop.f32.mrb[0].mxu0
    %v3749 = vadd.f32 %v3625, %v3748
    %v3750 = vpop.f32.mrb[0].mxu0
    %3751 = vmatprep.mubr.bf16.mxu0 0
    %3752 = vmatmul.mubr.bf16.gmra.mrb[0].mxu0 %v3661
    %v3753 = vpop.f32.mrb[0].mxu0
    %v3754 = vadd.f32 %v3625, %v3753
    %v3755 = vpop.f32.mrb[0].mxu0
    %v3756 = vpop.f32.mrb[0].mxu0
    %v3757 = vadd.f32 %v3625, %v3756
    %v3758 = vpop.f32.mrb[0].mxu0
    %3759 = vdwg.mxu0
    %v3760 = vmax.f32 %v3698, 0.0
    %v3761 = vmax.f32 %v3701, 0.0
    %v3762 = vmax.f32 %v3706, 0.0
    %v3763 = vmax.f32 %v3709, 0.0
    %v3764 = vmax.f32 %v3714, 0.0
    %v3765 = vmax.f32 %v3717, 0.0
    %v3766 = vmax.f32 %v3722, 0.0
    %v3767 = vmax.f32 %v3725, 0.0
    %v3768 = vmax.f32 %v3730, 0.0
    %v3769 = vmax.f32 %v3733, 0.0
    %v3770 = vmax.f32 %v3738, 0.0
    %v3771 = vmax.f32 %v3741, 0.0
    %v3772 = vmax.f32 %v3746, 0.0
    %v3773 = vmax.f32 %v3749, 0.0
    %v3774 = vmax.f32 %v3754, 0.0
    %v3775 = vmax.f32 %v3757, 0.0
    %v3792 = vcombine.high %v3760, %v3760
    %v3794 = vunpack.c.l.s4 1983009808
    %v3795 = vunpack.c.0.s8 %v3794
    %v3796 = vlaneseq
    %v3797 = vshrl.u32 %v3796, 7
    %v3798 = vsub.s32 %v3795, %v3797
    %v3799 = vrot.slane %v3760, %v3798
    %v3801 = vunpack.c.l.s4 1983009808
    %v3802 = vunpack.c.0.s8 %v3801
    %v3803 = vlaneseq
    %v3804 = vshrl.u32 %v3803, 7
    %v3805 = vsub.s32 %v3802, %v3804
    %v3806 = vrot.slane %v3792, %v3805
    %v3807 = vcombine.high %v3799, %v3799
    %v3808 = vcombine.high %v3806, %v3806
    %v3809 = vcombine.high %v3761, %v3761
    %v3811 = vunpack.c.l.s4 1983009808
    %v3812 = vunpack.c.0.s8 %v3811
    %v3813 = vlaneseq
    %v3814 = vshrl.u32 %v3813, 7
    %v3815 = vsub.s32 %v3812, %v3814
    %v3816 = vrot.slane %v3761, %v3815
    %v3818 = vunpack.c.l.s4 1983009808
    %v3819 = vunpack.c.0.s8 %v3818
    %v3820 = vlaneseq
    %v3821 = vshrl.u32 %v3820, 7
    %v3822 = vsub.s32 %v3819, %v3821
    %v3823 = vrot.slane %v3809, %v3822
    %v3824 = vcombine.high %v3816, %v3816
    %v3825 = vcombine.high %v3823, %v3823
    %v3826 = vcombine.high %v3762, %v3762
    %v3828 = vunpack.c.l.s4 1983009808
    %v3829 = vunpack.c.0.s8 %v3828
    %v3830 = vlaneseq
    %v3831 = vshrl.u32 %v3830, 7
    %v3832 = vsub.s32 %v3829, %v3831
    %v3833 = vrot.slane %v3762, %v3832
    %v3835 = vunpack.c.l.s4 1983009808
    %v3836 = vunpack.c.0.s8 %v3835
    %v3837 = vlaneseq
    %v3838 = vshrl.u32 %v3837, 7
    %v3839 = vsub.s32 %v3836, %v3838
    %v3840 = vrot.slane %v3826, %v3839
    %v3841 = vcombine.high %v3833, %v3833
    %v3842 = vcombine.high %v3840, %v3840
    %v3843 = vcombine.high %v3763, %v3763
    %v3845 = vunpack.c.l.s4 1983009808
    %v3846 = vunpack.c.0.s8 %v3845
    %v3847 = vlaneseq
    %v3848 = vshrl.u32 %v3847, 7
    %v3849 = vsub.s32 %v3846, %v3848
    %v3850 = vrot.slane %v3763, %v3849
    %v3852 = vunpack.c.l.s4 1983009808
    %v3853 = vunpack.c.0.s8 %v3852
    %v3854 = vlaneseq
    %v3855 = vshrl.u32 %v3854, 7
    %v3856 = vsub.s32 %v3853, %v3855
    %v3857 = vrot.slane %v3843, %v3856
    %v3858 = vcombine.high %v3850, %v3850
    %v3859 = vcombine.high %v3857, %v3857
    %v3860 = vcombine.high %v3764, %v3764
    %v3862 = vunpack.c.l.s4 1983009808
    %v3863 = vunpack.c.0.s8 %v3862
    %v3864 = vlaneseq
    %v3865 = vshrl.u32 %v3864, 7
    %v3866 = vsub.s32 %v3863, %v3865
    %v3867 = vrot.slane %v3764, %v3866
    %v3869 = vunpack.c.l.s4 1983009808
    %v3870 = vunpack.c.0.s8 %v3869
    %v3871 = vlaneseq
    %v3872 = vshrl.u32 %v3871, 7
    %v3873 = vsub.s32 %v3870, %v3872
    %v3874 = vrot.slane %v3860, %v3873
    %v3875 = vcombine.high %v3867, %v3867
    %v3876 = vcombine.high %v3874, %v3874
    %v3877 = vcombine.high %v3765, %v3765
    %v3879 = vunpack.c.l.s4 1983009808
    %v3880 = vunpack.c.0.s8 %v3879
    %v3881 = vlaneseq
    %v3882 = vshrl.u32 %v3881, 7
    %v3883 = vsub.s32 %v3880, %v3882
    %v3884 = vrot.slane %v3765, %v3883
    %v3886 = vunpack.c.l.s4 1983009808
    %v3887 = vunpack.c.0.s8 %v3886
    %v3888 = vlaneseq
    %v3889 = vshrl.u32 %v3888, 7
    %v3890 = vsub.s32 %v3887, %v3889
    %v3891 = vrot.slane %v3877, %v3890
    %v3892 = vcombine.high %v3884, %v3884
    %v3893 = vcombine.high %v3891, %v3891
    %v3894 = vcombine.high %v3766, %v3766
    %v3896 = vunpack.c.l.s4 1983009808
    %v3897 = vunpack.c.0.s8 %v3896
    %v3898 = vlaneseq
    %v3899 = vshrl.u32 %v3898, 7
    %v3900 = vsub.s32 %v3897, %v3899
    %v3901 = vrot.slane %v3766, %v3900
    %v3903 = vunpack.c.l.s4 1983009808
    %v3904 = vunpack.c.0.s8 %v3903
    %v3905 = vlaneseq
    %v3906 = vshrl.u32 %v3905, 7
    %v3907 = vsub.s32 %v3904, %v3906
    %v3908 = vrot.slane %v3894, %v3907
    %v3909 = vcombine.high %v3901, %v3901
    %v3910 = vcombine.high %v3908, %v3908
    %v3911 = vcombine.high %v3767, %v3767
    %v3913 = vunpack.c.l.s4 1983009808
    %v3914 = vunpack.c.0.s8 %v3913
    %v3915 = vlaneseq
    %v3916 = vshrl.u32 %v3915, 7
    %v3917 = vsub.s32 %v3914, %v3916
    %v3918 = vrot.slane %v3767, %v3917
    %v3920 = vunpack.c.l.s4 1983009808
    %v3921 = vunpack.c.0.s8 %v3920
    %v3922 = vlaneseq
    %v3923 = vshrl.u32 %v3922, 7
    %v3924 = vsub.s32 %v3921, %v3923
    %v3925 = vrot.slane %v3911, %v3924
    %v3926 = vcombine.high %v3918, %v3918
    %v3927 = vcombine.high %v3925, %v3925
    %v3928 = vcombine.high %v3768, %v3768
    %v3930 = vunpack.c.l.s4 1983009808
    %v3931 = vunpack.c.0.s8 %v3930
    %v3932 = vlaneseq
    %v3933 = vshrl.u32 %v3932, 7
    %v3934 = vsub.s32 %v3931, %v3933
    %v3935 = vrot.slane %v3768, %v3934
    %v3937 = vunpack.c.l.s4 1983009808
    %v3938 = vunpack.c.0.s8 %v3937
    %v3939 = vlaneseq
    %v3940 = vshrl.u32 %v3939, 7
    %v3941 = vsub.s32 %v3938, %v3940
    %v3942 = vrot.slane %v3928, %v3941
    %v3943 = vcombine.high %v3935, %v3935
    %v3944 = vcombine.high %v3942, %v3942
    %v3945 = vcombine.high %v3769, %v3769
    %v3947 = vunpack.c.l.s4 1983009808
    %v3948 = vunpack.c.0.s8 %v3947
    %v3949 = vlaneseq
    %v3950 = vshrl.u32 %v3949, 7
    %v3951 = vsub.s32 %v3948, %v3950
    %v3952 = vrot.slane %v3769, %v3951
    %v3954 = vunpack.c.l.s4 1983009808
    %v3955 = vunpack.c.0.s8 %v3954
    %v3956 = vlaneseq
    %v3957 = vshrl.u32 %v3956, 7
    %v3958 = vsub.s32 %v3955, %v3957
    %v3959 = vrot.slane %v3945, %v3958
    %v3960 = vcombine.high %v3952, %v3952
    %v3961 = vcombine.high %v3959, %v3959
    %v3962 = vcombine.high %v3770, %v3770
    %v3964 = vunpack.c.l.s4 1983009808
    %v3965 = vunpack.c.0.s8 %v3964
    %v3966 = vlaneseq
    %v3967 = vshrl.u32 %v3966, 7
    %v3968 = vsub.s32 %v3965, %v3967
    %v3969 = vrot.slane %v3770, %v3968
    %v3971 = vunpack.c.l.s4 1983009808
    %v3972 = vunpack.c.0.s8 %v3971
    %v3973 = vlaneseq
    %v3974 = vshrl.u32 %v3973, 7
    %v3975 = vsub.s32 %v3972, %v3974
    %v3976 = vrot.slane %v3962, %v3975
    %v3977 = vcombine.high %v3969, %v3969
    %v3978 = vcombine.high %v3976, %v3976
    %v3979 = vcombine.high %v3771, %v3771
    %v3981 = vunpack.c.l.s4 1983009808
    %v3982 = vunpack.c.0.s8 %v3981
    %v3983 = vlaneseq
    %v3984 = vshrl.u32 %v3983, 7
    %v3985 = vsub.s32 %v3982, %v3984
    %v3986 = vrot.slane %v3771, %v3985
    %v3988 = vunpack.c.l.s4 1983009808
    %v3989 = vunpack.c.0.s8 %v3988
    %v3990 = vlaneseq
    %v3991 = vshrl.u32 %v3990, 7
    %v3992 = vsub.s32 %v3989, %v3991
    %v3993 = vrot.slane %v3979, %v3992
    %v3994 = vcombine.high %v3986, %v3986
    %v3995 = vcombine.high %v3993, %v3993
    %v3996 = vcombine.high %v3772, %v3772
    %v3998 = vunpack.c.l.s4 1983009808
    %v3999 = vunpack.c.0.s8 %v3998
    %v4000 = vlaneseq
    %v4001 = vshrl.u32 %v4000, 7
    %v4002 = vsub.s32 %v3999, %v4001
    %v4003 = vrot.slane %v3772, %v4002
    %v4005 = vunpack.c.l.s4 1983009808
    %v4006 = vunpack.c.0.s8 %v4005
    %v4007 = vlaneseq
    %v4008 = vshrl.u32 %v4007, 7
    %v4009 = vsub.s32 %v4006, %v4008
    %v4010 = vrot.slane %v3996, %v4009
    %v4011 = vcombine.high %v4003, %v4003
    %v4012 = vcombine.high %v4010, %v4010
    %v4013 = vcombine.high %v3773, %v3773
    %v4015 = vunpack.c.l.s4 1983009808
    %v4016 = vunpack.c.0.s8 %v4015
    %v4017 = vlaneseq
    %v4018 = vshrl.u32 %v4017, 7
    %v4019 = vsub.s32 %v4016, %v4018
    %v4020 = vrot.slane %v3773, %v4019
    %v4022 = vunpack.c.l.s4 1983009808
    %v4023 = vunpack.c.0.s8 %v4022
    %v4024 = vlaneseq
    %v4025 = vshrl.u32 %v4024, 7
    %v4026 = vsub.s32 %v4023, %v4025
    %v4027 = vrot.slane %v4013, %v4026
    %v4028 = vcombine.high %v4020, %v4020
    %v4029 = vcombine.high %v4027, %v4027
    %v4030 = vcombine.high %v3774, %v3774
    %v4032 = vunpack.c.l.s4 1983009808
    %v4033 = vunpack.c.0.s8 %v4032
    %v4034 = vlaneseq
    %v4035 = vshrl.u32 %v4034, 7
    %v4036 = vsub.s32 %v4033, %v4035
    %v4037 = vrot.slane %v3774, %v4036
    %v4039 = vunpack.c.l.s4 1983009808
    %v4040 = vunpack.c.0.s8 %v4039
    %v4041 = vlaneseq
    %v4042 = vshrl.u32 %v4041, 7
    %v4043 = vsub.s32 %v4040, %v4042
    %v4044 = vrot.slane %v4030, %v4043
    %v4045 = vcombine.high %v4037, %v4037
    %v4046 = vcombine.high %v4044, %v4044
    %v4047 = vcombine.high %v3775, %v3775
    %v4049 = vunpack.c.l.s4 1983009808
    %v4050 = vunpack.c.0.s8 %v4049
    %v4051 = vlaneseq
    %v4052 = vshrl.u32 %v4051, 7
    %v4053 = vsub.s32 %v4050, %v4052
    %v4054 = vrot.slane %v3775, %v4053
    %v4056 = vunpack.c.l.s4 1983009808
    %v4057 = vunpack.c.0.s8 %v4056
    %v4058 = vlaneseq
    %v4059 = vshrl.u32 %v4058, 7
    %v4060 = vsub.s32 %v4057, %v4059
    %v4061 = vrot.slane %v4047, %v4060
    %v4062 = vcombine.high %v4054, %v4054
    %v4063 = vcombine.high %v4061, %v4061
    %v4128 = vsel %vm2511, %v3799, -inf
    %v4129 = vsel %vm2511, %v3807, -inf
    %v4130 = vmax.f32 %v4128, %v4129
    %v4131 = vsel %vm2511, %v3806, -inf
    %v4132 = vsel %vm2511, %v3808, -inf
    %v4133 = vmax.f32 %v4131, %v4132
    %v4134 = vsel %vm2511, %v3816, -inf
    %v4135 = vsel %vm2511, %v3824, -inf
    %v4136 = vmax.f32 %v4134, %v4135
    %v4137 = vsel %vm2511, %v3823, -inf
    %v4138 = vsel %vm2511, %v3825, -inf
    %v4139 = vmax.f32 %v4137, %v4138
    %v4140 = vsel %vm2511, %v3833, -inf
    %v4141 = vsel %vm2511, %v3841, -inf
    %v4142 = vmax.f32 %v4140, %v4141
    %v4143 = vsel %vm2511, %v3840, -inf
    %v4144 = vsel %vm2511, %v3842, -inf
    %v4145 = vmax.f32 %v4143, %v4144
    %v4146 = vsel %vm2511, %v3850, -inf
    %v4147 = vsel %vm2511, %v3858, -inf
    %v4148 = vmax.f32 %v4146, %v4147
    %v4149 = vsel %vm2511, %v3857, -inf
    %v4150 = vsel %vm2511, %v3859, -inf
    %v4151 = vmax.f32 %v4149, %v4150
    %v4152 = vsel %vm2511, %v3867, -inf
    %v4153 = vsel %vm2511, %v3875, -inf
    %v4154 = vmax.f32 %v4152, %v4153
    %v4155 = vsel %vm2511, %v3874, -inf
    %v4156 = vsel %vm2511, %v3876, -inf
    %v4157 = vmax.f32 %v4155, %v4156
    %v4158 = vsel %vm2511, %v3884, -inf
    %v4159 = vsel %vm2511, %v3892, -inf
    %v4160 = vmax.f32 %v4158, %v4159
    %v4161 = vsel %vm2511, %v3891, -inf
    %v4162 = vsel %vm2511, %v3893, -inf
    %v4163 = vmax.f32 %v4161, %v4162
    %v4164 = vsel %vm2511, %v3901, -inf
    %v4165 = vsel %vm2511, %v3909, -inf
    %v4166 = vmax.f32 %v4164, %v4165
    %v4167 = vsel %vm2511, %v3908, -inf
    %v4168 = vsel %vm2511, %v3910, -inf
    %v4169 = vmax.f32 %v4167, %v4168
    %v4170 = vsel %vm2511, %v3918, -inf
    %v4171 = vsel %vm2511, %v3926, -inf
    %v4172 = vmax.f32 %v4170, %v4171
    %v4173 = vsel %vm2511, %v3925, -inf
    %v4174 = vsel %vm2511, %v3927, -inf
    %v4175 = vmax.f32 %v4173, %v4174
    %v4176 = vsel %vm2511, %v3935, -inf
    %v4177 = vsel %vm2511, %v3943, -inf
    %v4178 = vmax.f32 %v4176, %v4177
    %v4179 = vsel %vm2511, %v3942, -inf
    %v4180 = vsel %vm2511, %v3944, -inf
    %v4181 = vmax.f32 %v4179, %v4180
    %v4182 = vsel %vm2511, %v3952, -inf
    %v4183 = vsel %vm2511, %v3960, -inf
    %v4184 = vmax.f32 %v4182, %v4183
    %v4185 = vsel %vm2511, %v3959, -inf
    %v4186 = vsel %vm2511, %v3961, -inf
    %v4187 = vmax.f32 %v4185, %v4186
    %v4188 = vsel %vm2511, %v3969, -inf
    %v4189 = vsel %vm2511, %v3977, -inf
    %v4190 = vmax.f32 %v4188, %v4189
    %v4191 = vsel %vm2511, %v3976, -inf
    %v4192 = vsel %vm2511, %v3978, -inf
    %v4193 = vmax.f32 %v4191, %v4192
    %v4194 = vsel %vm2511, %v3986, -inf
    %v4195 = vsel %vm2511, %v3994, -inf
    %v4196 = vmax.f32 %v4194, %v4195
    %v4197 = vsel %vm2511, %v3993, -inf
    %v4198 = vsel %vm2511, %v3995, -inf
    %v4199 = vmax.f32 %v4197, %v4198
    %v4200 = vsel %vm2511, %v4003, -inf
    %v4201 = vsel %vm2511, %v4011, -inf
    %v4202 = vmax.f32 %v4200, %v4201
    %v4203 = vsel %vm2511, %v4010, -inf
    %v4204 = vsel %vm2511, %v4012, -inf
    %v4205 = vmax.f32 %v4203, %v4204
    %v4206 = vsel %vm2511, %v4020, -inf
    %v4207 = vsel %vm2511, %v4028, -inf
    %v4208 = vmax.f32 %v4206, %v4207
    %v4209 = vsel %vm2511, %v4027, -inf
    %v4210 = vsel %vm2511, %v4029, -inf
    %v4211 = vmax.f32 %v4209, %v4210
    %v4212 = vsel %vm2511, %v4037, -inf
    %v4213 = vsel %vm2511, %v4045, -inf
    %v4214 = vmax.f32 %v4212, %v4213
    %v4215 = vsel %vm2511, %v4044, -inf
    %v4216 = vsel %vm2511, %v4046, -inf
    %v4217 = vmax.f32 %v4215, %v4216
    %v4218 = vsel %vm2511, %v4054, -inf
    %v4219 = vsel %vm2511, %v4062, -inf
    %v4220 = vmax.f32 %v4218, %v4219
    %v4221 = vsel %vm2511, %v4061, -inf
    %v4222 = vsel %vm2511, %v4063, -inf
    %v4223 = vmax.f32 %v4221, %v4222
    %v4224 = vsel %vm2511, %v4130, -inf
    %v4225 = vsel %vm2511, %v4142, -inf
    %v4226 = vmax.f32 %v4224, %v4225
    %v4227 = vsel %vm2511, %v4133, -inf
    %v4228 = vsel %vm2511, %v4145, -inf
    %v4229 = vmax.f32 %v4227, %v4228
    %v4230 = vsel %vm2511, %v4136, -inf
    %v4231 = vsel %vm2511, %v4148, -inf
    %v4232 = vmax.f32 %v4230, %v4231
    %v4233 = vsel %vm2511, %v4139, -inf
    %v4234 = vsel %vm2511, %v4151, -inf
    %v4235 = vmax.f32 %v4233, %v4234
    %v4236 = vsel %vm2511, %v4154, -inf
    %v4237 = vsel %vm2511, %v4166, -inf
    %v4238 = vmax.f32 %v4236, %v4237
    %v4239 = vsel %vm2511, %v4157, -inf
    %v4240 = vsel %vm2511, %v4169, -inf
    %v4241 = vmax.f32 %v4239, %v4240
    %v4242 = vsel %vm2511, %v4160, -inf
    %v4243 = vsel %vm2511, %v4172, -inf
    %v4244 = vmax.f32 %v4242, %v4243
    %v4245 = vsel %vm2511, %v4163, -inf
    %v4246 = vsel %vm2511, %v4175, -inf
    %v4247 = vmax.f32 %v4245, %v4246
    %v4248 = vsel %vm2511, %v4178, -inf
    %v4249 = vsel %vm2511, %v4190, -inf
    %v4250 = vmax.f32 %v4248, %v4249
    %v4251 = vsel %vm2511, %v4181, -inf
    %v4252 = vsel %vm2511, %v4193, -inf
    %v4253 = vmax.f32 %v4251, %v4252
    %v4254 = vsel %vm2511, %v4184, -inf
    %v4255 = vsel %vm2511, %v4196, -inf
    %v4256 = vmax.f32 %v4254, %v4255
    %v4257 = vsel %vm2511, %v4187, -inf
    %v4258 = vsel %vm2511, %v4199, -inf
    %v4259 = vmax.f32 %v4257, %v4258
    %v4260 = vsel %vm2511, %v4202, -inf
    %v4261 = vsel %vm2511, %v4214, -inf
    %v4262 = vmax.f32 %v4260, %v4261
    %v4263 = vsel %vm2511, %v4205, -inf
    %v4264 = vsel %vm2511, %v4217, -inf
    %v4265 = vmax.f32 %v4263, %v4264
    %v4266 = vsel %vm2511, %v4208, -inf
    %v4267 = vsel %vm2511, %v4220, -inf
    %v4268 = vmax.f32 %v4266, %v4267
    %v4269 = vsel %vm2511, %v4211, -inf
    %v4270 = vsel %vm2511, %v4223, -inf
    %v4271 = vmax.f32 %v4269, %v4270
    %v4272 = vpack.c.bf16 %v4226, %v4226
    %v4273 = vpack.c.bf16 %v4229, %v4229
    %v4274 = vpack.c.bf16 %v4232, %v4232
    %v4275 = vpack.c.bf16 %v4235, %v4235
    %v4276 = vpack.c.bf16 %v4238, %v4238
    %v4277 = vpack.c.bf16 %v4241, %v4241
    %v4278 = vpack.c.bf16 %v4244, %v4244
    %v4279 = vpack.c.bf16 %v4247, %v4247
    %v4280 = vpack.c.bf16 %v4250, %v4250
    %v4281 = vpack.c.bf16 %v4253, %v4253
    %v4282 = vpack.c.bf16 %v4256, %v4256
    %v4283 = vpack.c.bf16 %v4259, %v4259
    %v4284 = vpack.c.bf16 %v4262, %v4262
    %v4285 = vpack.c.bf16 %v4265, %v4265
    %v4286 = vpack.c.bf16 %v4268, %v4268
    %v4287 = vpack.c.bf16 %v4271, %v4271
    %v4288 = vld [vmem:[%s9] sm:$0xf]
    %v4289 = vld [vmem:[%s9 + $0x4] sm:$0xf]
    %v4290 = vld [vmem:[%s9 + $0x8] sm:$0xf]
    %v4291 = vld [vmem:[%s9 + $0xc] sm:$0xf]
    %v4292 = vld [vmem:[%s9 + $0x10] sm:$0xf]
    %v4293 = vld [vmem:[%s9 + $0x14] sm:$0xf]
    %v4294 = vld [vmem:[%s9 + $0x18] sm:$0xf]
    %v4295 = vld [vmem:[%s9 + $0x1c] sm:$0xf]
    %v4296 = vld [vmem:[%s9 + $0x20] sm:$0xf]
    %v4297 = vld [vmem:[%s9 + $0x24] sm:$0xf]
    %v4298 = vld [vmem:[%s9 + $0x28] sm:$0xf]
    %v4299 = vld [vmem:[%s9 + $0x2c] sm:$0xf]
    %v4300 = vld [vmem:[%s9 + $0x30] sm:$0xf]
    %v4301 = vld [vmem:[%s9 + $0x34] sm:$0xf]
    %v4302 = vld [vmem:[%s9 + $0x38] sm:$0xf]
    %v4303 = vld [vmem:[%s9 + $0x3c] sm:$0xf]
    %v4304 = vld [vmem:[%s9 + $0x40] sm:$0xf]
    %v4305 = vld [vmem:[%s9 + $0x44] sm:$0xf]
    %v4306 = vld [vmem:[%s9 + $0x48] sm:$0xf]
    %v4307 = vld [vmem:[%s9 + $0x4c] sm:$0xf]
    %v4308 = vld [vmem:[%s9 + $0x50] sm:$0xf]
    %v4309 = vld [vmem:[%s9 + $0x54] sm:$0xf]
    %v4310 = vld [vmem:[%s9 + $0x58] sm:$0xf]
    %v4311 = vld [vmem:[%s9 + $0x5c] sm:$0xf]
    %v4312 = vld [vmem:[%s9 + $0x60] sm:$0xf]
    %v4313 = vld [vmem:[%s9 + $0x64] sm:$0xf]
    %v4314 = vld [vmem:[%s9 + $0x68] sm:$0xf]
    %v4315 = vld [vmem:[%s9 + $0x6c] sm:$0xf]
    %v4316 = vld [vmem:[%s9 + $0x70] sm:$0xf]
    %v4317 = vld [vmem:[%s9 + $0x74] sm:$0xf]
    %v4318 = vld [vmem:[%s9 + $0x78] sm:$0xf]
    %v4319 = vld [vmem:[%s9 + $0x7c] sm:$0xf]
    %v4320 = vld [vmem:[%s9 + $0x80] sm:$0xf]
    %v4321 = vld [vmem:[%s9 + $0x84] sm:$0xf]
    %v4322 = vld [vmem:[%s9 + $0x88] sm:$0xf]
    %v4323 = vld [vmem:[%s9 + $0x8c] sm:$0xf]
    %v4324 = vld [vmem:[%s9 + $0x90] sm:$0xf]
    %v4325 = vld [vmem:[%s9 + $0x94] sm:$0xf]
    %v4326 = vld [vmem:[%s9 + $0x98] sm:$0xf]
    %v4327 = vld [vmem:[%s9 + $0x9c] sm:$0xf]
    %v4328 = vld [vmem:[%s9 + $0xa0] sm:$0xf]
    %v4329 = vld [vmem:[%s9 + $0xa4] sm:$0xf]
    %v4330 = vld [vmem:[%s9 + $0xa8] sm:$0xf]
    %v4331 = vld [vmem:[%s9 + $0xac] sm:$0xf]
    %v4332 = vld [vmem:[%s9 + $0xb0] sm:$0xf]
    %v4333 = vld [vmem:[%s9 + $0xb4] sm:$0xf]
    %v4334 = vld [vmem:[%s9 + $0xb8] sm:$0xf]
    %v4335 = vld [vmem:[%s9 + $0xbc] sm:$0xf]
    %v4336 = vld [vmem:[%s9 + $0xc0] sm:$0xf]
    %v4337 = vld [vmem:[%s9 + $0xc4] sm:$0xf]
    %v4338 = vld [vmem:[%s9 + $0xc8] sm:$0xf]
    %v4339 = vld [vmem:[%s9 + $0xcc] sm:$0xf]
    %v4340 = vld [vmem:[%s9 + $0xd0] sm:$0xf]
    %v4341 = vld [vmem:[%s9 + $0xd4] sm:$0xf]
    %v4342 = vld [vmem:[%s9 + $0xd8] sm:$0xf]
    %v4343 = vld [vmem:[%s9 + $0xdc] sm:$0xf]
    %v4344 = vld [vmem:[%s9 + $0xe0] sm:$0xf]
    %v4345 = vld [vmem:[%s9 + $0xe4] sm:$0xf]
    %v4346 = vld [vmem:[%s9 + $0xe8] sm:$0xf]
    %v4347 = vld [vmem:[%s9 + $0xec] sm:$0xf]
    %v4348 = vld [vmem:[%s9 + $0xf0] sm:$0xf]
    %v4349 = vld [vmem:[%s9 + $0xf4] sm:$0xf]
    %v4350 = vld [vmem:[%s9 + $0xf8] sm:$0xf]
    %v4351 = vld [vmem:[%s9 + $0xfc] sm:$0xf]
    %v4356 = vunpack.c.l.b16 %v4288
    %v4357 = vunpack.c.l.b16 %v4289
    %v4358 = vunpack.c.l.b16 %v4290
    %v4359 = vunpack.c.l.b16 %v4291
    %v4360 = vpack.c.b16 %v4357, %v4356
    %v4361 = vpack.c.b16 %v4359, %v4358
    %v4365 = vsel %vm653, %v4272, 0
    %4367 = vmatprep.subr.bf16.mxu0 0
    %4368 = vmatpush1.bf16.msra.mxu0 %v4360
    %4369 = vmatprep.subr.bf16.mxu0 0
    %4370 = vmatpush1.bf16.msra.mxu0 %v4361
    %4371 = vmatprep.subr.bf16.mxu0 0
    %4372 = vmatpush1.bf16.msra.mxu0 0
    %4373 = vmatprep.subr.bf16.mxu0 0
    %4374 = vmatpush1.bf16.msra.mxu0 0
    %4375 = vmatprep.subr.bf16.mxu0 0
    %4376 = vmatpush1.bf16.msra.mxu0 0
    %4377 = vmatprep.subr.bf16.mxu0 0
    %4378 = vmatpush1.bf16.msra.mxu0 0
    %4379 = vmatprep.subr.bf16.mxu0 0
    %4380 = vmatpush1.bf16.msra.mxu0 0
    %4381 = vmatprep.subr.bf16.mxu0 0
    %4382 = vmatpush1.bf16.msra.mxu0 0
    %4383 = vmatprep.subr.bf16.mxu0 0
    %4384 = vmatpush1.bf16.msra.mxu0 0
    %4385 = vmatprep.subr.bf16.mxu0 0
    %4386 = vmatpush1.bf16.msra.mxu0 0
    %4387 = vmatprep.subr.bf16.mxu0 0
    %4388 = vmatpush1.bf16.msra.mxu0 0
    %4389 = vmatprep.subr.bf16.mxu0 0
    %4390 = vmatpush1.bf16.msra.mxu0 0
    %4391 = vmatprep.subr.bf16.mxu0 0
    %4392 = vmatpush1.bf16.msra.mxu0 0
    %4393 = vmatprep.subr.bf16.mxu0 0
    %4394 = vmatpush1.bf16.msra.mxu0 0
    %4395 = vmatprep.subr.bf16.mxu0 0
    %4396 = vmatpush1.bf16.msra.mxu0 0
    %4397 = vmatprep.subr.bf16.mxu0 0
    %4398 = vmatpush1.bf16.msra.mxu0 0
    %4399 = vmatprep.mubr.bf16.mxu0 0
    %4400 = vmatmul.mubr.bf16.gmra.mrb[0].mxu0 %v4365
    %v4401 = vpop.f32.mrb[0].mxu0
    %v4402 = vadd.f32 0.0, %v4401
    %v4403 = vpop.f32.mrb[0].mxu0
    %v4404 = vpop.f32.mrb[0].mxu0
    %v4405 = vpop.f32.mrb[0].mxu0
    %4406 = vdwg.mxu0
    %v4411 = vunpack.c.l.b16 %v4292
    %v4412 = vunpack.c.l.b16 %v4293
    %v4413 = vunpack.c.l.b16 %v4294
    %v4414 = vunpack.c.l.b16 %v4295
    %v4415 = vpack.c.b16 %v4412, %v4411
    %v4416 = vpack.c.b16 %v4414, %v4413
    %v4420 = vsel %vm653, %v4273, 0
    %4422 = vmatprep.subr.bf16.mxu0 0
    %4423 = vmatpush1.bf16.msra.mxu0 %v4415
    %4424 = vmatprep.subr.bf16.mxu0 0
    %4425 = vmatpush1.bf16.msra.mxu0 %v4416
    %4426 = vmatprep.subr.bf16.mxu0 0
    %4427 = vmatpush1.bf16.msra.mxu0 0
    %4428 = vmatprep.subr.bf16.mxu0 0
    %4429 = vmatpush1.bf16.msra.mxu0 0
    %4430 = vmatprep.subr.bf16.mxu0 0
    %4431 = vmatpush1.bf16.msra.mxu0 0
    %4432 = vmatprep.subr.bf16.mxu0 0
    %4433 = vmatpush1.bf16.msra.mxu0 0
    %4434 = vmatprep.subr.bf16.mxu0 0
    %4435 = vmatpush1.bf16.msra.mxu0 0
    %4436 = vmatprep.subr.bf16.mxu0 0
    %4437 = vmatpush1.bf16.msra.mxu0 0
    %4438 = vmatprep.subr.bf16.mxu0 0
    %4439 = vmatpush1.bf16.msra.mxu0 0
    %4440 = vmatprep.subr.bf16.mxu0 0
    %4441 = vmatpush1.bf16.msra.mxu0 0
    %4442 = vmatprep.subr.bf16.mxu0 0
    %4443 = vmatpush1.bf16.msra.mxu0 0
    %4444 = vmatprep.subr.bf16.mxu0 0
    %4445 = vmatpush1.bf16.msra.mxu0 0
    %4446 = vmatprep.subr.bf16.mxu0 0
    %4447 = vmatpush1.bf16.msra.mxu0 0
    %4448 = vmatprep.subr.bf16.mxu0 0
    %4449 = vmatpush1.bf16.msra.mxu0 0
    %4450 = vmatprep.subr.bf16.mxu0 0
    %4451 = vmatpush1.bf16.msra.mxu0 0
    %4452 = vmatprep.subr.bf16.mxu0 0
    %4453 = vmatpush1.bf16.msra.mxu0 0
    %4454 = vmatprep.mubr.bf16.mxu0 0
    %4455 = vmatmul.mubr.bf16.gmra.mrb[0].mxu0 %v4420
    %v4456 = vpop.f32.mrb[0].mxu0
    %v4457 = vadd.f32 0.0, %v4456
    %v4458 = vpop.f32.mrb[0].mxu0
    %v4459 = vpop.f32.mrb[0].mxu0
    %v4460 = vpop.f32.mrb[0].mxu0
    %4461 = vdwg.mxu0
    %v4466 = vunpack.c.l.b16 %v4296
    %v4467 = vunpack.c.l.b16 %v4297
    %v4468 = vunpack.c.l.b16 %v4298
    %v4469 = vunpack.c.l.b16 %v4299
    %v4470 = vpack.c.b16 %v4467, %v4466
    %v4471 = vpack.c.b16 %v4469, %v4468
    %v4475 = vsel %vm653, %v4274, 0
    %4477 = vmatprep.subr.bf16.mxu0 0
    %4478 = vmatpush1.bf16.msra.mxu0 %v4470
    %4479 = vmatprep.subr.bf16.mxu0 0
    %4480 = vmatpush1.bf16.msra.mxu0 %v4471
    %4481 = vmatprep.subr.bf16.mxu0 0
    %4482 = vmatpush1.bf16.msra.mxu0 0
    %4483 = vmatprep.subr.bf16.mxu0 0
    %4484 = vmatpush1.bf16.msra.mxu0 0
    %4485 = vmatprep.subr.bf16.mxu0 0
    %4486 = vmatpush1.bf16.msra.mxu0 0
    %4487 = vmatprep.subr.bf16.mxu0 0
    %4488 = vmatpush1.bf16.msra.mxu0 0
    %4489 = vmatprep.subr.bf16.mxu0 0
    %4490 = vmatpush1.bf16.msra.mxu0 0
    %4491 = vmatprep.subr.bf16.mxu0 0
    %4492 = vmatpush1.bf16.msra.mxu0 0
    %4493 = vmatprep.subr.bf16.mxu0 0
    %4494 = vmatpush1.bf16.msra.mxu0 0
    %4495 = vmatprep.subr.bf16.mxu0 0
    %4496 = vmatpush1.bf16.msra.mxu0 0
    %4497 = vmatprep.subr.bf16.mxu0 0
    %4498 = vmatpush1.bf16.msra.mxu0 0
    %4499 = vmatprep.subr.bf16.mxu0 0
    %4500 = vmatpush1.bf16.msra.mxu0 0
    %4501 = vmatprep.subr.bf16.mxu0 0
    %4502 = vmatpush1.bf16.msra.mxu0 0
    %4503 = vmatprep.subr.bf16.mxu0 0
    %4504 = vmatpush1.bf16.msra.mxu0 0
    %4505 = vmatprep.subr.bf16.mxu0 0
    %4506 = vmatpush1.bf16.msra.mxu0 0
    %4507 = vmatprep.subr.bf16.mxu0 0
    %4508 = vmatpush1.bf16.msra.mxu0 0
    %4509 = vmatprep.mubr.bf16.mxu0 0
    %4510 = vmatmul.mubr.bf16.gmra.mrb[0].mxu0 %v4475
    %v4511 = vpop.f32.mrb[0].mxu0
    %v4512 = vadd.f32 0.0, %v4511
    %v4513 = vpop.f32.mrb[0].mxu0
    %v4514 = vpop.f32.mrb[0].mxu0
    %v4515 = vpop.f32.mrb[0].mxu0
    %4516 = vdwg.mxu0
    %v4521 = vunpack.c.l.b16 %v4300
    %v4522 = vunpack.c.l.b16 %v4301
    %v4523 = vunpack.c.l.b16 %v4302
    %v4524 = vunpack.c.l.b16 %v4303
    %v4525 = vpack.c.b16 %v4522, %v4521
    %v4526 = vpack.c.b16 %v4524, %v4523
    %v4530 = vsel %vm653, %v4275, 0
    %4532 = vmatprep.subr.bf16.mxu0 0
    %4533 = vmatpush1.bf16.msra.mxu0 %v4525
    %4534 = vmatprep.subr.bf16.mxu0 0
    %4535 = vmatpush1.bf16.msra.mxu0 %v4526
    %4536 = vmatprep.subr.bf16.mxu0 0
    %4537 = vmatpush1.bf16.msra.mxu0 0
    %4538 = vmatprep.subr.bf16.mxu0 0
    %4539 = vmatpush1.bf16.msra.mxu0 0
    %4540 = vmatprep.subr.bf16.mxu0 0
    %4541 = vmatpush1.bf16.msra.mxu0 0
    %4542 = vmatprep.subr.bf16.mxu0 0
    %4543 = vmatpush1.bf16.msra.mxu0 0
    %4544 = vmatprep.subr.bf16.mxu0 0
    %4545 = vmatpush1.bf16.msra.mxu0 0
    %4546 = vmatprep.subr.bf16.mxu0 0
    %4547 = vmatpush1.bf16.msra.mxu0 0
    %4548 = vmatprep.subr.bf16.mxu0 0
    %4549 = vmatpush1.bf16.msra.mxu0 0
    %4550 = vmatprep.subr.bf16.mxu0 0
    %4551 = vmatpush1.bf16.msra.mxu0 0
    %4552 = vmatprep.subr.bf16.mxu0 0
    %4553 = vmatpush1.bf16.msra.mxu0 0
    %4554 = vmatprep.subr.bf16.mxu0 0
    %4555 = vmatpush1.bf16.msra.mxu0 0
    %4556 = vmatprep.subr.bf16.mxu0 0
    %4557 = vmatpush1.bf16.msra.mxu0 0
    %4558 = vmatprep.subr.bf16.mxu0 0
    %4559 = vmatpush1.bf16.msra.mxu0 0
    %4560 = vmatprep.subr.bf16.mxu0 0
    %4561 = vmatpush1.bf16.msra.mxu0 0
    %4562 = vmatprep.subr.bf16.mxu0 0
    %4563 = vmatpush1.bf16.msra.mxu0 0
    %4564 = vmatprep.mubr.bf16.mxu0 0
    %4565 = vmatmul.mubr.bf16.gmra.mrb[0].mxu0 %v4530
    %v4566 = vpop.f32.mrb[0].mxu0
    %v4567 = vadd.f32 0.0, %v4566
    %v4568 = vpop.f32.mrb[0].mxu0
    %v4569 = vpop.f32.mrb[0].mxu0
    %v4570 = vpop.f32.mrb[0].mxu0
    %4571 = vdwg.mxu0
    %v4576 = vunpack.c.l.b16 %v4304
    %v4577 = vunpack.c.l.b16 %v4305
    %v4578 = vunpack.c.l.b16 %v4306
    %v4579 = vunpack.c.l.b16 %v4307
    %v4580 = vpack.c.b16 %v4577, %v4576
    %v4581 = vpack.c.b16 %v4579, %v4578
    %v4585 = vsel %vm653, %v4276, 0
    %4587 = vmatprep.subr.bf16.mxu0 0
    %4588 = vmatpush1.bf16.msra.mxu0 %v4580
    %4589 = vmatprep.subr.bf16.mxu0 0
    %4590 = vmatpush1.bf16.msra.mxu0 %v4581
    %4591 = vmatprep.subr.bf16.mxu0 0
    %4592 = vmatpush1.bf16.msra.mxu0 0
    %4593 = vmatprep.subr.bf16.mxu0 0
    %4594 = vmatpush1.bf16.msra.mxu0 0
    %4595 = vmatprep.subr.bf16.mxu0 0
    %4596 = vmatpush1.bf16.msra.mxu0 0
    %4597 = vmatprep.subr.bf16.mxu0 0
    %4598 = vmatpush1.bf16.msra.mxu0 0
    %4599 = vmatprep.subr.bf16.mxu0 0
    %4600 = vmatpush1.bf16.msra.mxu0 0
    %4601 = vmatprep.subr.bf16.mxu0 0
    %4602 = vmatpush1.bf16.msra.mxu0 0
    %4603 = vmatprep.subr.bf16.mxu0 0
    %4604 = vmatpush1.bf16.msra.mxu0 0
    %4605 = vmatprep.subr.bf16.mxu0 0
    %4606 = vmatpush1.bf16.msra.mxu0 0
    %4607 = vmatprep.subr.bf16.mxu0 0
    %4608 = vmatpush1.bf16.msra.mxu0 0
    %4609 = vmatprep.subr.bf16.mxu0 0
    %4610 = vmatpush1.bf16.msra.mxu0 0
    %4611 = vmatprep.subr.bf16.mxu0 0
    %4612 = vmatpush1.bf16.msra.mxu0 0
    %4613 = vmatprep.subr.bf16.mxu0 0
    %4614 = vmatpush1.bf16.msra.mxu0 0
    %4615 = vmatprep.subr.bf16.mxu0 0
    %4616 = vmatpush1.bf16.msra.mxu0 0
    %4617 = vmatprep.subr.bf16.mxu0 0
    %4618 = vmatpush1.bf16.msra.mxu0 0
    %4619 = vmatprep.mubr.bf16.mxu0 0
    %4620 = vmatmul.mubr.bf16.gmra.mrb[0].mxu0 %v4585
    %v4621 = vpop.f32.mrb[0].mxu0
    %v4622 = vadd.f32 0.0, %v4621
    %v4623 = vpop.f32.mrb[0].mxu0
    %v4624 = vpop.f32.mrb[0].mxu0
    %v4625 = vpop.f32.mrb[0].mxu0
    %4626 = vdwg.mxu0
    %v4631 = vunpack.c.l.b16 %v4308
    %v4632 = vunpack.c.l.b16 %v4309
    %v4633 = vunpack.c.l.b16 %v4310
    %v4634 = vunpack.c.l.b16 %v4311
    %v4635 = vpack.c.b16 %v4632, %v4631
    %v4636 = vpack.c.b16 %v4634, %v4633
    %v4640 = vsel %vm653, %v4277, 0
    %4642 = vmatprep.subr.bf16.mxu0 0
    %4643 = vmatpush1.bf16.msra.mxu0 %v4635
    %4644 = vmatprep.subr.bf16.mxu0 0
    %4645 = vmatpush1.bf16.msra.mxu0 %v4636
    %4646 = vmatprep.subr.bf16.mxu0 0
    %4647 = vmatpush1.bf16.msra.mxu0 0
    %4648 = vmatprep.subr.bf16.mxu0 0
    %4649 = vmatpush1.bf16.msra.mxu0 0
    %4650 = vmatprep.subr.bf16.mxu0 0
    %4651 = vmatpush1.bf16.msra.mxu0 0
    %4652 = vmatprep.subr.bf16.mxu0 0
    %4653 = vmatpush1.bf16.msra.mxu0 0
    %4654 = vmatprep.subr.bf16.mxu0 0
    %4655 = vmatpush1.bf16.msra.mxu0 0
    %4656 = vmatprep.subr.bf16.mxu0 0
    %4657 = vmatpush1.bf16.msra.mxu0 0
    %4658 = vmatprep.subr.bf16.mxu0 0
    %4659 = vmatpush1.bf16.msra.mxu0 0
    %4660 = vmatprep.subr.bf16.mxu0 0
    %4661 = vmatpush1.bf16.msra.mxu0 0
    %4662 = vmatprep.subr.bf16.mxu0 0
    %4663 = vmatpush1.bf16.msra.mxu0 0
    %4664 = vmatprep.subr.bf16.mxu0 0
    %4665 = vmatpush1.bf16.msra.mxu0 0
    %4666 = vmatprep.subr.bf16.mxu0 0
    %4667 = vmatpush1.bf16.msra.mxu0 0
    %4668 = vmatprep.subr.bf16.mxu0 0
    %4669 = vmatpush1.bf16.msra.mxu0 0
    %4670 = vmatprep.subr.bf16.mxu0 0
    %4671 = vmatpush1.bf16.msra.mxu0 0
    %4672 = vmatprep.subr.bf16.mxu0 0
    %4673 = vmatpush1.bf16.msra.mxu0 0
    %4674 = vmatprep.mubr.bf16.mxu0 0
    %4675 = vmatmul.mubr.bf16.gmra.mrb[0].mxu0 %v4640
    %v4676 = vpop.f32.mrb[0].mxu0
    %v4677 = vadd.f32 0.0, %v4676
    %v4678 = vpop.f32.mrb[0].mxu0
    %v4679 = vpop.f32.mrb[0].mxu0
    %v4680 = vpop.f32.mrb[0].mxu0
    %4681 = vdwg.mxu0
    %v4686 = vunpack.c.l.b16 %v4312
    %v4687 = vunpack.c.l.b16 %v4313
    %v4688 = vunpack.c.l.b16 %v4314
    %v4689 = vunpack.c.l.b16 %v4315
    %v4690 = vpack.c.b16 %v4687, %v4686
    %v4691 = vpack.c.b16 %v4689, %v4688
    %v4695 = vsel %vm653, %v4278, 0
    %4697 = vmatprep.subr.bf16.mxu0 0
    %4698 = vmatpush1.bf16.msra.mxu0 %v4690
    %4699 = vmatprep.subr.bf16.mxu0 0
    %4700 = vmatpush1.bf16.msra.mxu0 %v4691
    %4701 = vmatprep.subr.bf16.mxu0 0
    %4702 = vmatpush1.bf16.msra.mxu0 0
    %4703 = vmatprep.subr.bf16.mxu0 0
    %4704 = vmatpush1.bf16.msra.mxu0 0
    %4705 = vmatprep.subr.bf16.mxu0 0
    %4706 = vmatpush1.bf16.msra.mxu0 0
    %4707 = vmatprep.subr.bf16.mxu0 0
    %4708 = vmatpush1.bf16.msra.mxu0 0
    %4709 = vmatprep.subr.bf16.mxu0 0
    %4710 = vmatpush1.bf16.msra.mxu0 0
    %4711 = vmatprep.subr.bf16.mxu0 0
    %4712 = vmatpush1.bf16.msra.mxu0 0
    %4713 = vmatprep.subr.bf16.mxu0 0
    %4714 = vmatpush1.bf16.msra.mxu0 0
    %4715 = vmatprep.subr.bf16.mxu0 0
    %4716 = vmatpush1.bf16.msra.mxu0 0
    %4717 = vmatprep.subr.bf16.mxu0 0
    %4718 = vmatpush1.bf16.msra.mxu0 0
    %4719 = vmatprep.subr.bf16.mxu0 0
    %4720 = vmatpush1.bf16.msra.mxu0 0
    %4721 = vmatprep.subr.bf16.mxu0 0
    %4722 = vmatpush1.bf16.msra.mxu0 0
    %4723 = vmatprep.subr.bf16.mxu0 0
    %4724 = vmatpush1.bf16.msra.mxu0 0
    %4725 = vmatprep.subr.bf16.mxu0 0
    %4726 = vmatpush1.bf16.msra.mxu0 0
    %4727 = vmatprep.subr.bf16.mxu0 0
    %4728 = vmatpush1.bf16.msra.mxu0 0
    %4729 = vmatprep.mubr.bf16.mxu0 0
    %4730 = vmatmul.mubr.bf16.gmra.mrb[0].mxu0 %v4695
    %v4731 = vpop.f32.mrb[0].mxu0
    %v4732 = vadd.f32 0.0, %v4731
    %v4733 = vpop.f32.mrb[0].mxu0
    %v4734 = vpop.f32.mrb[0].mxu0
    %v4735 = vpop.f32.mrb[0].mxu0
    %4736 = vdwg.mxu0
    %v4741 = vunpack.c.l.b16 %v4316
    %v4742 = vunpack.c.l.b16 %v4317
    %v4743 = vunpack.c.l.b16 %v4318
    %v4744 = vunpack.c.l.b16 %v4319
    %v4745 = vpack.c.b16 %v4742, %v4741
    %v4746 = vpack.c.b16 %v4744, %v4743
    %v4750 = vsel %vm653, %v4279, 0
    %4752 = vmatprep.subr.bf16.mxu0 0
    %4753 = vmatpush1.bf16.msra.mxu0 %v4745
    %4754 = vmatprep.subr.bf16.mxu0 0
    %4755 = vmatpush1.bf16.msra.mxu0 %v4746
    %4756 = vmatprep.subr.bf16.mxu0 0
    %4757 = vmatpush1.bf16.msra.mxu0 0
    %4758 = vmatprep.subr.bf16.mxu0 0
    %4759 = vmatpush1.bf16.msra.mxu0 0
    %4760 = vmatprep.subr.bf16.mxu0 0
    %4761 = vmatpush1.bf16.msra.mxu0 0
    %4762 = vmatprep.subr.bf16.mxu0 0
    %4763 = vmatpush1.bf16.msra.mxu0 0
    %4764 = vmatprep.subr.bf16.mxu0 0
    %4765 = vmatpush1.bf16.msra.mxu0 0
    %4766 = vmatprep.subr.bf16.mxu0 0
    %4767 = vmatpush1.bf16.msra.mxu0 0
    %4768 = vmatprep.subr.bf16.mxu0 0
    %4769 = vmatpush1.bf16.msra.mxu0 0
    %4770 = vmatprep.subr.bf16.mxu0 0
    %4771 = vmatpush1.bf16.msra.mxu0 0
    %4772 = vmatprep.subr.bf16.mxu0 0
    %4773 = vmatpush1.bf16.msra.mxu0 0
    %4774 = vmatprep.subr.bf16.mxu0 0
    %4775 = vmatpush1.bf16.msra.mxu0 0
    %4776 = vmatprep.subr.bf16.mxu0 0
    %4777 = vmatpush1.bf16.msra.mxu0 0
    %4778 = vmatprep.subr.bf16.mxu0 0
    %4779 = vmatpush1.bf16.msra.mxu0 0
    %4780 = vmatprep.subr.bf16.mxu0 0
    %4781 = vmatpush1.bf16.msra.mxu0 0
    %4782 = vmatprep.subr.bf16.mxu0 0
    %4783 = vmatpush1.bf16.msra.mxu0 0
    %4784 = vmatprep.mubr.bf16.mxu0 0
    %4785 = vmatmul.mubr.bf16.gmra.mrb[0].mxu0 %v4750
    %v4786 = vpop.f32.mrb[0].mxu0
    %v4787 = vadd.f32 0.0, %v4786
    %v4788 = vpop.f32.mrb[0].mxu0
    %v4789 = vpop.f32.mrb[0].mxu0
    %v4790 = vpop.f32.mrb[0].mxu0
    %4791 = vdwg.mxu0
    %v4796 = vunpack.c.l.b16 %v4320
    %v4797 = vunpack.c.l.b16 %v4321
    %v4798 = vunpack.c.l.b16 %v4322
    %v4799 = vunpack.c.l.b16 %v4323
    %v4800 = vpack.c.b16 %v4797, %v4796
    %v4801 = vpack.c.b16 %v4799, %v4798
    %v4805 = vsel %vm653, %v4280, 0
    %4807 = vmatprep.subr.bf16.mxu0 0
    %4808 = vmatpush1.bf16.msra.mxu0 %v4800
    %4809 = vmatprep.subr.bf16.mxu0 0
    %4810 = vmatpush1.bf16.msra.mxu0 %v4801
    %4811 = vmatprep.subr.bf16.mxu0 0
    %4812 = vmatpush1.bf16.msra.mxu0 0
    %4813 = vmatprep.subr.bf16.mxu0 0
    %4814 = vmatpush1.bf16.msra.mxu0 0
    %4815 = vmatprep.subr.bf16.mxu0 0
    %4816 = vmatpush1.bf16.msra.mxu0 0
    %4817 = vmatprep.subr.bf16.mxu0 0
    %4818 = vmatpush1.bf16.msra.mxu0 0
    %4819 = vmatprep.subr.bf16.mxu0 0
    %4820 = vmatpush1.bf16.msra.mxu0 0
    %4821 = vmatprep.subr.bf16.mxu0 0
    %4822 = vmatpush1.bf16.msra.mxu0 0
    %4823 = vmatprep.subr.bf16.mxu0 0
    %4824 = vmatpush1.bf16.msra.mxu0 0
    %4825 = vmatprep.subr.bf16.mxu0 0
    %4826 = vmatpush1.bf16.msra.mxu0 0
    %4827 = vmatprep.subr.bf16.mxu0 0
    %4828 = vmatpush1.bf16.msra.mxu0 0
    %4829 = vmatprep.subr.bf16.mxu0 0
    %4830 = vmatpush1.bf16.msra.mxu0 0
    %4831 = vmatprep.subr.bf16.mxu0 0
    %4832 = vmatpush1.bf16.msra.mxu0 0
    %4833 = vmatprep.subr.bf16.mxu0 0
    %4834 = vmatpush1.bf16.msra.mxu0 0
    %4835 = vmatprep.subr.bf16.mxu0 0
    %4836 = vmatpush1.bf16.msra.mxu0 0
    %4837 = vmatprep.subr.bf16.mxu0 0
    %4838 = vmatpush1.bf16.msra.mxu0 0
    %4839 = vmatprep.mubr.bf16.mxu0 0
    %4840 = vmatmul.mubr.bf16.gmra.mrb[0].mxu0 %v4805
    %v4841 = vpop.f32.mrb[0].mxu0
    %v4842 = vadd.f32 0.0, %v4841
    %v4843 = vpop.f32.mrb[0].mxu0
    %v4844 = vpop.f32.mrb[0].mxu0
    %v4845 = vpop.f32.mrb[0].mxu0
    %4846 = vdwg.mxu0
    %v4851 = vunpack.c.l.b16 %v4324
    %v4852 = vunpack.c.l.b16 %v4325
    %v4853 = vunpack.c.l.b16 %v4326
    %v4854 = vunpack.c.l.b16 %v4327
    %v4855 = vpack.c.b16 %v4852, %v4851
    %v4856 = vpack.c.b16 %v4854, %v4853
    %v4860 = vsel %vm653, %v4281, 0
    %4862 = vmatprep.subr.bf16.mxu0 0
    %4863 = vmatpush1.bf16.msra.mxu0 %v4855
    %4864 = vmatprep.subr.bf16.mxu0 0
    %4865 = vmatpush1.bf16.msra.mxu0 %v4856
    %4866 = vmatprep.subr.bf16.mxu0 0
    %4867 = vmatpush1.bf16.msra.mxu0 0
    %4868 = vmatprep.subr.bf16.mxu0 0
    %4869 = vmatpush1.bf16.msra.mxu0 0
    %4870 = vmatprep.subr.bf16.mxu0 0
    %4871 = vmatpush1.bf16.msra.mxu0 0
    %4872 = vmatprep.subr.bf16.mxu0 0
    %4873 = vmatpush1.bf16.msra.mxu0 0
    %4874 = vmatprep.subr.bf16.mxu0 0
    %4875 = vmatpush1.bf16.msra.mxu0 0
    %4876 = vmatprep.subr.bf16.mxu0 0
    %4877 = vmatpush1.bf16.msra.mxu0 0
    %4878 = vmatprep.subr.bf16.mxu0 0
    %4879 = vmatpush1.bf16.msra.mxu0 0
    %4880 = vmatprep.subr.bf16.mxu0 0
    %4881 = vmatpush1.bf16.msra.mxu0 0
    %4882 = vmatprep.subr.bf16.mxu0 0
    %4883 = vmatpush1.bf16.msra.mxu0 0
    %4884 = vmatprep.subr.bf16.mxu0 0
    %4885 = vmatpush1.bf16.msra.mxu0 0
    %4886 = vmatprep.subr.bf16.mxu0 0
    %4887 = vmatpush1.bf16.msra.mxu0 0
    %4888 = vmatprep.subr.bf16.mxu0 0
    %4889 = vmatpush1.bf16.msra.mxu0 0
    %4890 = vmatprep.subr.bf16.mxu0 0
    %4891 = vmatpush1.bf16.msra.mxu0 0
    %4892 = vmatprep.subr.bf16.mxu0 0
    %4893 = vmatpush1.bf16.msra.mxu0 0
    %4894 = vmatprep.mubr.bf16.mxu0 0
    %4895 = vmatmul.mubr.bf16.gmra.mrb[0].mxu0 %v4860
    %v4896 = vpop.f32.mrb[0].mxu0
    %v4897 = vadd.f32 0.0, %v4896
    %v4898 = vpop.f32.mrb[0].mxu0
    %v4899 = vpop.f32.mrb[0].mxu0
    %v4900 = vpop.f32.mrb[0].mxu0
    %4901 = vdwg.mxu0
    %v4906 = vunpack.c.l.b16 %v4328
    %v4907 = vunpack.c.l.b16 %v4329
    %v4908 = vunpack.c.l.b16 %v4330
    %v4909 = vunpack.c.l.b16 %v4331
    %v4910 = vpack.c.b16 %v4907, %v4906
    %v4911 = vpack.c.b16 %v4909, %v4908
    %v4915 = vsel %vm653, %v4282, 0
    %4917 = vmatprep.subr.bf16.mxu0 0
    %4918 = vmatpush1.bf16.msra.mxu0 %v4910
    %4919 = vmatprep.subr.bf16.mxu0 0
    %4920 = vmatpush1.bf16.msra.mxu0 %v4911
    %4921 = vmatprep.subr.bf16.mxu0 0
    %4922 = vmatpush1.bf16.msra.mxu0 0
    %4923 = vmatprep.subr.bf16.mxu0 0
    %4924 = vmatpush1.bf16.msra.mxu0 0
    %4925 = vmatprep.subr.bf16.mxu0 0
    %4926 = vmatpush1.bf16.msra.mxu0 0
    %4927 = vmatprep.subr.bf16.mxu0 0
    %4928 = vmatpush1.bf16.msra.mxu0 0
    %4929 = vmatprep.subr.bf16.mxu0 0
    %4930 = vmatpush1.bf16.msra.mxu0 0
    %4931 = vmatprep.subr.bf16.mxu0 0
    %4932 = vmatpush1.bf16.msra.mxu0 0
    %4933 = vmatprep.subr.bf16.mxu0 0
    %4934 = vmatpush1.bf16.msra.mxu0 0
    %4935 = vmatprep.subr.bf16.mxu0 0
    %4936 = vmatpush1.bf16.msra.mxu0 0
    %4937 = vmatprep.subr.bf16.mxu0 0
    %4938 = vmatpush1.bf16.msra.mxu0 0
    %4939 = vmatprep.subr.bf16.mxu0 0
    %4940 = vmatpush1.bf16.msra.mxu0 0
    %4941 = vmatprep.subr.bf16.mxu0 0
    %4942 = vmatpush1.bf16.msra.mxu0 0
    %4943 = vmatprep.subr.bf16.mxu0 0
    %4944 = vmatpush1.bf16.msra.mxu0 0
    %4945 = vmatprep.subr.bf16.mxu0 0
    %4946 = vmatpush1.bf16.msra.mxu0 0
    %4947 = vmatprep.subr.bf16.mxu0 0
    %4948 = vmatpush1.bf16.msra.mxu0 0
    %4949 = vmatprep.mubr.bf16.mxu0 0
    %4950 = vmatmul.mubr.bf16.gmra.mrb[0].mxu0 %v4915
    %v4951 = vpop.f32.mrb[0].mxu0
    %v4952 = vadd.f32 0.0, %v4951
    %v4953 = vpop.f32.mrb[0].mxu0
    %v4954 = vpop.f32.mrb[0].mxu0
    %v4955 = vpop.f32.mrb[0].mxu0
    %4956 = vdwg.mxu0
    %v4961 = vunpack.c.l.b16 %v4332
    %v4962 = vunpack.c.l.b16 %v4333
    %v4963 = vunpack.c.l.b16 %v4334
    %v4964 = vunpack.c.l.b16 %v4335
    %v4965 = vpack.c.b16 %v4962, %v4961
    %v4966 = vpack.c.b16 %v4964, %v4963
    %v4970 = vsel %vm653, %v4283, 0
    %4972 = vmatprep.subr.bf16.mxu0 0
    %4973 = vmatpush1.bf16.msra.mxu0 %v4965
    %4974 = vmatprep.subr.bf16.mxu0 0
    %4975 = vmatpush1.bf16.msra.mxu0 %v4966
    %4976 = vmatprep.subr.bf16.mxu0 0
    %4977 = vmatpush1.bf16.msra.mxu0 0
    %4978 = vmatprep.subr.bf16.mxu0 0
    %4979 = vmatpush1.bf16.msra.mxu0 0
    %4980 = vmatprep.subr.bf16.mxu0 0
    %4981 = vmatpush1.bf16.msra.mxu0 0
    %4982 = vmatprep.subr.bf16.mxu0 0
    %4983 = vmatpush1.bf16.msra.mxu0 0
    %4984 = vmatprep.subr.bf16.mxu0 0
    %4985 = vmatpush1.bf16.msra.mxu0 0
    %4986 = vmatprep.subr.bf16.mxu0 0
    %4987 = vmatpush1.bf16.msra.mxu0 0
    %4988 = vmatprep.subr.bf16.mxu0 0
    %4989 = vmatpush1.bf16.msra.mxu0 0
    %4990 = vmatprep.subr.bf16.mxu0 0
    %4991 = vmatpush1.bf16.msra.mxu0 0
    %4992 = vmatprep.subr.bf16.mxu0 0
    %4993 = vmatpush1.bf16.msra.mxu0 0
    %4994 = vmatprep.subr.bf16.mxu0 0
    %4995 = vmatpush1.bf16.msra.mxu0 0
    %4996 = vmatprep.subr.bf16.mxu0 0
    %4997 = vmatpush1.bf16.msra.mxu0 0
    %4998 = vmatprep.subr.bf16.mxu0 0
    %4999 = vmatpush1.bf16.msra.mxu0 0
    %5000 = vmatprep.subr.bf16.mxu0 0
    %5001 = vmatpush1.bf16.msra.mxu0 0
    %5002 = vmatprep.subr.bf16.mxu0 0
    %5003 = vmatpush1.bf16.msra.mxu0 0
    %5004 = vmatprep.mubr.bf16.mxu0 0
    %5005 = vmatmul.mubr.bf16.gmra.mrb[0].mxu0 %v4970
    %v5006 = vpop.f32.mrb[0].mxu0
    %v5007 = vadd.f32 0.0, %v5006
    %v5008 = vpop.f32.mrb[0].mxu0
    %v5009 = vpop.f32.mrb[0].mxu0
    %v5010 = vpop.f32.mrb[0].mxu0
    %5011 = vdwg.mxu0
    %v5016 = vunpack.c.l.b16 %v4336
    %v5017 = vunpack.c.l.b16 %v4337
    %v5018 = vunpack.c.l.b16 %v4338
    %v5019 = vunpack.c.l.b16 %v4339
    %v5020 = vpack.c.b16 %v5017, %v5016
    %v5021 = vpack.c.b16 %v5019, %v5018
    %v5025 = vsel %vm653, %v4284, 0
    %5027 = vmatprep.subr.bf16.mxu0 0
    %5028 = vmatpush1.bf16.msra.mxu0 %v5020
    %5029 = vmatprep.subr.bf16.mxu0 0
    %5030 = vmatpush1.bf16.msra.mxu0 %v5021
    %5031 = vmatprep.subr.bf16.mxu0 0
    %5032 = vmatpush1.bf16.msra.mxu0 0
    %5033 = vmatprep.subr.bf16.mxu0 0
    %5034 = vmatpush1.bf16.msra.mxu0 0
    %5035 = vmatprep.subr.bf16.mxu0 0
    %5036 = vmatpush1.bf16.msra.mxu0 0
    %5037 = vmatprep.subr.bf16.mxu0 0
    %5038 = vmatpush1.bf16.msra.mxu0 0
    %5039 = vmatprep.subr.bf16.mxu0 0
    %5040 = vmatpush1.bf16.msra.mxu0 0
    %5041 = vmatprep.subr.bf16.mxu0 0
    %5042 = vmatpush1.bf16.msra.mxu0 0
    %5043 = vmatprep.subr.bf16.mxu0 0
    %5044 = vmatpush1.bf16.msra.mxu0 0
    %5045 = vmatprep.subr.bf16.mxu0 0
    %5046 = vmatpush1.bf16.msra.mxu0 0
    %5047 = vmatprep.subr.bf16.mxu0 0
    %5048 = vmatpush1.bf16.msra.mxu0 0
    %5049 = vmatprep.subr.bf16.mxu0 0
    %5050 = vmatpush1.bf16.msra.mxu0 0
    %5051 = vmatprep.subr.bf16.mxu0 0
    %5052 = vmatpush1.bf16.msra.mxu0 0
    %5053 = vmatprep.subr.bf16.mxu0 0
    %5054 = vmatpush1.bf16.msra.mxu0 0
    %5055 = vmatprep.subr.bf16.mxu0 0
    %5056 = vmatpush1.bf16.msra.mxu0 0
    %5057 = vmatprep.subr.bf16.mxu0 0
    %5058 = vmatpush1.bf16.msra.mxu0 0
    %5059 = vmatprep.mubr.bf16.mxu0 0
    %5060 = vmatmul.mubr.bf16.gmra.mrb[0].mxu0 %v5025
    %v5061 = vpop.f32.mrb[0].mxu0
    %v5062 = vadd.f32 0.0, %v5061
    %v5063 = vpop.f32.mrb[0].mxu0
    %v5064 = vpop.f32.mrb[0].mxu0
    %v5065 = vpop.f32.mrb[0].mxu0
    %5066 = vdwg.mxu0
    %v5071 = vunpack.c.l.b16 %v4340
    %v5072 = vunpack.c.l.b16 %v4341
    %v5073 = vunpack.c.l.b16 %v4342
    %v5074 = vunpack.c.l.b16 %v4343
    %v5075 = vpack.c.b16 %v5072, %v5071
    %v5076 = vpack.c.b16 %v5074, %v5073
    %v5080 = vsel %vm653, %v4285, 0
    %5082 = vmatprep.subr.bf16.mxu0 0
    %5083 = vmatpush1.bf16.msra.mxu0 %v5075
    %5084 = vmatprep.subr.bf16.mxu0 0
    %5085 = vmatpush1.bf16.msra.mxu0 %v5076
    %5086 = vmatprep.subr.bf16.mxu0 0
    %5087 = vmatpush1.bf16.msra.mxu0 0
    %5088 = vmatprep.subr.bf16.mxu0 0
    %5089 = vmatpush1.bf16.msra.mxu0 0
    %5090 = vmatprep.subr.bf16.mxu0 0
    %5091 = vmatpush1.bf16.msra.mxu0 0
    %5092 = vmatprep.subr.bf16.mxu0 0
    %5093 = vmatpush1.bf16.msra.mxu0 0
    %5094 = vmatprep.subr.bf16.mxu0 0
    %5095 = vmatpush1.bf16.msra.mxu0 0
    %5096 = vmatprep.subr.bf16.mxu0 0
    %5097 = vmatpush1.bf16.msra.mxu0 0
    %5098 = vmatprep.subr.bf16.mxu0 0
    %5099 = vmatpush1.bf16.msra.mxu0 0
    %5100 = vmatprep.subr.bf16.mxu0 0
    %5101 = vmatpush1.bf16.msra.mxu0 0
    %5102 = vmatprep.subr.bf16.mxu0 0
    %5103 = vmatpush1.bf16.msra.mxu0 0
    %5104 = vmatprep.subr.bf16.mxu0 0
    %5105 = vmatpush1.bf16.msra.mxu0 0
    %5106 = vmatprep.subr.bf16.mxu0 0
    %5107 = vmatpush1.bf16.msra.mxu0 0
    %5108 = vmatprep.subr.bf16.mxu0 0
    %5109 = vmatpush1.bf16.msra.mxu0 0
    %5110 = vmatprep.subr.bf16.mxu0 0
    %5111 = vmatpush1.bf16.msra.mxu0 0
    %5112 = vmatprep.subr.bf16.mxu0 0
    %5113 = vmatpush1.bf16.msra.mxu0 0
    %5114 = vmatprep.mubr.bf16.mxu0 0
    %5115 = vmatmul.mubr.bf16.gmra.mrb[0].mxu0 %v5080
    %v5116 = vpop.f32.mrb[0].mxu0
    %v5117 = vadd.f32 0.0, %v5116
    %v5118 = vpop.f32.mrb[0].mxu0
    %v5119 = vpop.f32.mrb[0].mxu0
    %v5120 = vpop.f32.mrb[0].mxu0
    %5121 = vdwg.mxu0
    %v5126 = vunpack.c.l.b16 %v4344
    %v5127 = vunpack.c.l.b16 %v4345
    %v5128 = vunpack.c.l.b16 %v4346
    %v5129 = vunpack.c.l.b16 %v4347
    %v5130 = vpack.c.b16 %v5127, %v5126
    %v5131 = vpack.c.b16 %v5129, %v5128
    %v5135 = vsel %vm653, %v4286, 0
    %5137 = vmatprep.subr.bf16.mxu0 0
    %5138 = vmatpush1.bf16.msra.mxu0 %v5130
    %5139 = vmatprep.subr.bf16.mxu0 0
    %5140 = vmatpush1.bf16.msra.mxu0 %v5131
    %5141 = vmatprep.subr.bf16.mxu0 0
    %5142 = vmatpush1.bf16.msra.mxu0 0
    %5143 = vmatprep.subr.bf16.mxu0 0
    %5144 = vmatpush1.bf16.msra.mxu0 0
    %5145 = vmatprep.subr.bf16.mxu0 0
    %5146 = vmatpush1.bf16.msra.mxu0 0
    %5147 = vmatprep.subr.bf16.mxu0 0
    %5148 = vmatpush1.bf16.msra.mxu0 0
    %5149 = vmatprep.subr.bf16.mxu0 0
    %5150 = vmatpush1.bf16.msra.mxu0 0
    %5151 = vmatprep.subr.bf16.mxu0 0
    %5152 = vmatpush1.bf16.msra.mxu0 0
    %5153 = vmatprep.subr.bf16.mxu0 0
    %5154 = vmatpush1.bf16.msra.mxu0 0
    %5155 = vmatprep.subr.bf16.mxu0 0
    %5156 = vmatpush1.bf16.msra.mxu0 0
    %5157 = vmatprep.subr.bf16.mxu0 0
    %5158 = vmatpush1.bf16.msra.mxu0 0
    %5159 = vmatprep.subr.bf16.mxu0 0
    %5160 = vmatpush1.bf16.msra.mxu0 0
    %5161 = vmatprep.subr.bf16.mxu0 0
    %5162 = vmatpush1.bf16.msra.mxu0 0
    %5163 = vmatprep.subr.bf16.mxu0 0
    %5164 = vmatpush1.bf16.msra.mxu0 0
    %5165 = vmatprep.subr.bf16.mxu0 0
    %5166 = vmatpush1.bf16.msra.mxu0 0
    %5167 = vmatprep.subr.bf16.mxu0 0
    %5168 = vmatpush1.bf16.msra.mxu0 0
    %5169 = vmatprep.mubr.bf16.mxu0 0
    %5170 = vmatmul.mubr.bf16.gmra.mrb[0].mxu0 %v5135
    %v5171 = vpop.f32.mrb[0].mxu0
    %v5172 = vadd.f32 0.0, %v5171
    %v5173 = vpop.f32.mrb[0].mxu0
    %v5174 = vpop.f32.mrb[0].mxu0
    %v5175 = vpop.f32.mrb[0].mxu0
    %5176 = vdwg.mxu0
    %v5181 = vunpack.c.l.b16 %v4348
    %v5182 = vunpack.c.l.b16 %v4349
    %v5183 = vunpack.c.l.b16 %v4350
    %v5184 = vunpack.c.l.b16 %v4351
    %v5185 = vpack.c.b16 %v5182, %v5181
    %v5186 = vpack.c.b16 %v5184, %v5183
    %v5190 = vsel %vm653, %v4287, 0
    %5192 = vmatprep.subr.bf16.mxu0 0
    %5193 = vmatpush1.bf16.msra.mxu0 %v5185
    %5194 = vmatprep.subr.bf16.mxu0 0
    %5195 = vmatpush1.bf16.msra.mxu0 %v5186
    %5196 = vmatprep.subr.bf16.mxu0 0
    %5197 = vmatpush1.bf16.msra.mxu0 0
    %5198 = vmatprep.subr.bf16.mxu0 0
    %5199 = vmatpush1.bf16.msra.mxu0 0
    %5200 = vmatprep.subr.bf16.mxu0 0
    %5201 = vmatpush1.bf16.msra.mxu0 0
    %5202 = vmatprep.subr.bf16.mxu0 0
    %5203 = vmatpush1.bf16.msra.mxu0 0
    %5204 = vmatprep.subr.bf16.mxu0 0
    %5205 = vmatpush1.bf16.msra.mxu0 0
    %5206 = vmatprep.subr.bf16.mxu0 0
    %5207 = vmatpush1.bf16.msra.mxu0 0
    %5208 = vmatprep.subr.bf16.mxu0 0
    %5209 = vmatpush1.bf16.msra.mxu0 0
    %5210 = vmatprep.subr.bf16.mxu0 0
    %5211 = vmatpush1.bf16.msra.mxu0 0
    %5212 = vmatprep.subr.bf16.mxu0 0
    %5213 = vmatpush1.bf16.msra.mxu0 0
    %5214 = vmatprep.subr.bf16.mxu0 0
    %5215 = vmatpush1.bf16.msra.mxu0 0
    %5216 = vmatprep.subr.bf16.mxu0 0
    %5217 = vmatpush1.bf16.msra.mxu0 0
    %5218 = vmatprep.subr.bf16.mxu0 0
    %5219 = vmatpush1.bf16.msra.mxu0 0
    %5220 = vmatprep.subr.bf16.mxu0 0
    %5221 = vmatpush1.bf16.msra.mxu0 0
    %5222 = vmatprep.subr.bf16.mxu0 0
    %5223 = vmatpush1.bf16.msra.mxu0 0
    %5224 = vmatprep.mubr.bf16.mxu0 0
    %5225 = vmatmul.mubr.bf16.gmra.mrb[0].mxu0 %v5190
    %v5226 = vpop.f32.mrb[0].mxu0
    %v5227 = vadd.f32 0.0, %v5226
    %v5228 = vpop.f32.mrb[0].mxu0
    %v5229 = vpop.f32.mrb[0].mxu0
    %v5230 = vpop.f32.mrb[0].mxu0
    %5231 = vdwg.mxu0
    %vm5232 = vcmask 123904
    %v5233 = vsel %vm5232, %v4402, 0.0
    %v5234 = vsel %vm5232, %v4457, 0.0
    %v5235 = vadd.f32 %v5233, %v5234
    %v5236 = vsel %vm5232, %v4512, 0.0
    %v5237 = vadd.f32 %v5235, %v5236
    %v5238 = vsel %vm5232, %v4567, 0.0
    %v5239 = vadd.f32 %v5237, %v5238
    %v5240 = vsel %vm5232, %v4622, 0.0
    %v5241 = vadd.f32 %v5239, %v5240
    %v5242 = vsel %vm5232, %v4677, 0.0
    %v5243 = vadd.f32 %v5241, %v5242
    %v5244 = vsel %vm5232, %v4732, 0.0
    %v5245 = vadd.f32 %v5243, %v5244
    %v5246 = vsel %vm5232, %v4787, 0.0
    %v5247 = vadd.f32 %v5245, %v5246
    %v5248 = vsel %vm5232, %v4842, 0.0
    %v5249 = vadd.f32 %v5247, %v5248
    %v5250 = vsel %vm5232, %v4897, 0.0
    %v5251 = vadd.f32 %v5249, %v5250
    %v5252 = vsel %vm5232, %v4952, 0.0
    %v5253 = vadd.f32 %v5251, %v5252
    %v5254 = vsel %vm5232, %v5007, 0.0
    %v5255 = vadd.f32 %v5253, %v5254
    %v5256 = vsel %vm5232, %v5062, 0.0
    %v5257 = vadd.f32 %v5255, %v5256
    %v5258 = vsel %vm5232, %v5117, 0.0
    %v5259 = vadd.f32 %v5257, %v5258
    %v5260 = vsel %vm5232, %v5172, 0.0
    %v5261 = vadd.f32 %v5259, %v5260
    %v5262 = vsel %vm5232, %v5227, 0.0
    %v5263 = vadd.f32 %v5261, %v5262
    %v5264 = vld [vmem:[%s10] sm:$0x1]
    %v5266 = vlaneseq
    %v5267 = vshrl.u32 %v5266, 7
    %v5268 = vsub.s32 0, %v5267
    %v5269 = vrot.slane %v5264, %v5268
    %v5271 = vadd.f32 %v5263, %v5269
    %5272 = vst.msk [vmem:[#allocation2] sm:$0x3] %vm5232, %v5271
    // Predicated region
    $region46: #{pokemon_identifier_forward.1} parent=1 // pred_check
      _
    $region47: #{pokemon_identifier_forward.1} parent=1 // pred_check_branch
      %5274 = sbr.rel (0) target = $region49
    $region48: #{pokemon_identifier_forward.1} parent=1 // pred_region
      %s5276 = ssub.s32 32, 32
      %5277 = vsyncadd [#allocation3], %s5276
      %s5279 = sshll.u32 [#allocation2], 4
      %s5280 = int_to_ptr.vmem [resolvable:$true] %s5279
      %5282 = dma.vmem_to_hbm [thread:$0]  %s5280, 32, %s11, [#allocation3]
    $region49: #{pokemon_identifier_forward.1} parent=1 // pred_fallthru
      _
    // Predicated region
    $region50: #{pokemon_identifier_forward.1} parent=1 // pred_check
      _
    $region51: #{pokemon_identifier_forward.1} parent=1 // pred_check_branch
      %5284 = sbr.rel (0) target = $region53
    $region52: #{pokemon_identifier_forward.1} parent=1 // pred_region
      %5285 = dma.done [#allocation3], 32
    $region53: #{pokemon_identifier_forward.1} parent=1 // pred_fallthru
      _
    %5286 = vsyncpa [#allocation3], 1

</llo_original>
